<compile_context>
chip_gen: v7x
topology: tpu7x:2x2x1
jax: 0.10.0
libtpu: 0.0.40
codegen_flags: <defaults>
</compile_context>

<pallas_src>
from functools import partial

import jax
import jax.numpy as jnp
from jax.experimental import pallas as pl
from jax.experimental.pallas import tpu as pltpu


def spatial_gate_kernel(x_ref, w_ref, b_ref, o_ref, *, B_blk, H, W, KH, KW, P):
    """One grid step processes B_blk full samples (lane-dense (C, H*W) layout).

    x_ref: (B_blk, C, H*W)  VMEM  -- input block, native dtype
    w_ref: (2*KH*KW,)       SMEM  -- conv taps with eval-BN scale pre-folded (f32)
    b_ref: (1,)             SMEM  -- folded eval-BN bias (f32)
    o_ref: (B_blk, C, H*W)  VMEM  -- gated output, native dtype
    """

    def rows_to_2d(flat):            # (1, H*W) f32 -> (H, W) f32 (tiny map only)
        return jnp.concatenate(
            [flat[:, h * W:(h + 1) * W] for h in range(H)], axis=0)

    def pad2d(a):                    # (H, W) -> (H+2P, W+2P), zero pad
        zr = jnp.zeros((P, W), jnp.float32)
        a = jnp.concatenate([zr, a, zr], axis=0)
        zc = jnp.zeros((H + 2 * P, P), jnp.float32)
        return jnp.concatenate([zc, a, zc], axis=1)

    for b in range(B_blk):           # static unroll; B_blk kept small
        xb = x_ref[b]                                        # (C, H*W), native dtype

        # ---- ChannelPool on lane-dense data (mean accumulated in f32) ----
        cmax = jnp.max(xb, axis=0, keepdims=True).astype(jnp.float32)        # (1, H*W)
        cmean = (jnp.sum(xb.astype(jnp.float32), axis=0, keepdims=True)
                 * (1.0 / xb.shape[0]))                                      # (1, H*W)

        padded = (pad2d(rows_to_2d(cmax)), pad2d(rows_to_2d(cmean)))

        # ---- 7x7 conv: hoisted lane slices (one per (c, kw)), sublane kh ----
        # ---- slices, 4 independent accumulators. MXU skipped (2->1 ch). ----
        accs = [jnp.zeros((H, W), jnp.float32) for _ in range(4)]
        for c in range(2):
            pm = padded[c]                                   # (H+2P, W+2P)
            for kw in range(KW):
                col = pm[:, kw:kw + W]                       # one lane slice / (c, kw)
                for kh in range(KH):
                    tap = w_ref[c * KH * KW + kh * KW + kw]  # SMEM scalar (scale folded)
                    a_i = 2 * c + (kh & 1)
                    accs[a_i] = accs[a_i] + col[kh:kh + H, :] * tap
        y = (accs[0] + accs[1]) + (accs[2] + accs[3]) + b_ref[0]   # only BN bias left

        # ---- sigmoid gate (EUP); flatten back to lane-dense (1, H*W) ----
        gate = jax.nn.sigmoid(y)                                              # (H, W)
        gate_flat = jnp.concatenate(
            [gate[h:h + 1, :] for h in range(H)], axis=1)                     # (1, H*W)

        o_ref[b] = (xb * gate_flat.astype(xb.dtype)).astype(o_ref.dtype)


def _pick_batch_block(n, per_sample_bytes, target_bytes=2 << 20, max_unroll=8):
    """Largest divisor of n (capped) whose block stays under target_bytes."""
    best = 1
    for b in range(1, min(n, max_unroll) + 1):
        if n % b == 0 and b * per_sample_bytes <= target_bytes:
            best = b
    return best


def spatial_gate(x, weight, gamma, beta, running_mean, running_var, *, eps=1e-5):
    """SpatialGate forward (eval-mode BN). x: (N, C, H, W); weight: (1, 2, KH, KW)."""
    N, C, H, W = x.shape
    Cout, Cin, KH, KW = weight.shape
    assert Cout == 1 and Cin == 2 and KH == KW
    P = (KH - 1) // 2
    HW = H * W

    # Fold eval-mode BatchNorm (Cout == 1) into the conv taps + a scalar bias.
    scale = (gamma.astype(jnp.float32)
             / jnp.sqrt(running_var.astype(jnp.float32) + eps)).reshape(())
    w_fold = (weight[0].astype(jnp.float32) * scale).reshape(-1)          # (2*KH*KW,)
    bias = (beta.astype(jnp.float32).reshape(())
            - running_mean.astype(jnp.float32).reshape(()) * scale).reshape(1)

    # Lane-dense view: put H*W on lanes (free reshape of contiguous NCHW).
    x2 = x.reshape(N, C, HW)

    per_sample_bytes = C * HW * x.dtype.itemsize
    B_blk = _pick_batch_block(N, per_sample_bytes)
    block_bytes = B_blk * per_sample_bytes
    vmem_limit = int(min(64 << 20, max(32 << 20, 4 * block_bytes + (4 << 20))))

    kern = partial(spatial_gate_kernel, B_blk=B_blk, H=H, W=W, KH=KH, KW=KW, P=P)

    out = pl.pallas_call(
        kern,
        out_shape=jax.ShapeDtypeStruct((N, C, HW), x.dtype),
        grid=(N // B_blk,),
        in_specs=[
            # lane-dense blocks: last dim is the full H*W row (dense vregs/stores)
            pl.BlockSpec((B_blk, C, HW), lambda n: (n, 0, 0)),
            # scalar parameters live in SMEM (read as scalars inside the kernel)
            pl.BlockSpec(memory_space=pltpu.MemorySpace.SMEM),
            pl.BlockSpec(memory_space=pltpu.MemorySpace.SMEM),
        ],
        out_specs=pl.BlockSpec((B_blk, C, HW), lambda n: (n, 0, 0)),
        compiler_params=pltpu.CompilerParams(
            dimension_semantics=("parallel",),
            vmem_limit_bytes=vmem_limit),
    )(x2, w_fold, bias)
    return out.reshape(N, C, H, W)


if __name__ == "__main__":
    key = jax.random.PRNGKey(0)
    k1, k2, k3, k4, k5, k6 = jax.random.split(key, 6)

    # small shapes consistent with SpatialGate: kernel_size=7, conv(2 -> 1)
    N, C, H, W = 2, 4, 16, 16
    K = 7

    x = jax.random.normal(k1, (N, C, H, W), jnp.float32)
    weight = 0.1 * jax.random.normal(k2, (1, 2, K, K), jnp.float32)
    gamma = 1.0 + 0.1 * jax.random.normal(k3, (1,), jnp.float32)
    beta = 0.1 * jax.random.normal(k4, (1,), jnp.float32)
    running_mean = 0.1 * jax.random.normal(k5, (1,), jnp.float32)
    running_var = jax.random.uniform(k6, (1,), jnp.float32, 0.5, 1.5)

    out = spatial_gate(x, weight, gamma, beta, running_mean, running_var)
    out = jax.block_until_ready(out)

    # reference: ChannelPool -> XLA conv -> eval-mode BN -> sigmoid -> gate
    cmax = jnp.max(x, axis=1, keepdims=True)
    cmean = jnp.mean(x, axis=1, keepdims=True)
    comp = jnp.concatenate([cmax, cmean], axis=1)
    conv = jax.lax.conv_general_dilated(
        comp, weight, window_strides=(1, 1), padding=[(3, 3), (3, 3)],
        dimension_numbers=("NCHW", "OIHW", "NCHW"))
    sc = gamma / jnp.sqrt(running_var + 1e-5)
    sh = beta - running_mean * sc
    bn = conv * sc[None, :, None, None] + sh[None, :, None, None]
    ref = x * jax.nn.sigmoid(bn)

    assert out.shape == (N, C, H, W)
    assert out.dtype == x.dtype
    assert jnp.allclose(out, ref, atol=1e-4, rtol=1e-4), "mismatch vs reference"
    print("KERNEL_OK")
</pallas_src>

<mosaic_0001>
module attributes {stable_mosaic.version = 11 : i64} {
  func.func @spatial_gate_kernel(%arg0: i32, %arg1: memref<2x4x256xf32, #tpu.memory_space<vmem>>, %arg2: memref<98xf32, #tpu.memory_space<smem>>, %arg3: memref<1xf32, #tpu.memory_space<smem>>, %arg4: memref<2x4x256xf32, #tpu.memory_space<vmem>>) attributes {dimension_semantics = [#tpu.dimension_semantics<parallel>], iteration_bounds = array<i64: 1>, scalar_prefetch = 0 : i64, scratch_operands = 0 : i64, tpu.core_type = #tpu.core_type<tc>, window_params = [{transform_indices = @transform_0, window_bounds = array<i64: 2, 4, 256>}, {transform_indices = @transform_1, window_bounds = array<i64: 98>}, {transform_indices = @transform_2, window_bounds = array<i64: 1>}, {transform_indices = @transform_3, window_bounds = array<i64: 2, 4, 256>}]} {
    %c0 = arith.constant 0 : index
    %c0_0 = arith.constant 0 : index
    %c0_1 = arith.constant 0 : index
    %0 = vector.load %arg1[%c0, %c0_0, %c0_1] : memref<2x4x256xf32, #tpu.memory_space<vmem>>, vector<1x4x256xf32>
    %1 = vector.shape_cast %0 : vector<1x4x256xf32> to vector<4x256xf32>
    %cst = arith.constant dense<0xFF800000> : vector<256xf32>
    %2 = vector.multi_reduction <maximumf>, %1, %cst [0] : vector<4x256xf32> to vector<256xf32>
    %3 = vector.shape_cast %2 : vector<256xf32> to vector<1x256xf32>
    %cst_2 = arith.constant dense<0.000000e+00> : vector<256xf32>
    %4 = vector.multi_reduction <add>, %1, %cst_2 [0] : vector<4x256xf32> to vector<256xf32>
    %5 = vector.shape_cast %4 : vector<256xf32> to vector<1x256xf32>
    %cst_3 = arith.constant 2.500000e-01 : f32
    %6 = vector.broadcast %cst_3 : f32 to vector<1x256xf32>
    %7 = arith.mulf %5, %6 : vector<1x256xf32>
    %8 = vector.extract_strided_slice %3 {offsets = [0, 0], sizes = [1, 16], strides = [1, 1]} : vector<1x256xf32> to vector<1x16xf32>
    %9 = vector.extract_strided_slice %3 {offsets = [0, 16], sizes = [1, 16], strides = [1, 1]} : vector<1x256xf32> to vector<1x16xf32>
    %10 = vector.extract_strided_slice %3 {offsets = [0, 32], sizes = [1, 16], strides = [1, 1]} : vector<1x256xf32> to vector<1x16xf32>
    %11 = vector.extract_strided_slice %3 {offsets = [0, 48], sizes = [1, 16], strides = [1, 1]} : vector<1x256xf32> to vector<1x16xf32>
    %12 = vector.extract_strided_slice %3 {offsets = [0, 64], sizes = [1, 16], strides = [1, 1]} : vector<1x256xf32> to vector<1x16xf32>
    %13 = vector.extract_strided_slice %3 {offsets = [0, 80], sizes = [1, 16], strides = [1, 1]} : vector<1x256xf32> to vector<1x16xf32>
    %14 = vector.extract_strided_slice %3 {offsets = [0, 96], sizes = [1, 16], strides = [1, 1]} : vector<1x256xf32> to vector<1x16xf32>
    %15 = vector.extract_strided_slice %3 {offsets = [0, 112], sizes = [1, 16], strides = [1, 1]} : vector<1x256xf32> to vector<1x16xf32>
    %16 = vector.extract_strided_slice %3 {offsets = [0, 128], sizes = [1, 16], strides = [1, 1]} : vector<1x256xf32> to vector<1x16xf32>
    %17 = vector.extract_strided_slice %3 {offsets = [0, 144], sizes = [1, 16], strides = [1, 1]} : vector<1x256xf32> to vector<1x16xf32>
    %18 = vector.extract_strided_slice %3 {offsets = [0, 160], sizes = [1, 16], strides = [1, 1]} : vector<1x256xf32> to vector<1x16xf32>
    %19 = vector.extract_strided_slice %3 {offsets = [0, 176], sizes = [1, 16], strides = [1, 1]} : vector<1x256xf32> to vector<1x16xf32>
    %20 = vector.extract_strided_slice %3 {offsets = [0, 192], sizes = [1, 16], strides = [1, 1]} : vector<1x256xf32> to vector<1x16xf32>
    %21 = vector.extract_strided_slice %3 {offsets = [0, 208], sizes = [1, 16], strides = [1, 1]} : vector<1x256xf32> to vector<1x16xf32>
    %22 = vector.extract_strided_slice %3 {offsets = [0, 224], sizes = [1, 16], strides = [1, 1]} : vector<1x256xf32> to vector<1x16xf32>
    %23 = vector.extract_strided_slice %3 {offsets = [0, 240], sizes = [1, 16], strides = [1, 1]} : vector<1x256xf32> to vector<1x16xf32>
    %24 = tpu.concatenate %8, %9, %10, %11, %12, %13, %14, %15, %16, %17, %18, %19, %20, %21, %22, %23 in 0 : vector<1x16xf32>, vector<1x16xf32>, vector<1x16xf32>, vector<1x16xf32>, vector<1x16xf32>, vector<1x16xf32>, vector<1x16xf32>, vector<1x16xf32>, vector<1x16xf32>, vector<1x16xf32>, vector<1x16xf32>, vector<1x16xf32>, vector<1x16xf32>, vector<1x16xf32>, vector<1x16xf32>, vector<1x16xf32> -> vector<16x16xf32>
    %cst_4 = arith.constant 0.000000e+00 : f32
    %25 = vector.broadcast %cst_4 : f32 to vector<3x16xf32>
    %26 = tpu.concatenate %25, %24, %25 in 0 : vector<3x16xf32>, vector<16x16xf32>, vector<3x16xf32> -> vector<22x16xf32>
    %cst_5 = arith.constant 0.000000e+00 : f32
    %27 = vector.broadcast %cst_5 : f32 to vector<22x3xf32>
    %28 = tpu.concatenate %27, %26, %27 in 1 : vector<22x3xf32>, vector<22x16xf32>, vector<22x3xf32> -> vector<22x22xf32>
    %29 = vector.extract_strided_slice %7 {offsets = [0, 0], sizes = [1, 16], strides = [1, 1]} : vector<1x256xf32> to vector<1x16xf32>
    %30 = vector.extract_strided_slice %7 {offsets = [0, 16], sizes = [1, 16], strides = [1, 1]} : vector<1x256xf32> to vector<1x16xf32>
    %31 = vector.extract_strided_slice %7 {offsets = [0, 32], sizes = [1, 16], strides = [1, 1]} : vector<1x256xf32> to vector<1x16xf32>
    %32 = vector.extract_strided_slice %7 {offsets = [0, 48], sizes = [1, 16], strides = [1, 1]} : vector<1x256xf32> to vector<1x16xf32>
    %33 = vector.extract_strided_slice %7 {offsets = [0, 64], sizes = [1, 16], strides = [1, 1]} : vector<1x256xf32> to vector<1x16xf32>
    %34 = vector.extract_strided_slice %7 {offsets = [0, 80], sizes = [1, 16], strides = [1, 1]} : vector<1x256xf32> to vector<1x16xf32>
    %35 = vector.extract_strided_slice %7 {offsets = [0, 96], sizes = [1, 16], strides = [1, 1]} : vector<1x256xf32> to vector<1x16xf32>
    %36 = vector.extract_strided_slice %7 {offsets = [0, 112], sizes = [1, 16], strides = [1, 1]} : vector<1x256xf32> to vector<1x16xf32>
    %37 = vector.extract_strided_slice %7 {offsets = [0, 128], sizes = [1, 16], strides = [1, 1]} : vector<1x256xf32> to vector<1x16xf32>
    %38 = vector.extract_strided_slice %7 {offsets = [0, 144], sizes = [1, 16], strides = [1, 1]} : vector<1x256xf32> to vector<1x16xf32>
    %39 = vector.extract_strided_slice %7 {offsets = [0, 160], sizes = [1, 16], strides = [1, 1]} : vector<1x256xf32> to vector<1x16xf32>
    %40 = vector.extract_strided_slice %7 {offsets = [0, 176], sizes = [1, 16], strides = [1, 1]} : vector<1x256xf32> to vector<1x16xf32>
    %41 = vector.extract_strided_slice %7 {offsets = [0, 192], sizes = [1, 16], strides = [1, 1]} : vector<1x256xf32> to vector<1x16xf32>
    %42 = vector.extract_strided_slice %7 {offsets = [0, 208], sizes = [1, 16], strides = [1, 1]} : vector<1x256xf32> to vector<1x16xf32>
    %43 = vector.extract_strided_slice %7 {offsets = [0, 224], sizes = [1, 16], strides = [1, 1]} : vector<1x256xf32> to vector<1x16xf32>
    %44 = vector.extract_strided_slice %7 {offsets = [0, 240], sizes = [1, 16], strides = [1, 1]} : vector<1x256xf32> to vector<1x16xf32>
    %45 = tpu.concatenate %29, %30, %31, %32, %33, %34, %35, %36, %37, %38, %39, %40, %41, %42, %43, %44 in 0 : vector<1x16xf32>, vector<1x16xf32>, vector<1x16xf32>, vector<1x16xf32>, vector<1x16xf32>, vector<1x16xf32>, vector<1x16xf32>, vector<1x16xf32>, vector<1x16xf32>, vector<1x16xf32>, vector<1x16xf32>, vector<1x16xf32>, vector<1x16xf32>, vector<1x16xf32>, vector<1x16xf32>, vector<1x16xf32> -> vector<16x16xf32>
    %cst_6 = arith.constant 0.000000e+00 : f32
    %46 = vector.broadcast %cst_6 : f32 to vector<3x16xf32>
    %47 = tpu.concatenate %46, %45, %46 in 0 : vector<3x16xf32>, vector<16x16xf32>, vector<3x16xf32> -> vector<22x16xf32>
    %cst_7 = arith.constant 0.000000e+00 : f32
    %48 = vector.broadcast %cst_7 : f32 to vector<22x3xf32>
    %49 = tpu.concatenate %48, %47, %48 in 1 : vector<22x3xf32>, vector<22x16xf32>, vector<22x3xf32> -> vector<22x22xf32>
    %cst_8 = arith.constant 0.000000e+00 : f32
    %50 = vector.broadcast %cst_8 : f32 to vector<16x16xf32>
    %cst_9 = arith.constant 0.000000e+00 : f32
    %51 = vector.broadcast %cst_9 : f32 to vector<16x16xf32>
    %cst_10 = arith.constant 0.000000e+00 : f32
    %52 = vector.broadcast %cst_10 : f32 to vector<16x16xf32>
    %cst_11 = arith.constant 0.000000e+00 : f32
    %53 = vector.broadcast %cst_11 : f32 to vector<16x16xf32>
    %54 = vector.extract_strided_slice %28 {offsets = [0, 0], sizes = [22, 16], strides = [1, 1]} : vector<22x22xf32> to vector<22x16xf32>
    %c0_12 = arith.constant 0 : index
    %55 = memref.load %arg2[%c0_12] : memref<98xf32, #tpu.memory_space<smem>>
    %56 = vector.extract_strided_slice %54 {offsets = [0, 0], sizes = [16, 16], strides = [1, 1]} : vector<22x16xf32> to vector<16x16xf32>
    %57 = vector.broadcast %55 : f32 to vector<16x16xf32>
    %58 = arith.mulf %56, %57 : vector<16x16xf32>
    %59 = arith.addf %50, %58 : vector<16x16xf32>
    %c7 = arith.constant 7 : index
    %60 = memref.load %arg2[%c7] : memref<98xf32, #tpu.memory_space<smem>>
    %61 = vector.extract_strided_slice %54 {offsets = [1, 0], sizes = [16, 16], strides = [1, 1]} : vector<22x16xf32> to vector<16x16xf32>
    %62 = vector.broadcast %60 : f32 to vector<16x16xf32>
    %63 = arith.mulf %61, %62 : vector<16x16xf32>
    %64 = arith.addf %51, %63 : vector<16x16xf32>
    %c14 = arith.constant 14 : index
    %65 = memref.load %arg2[%c14] : memref<98xf32, #tpu.memory_space<smem>>
    %66 = vector.extract_strided_slice %54 {offsets = [2, 0], sizes = [16, 16], strides = [1, 1]} : vector<22x16xf32> to vector<16x16xf32>
    %67 = vector.broadcast %65 : f32 to vector<16x16xf32>
    %68 = arith.mulf %66, %67 : vector<16x16xf32>
    %69 = arith.addf %59, %68 : vector<16x16xf32>
    %c21 = arith.constant 21 : index
    %70 = memref.load %arg2[%c21] : memref<98xf32, #tpu.memory_space<smem>>
    %71 = vector.extract_strided_slice %54 {offsets = [3, 0], sizes = [16, 16], strides = [1, 1]} : vector<22x16xf32> to vector<16x16xf32>
    %72 = vector.broadcast %70 : f32 to vector<16x16xf32>
    %73 = arith.mulf %71, %72 : vector<16x16xf32>
    %74 = arith.addf %64, %73 : vector<16x16xf32>
    %c28 = arith.constant 28 : index
    %75 = memref.load %arg2[%c28] : memref<98xf32, #tpu.memory_space<smem>>
    %76 = vector.extract_strided_slice %54 {offsets = [4, 0], sizes = [16, 16], strides = [1, 1]} : vector<22x16xf32> to vector<16x16xf32>
    %77 = vector.broadcast %75 : f32 to vector<16x16xf32>
    %78 = arith.mulf %76, %77 : vector<16x16xf32>
    %79 = arith.addf %69, %78 : vector<16x16xf32>
    %c35 = arith.constant 35 : index
    %80 = memref.load %arg2[%c35] : memref<98xf32, #tpu.memory_space<smem>>
    %81 = vector.extract_strided_slice %54 {offsets = [5, 0], sizes = [16, 16], strides = [1, 1]} : vector<22x16xf32> to vector<16x16xf32>
    %82 = vector.broadcast %80 : f32 to vector<16x16xf32>
    %83 = arith.mulf %81, %82 : vector<16x16xf32>
    %84 = arith.addf %74, %83 : vector<16x16xf32>
    %c42 = arith.constant 42 : index
    %85 = memref.load %arg2[%c42] : memref<98xf32, #tpu.memory_space<smem>>
    %86 = vector.extract_strided_slice %54 {offsets = [6, 0], sizes = [16, 16], strides = [1, 1]} : vector<22x16xf32> to vector<16x16xf32>
    %87 = vector.broadcast %85 : f32 to vector<16x16xf32>
    %88 = arith.mulf %86, %87 : vector<16x16xf32>
    %89 = arith.addf %79, %88 : vector<16x16xf32>
    %90 = vector.extract_strided_slice %28 {offsets = [0, 1], sizes = [22, 16], strides = [1, 1]} : vector<22x22xf32> to vector<22x16xf32>
    %c1 = arith.constant 1 : index
    %91 = memref.load %arg2[%c1] : memref<98xf32, #tpu.memory_space<smem>>
    %92 = vector.extract_strided_slice %90 {offsets = [0, 0], sizes = [16, 16], strides = [1, 1]} : vector<22x16xf32> to vector<16x16xf32>
    %93 = vector.broadcast %91 : f32 to vector<16x16xf32>
    %94 = arith.mulf %92, %93 : vector<16x16xf32>
    %95 = arith.addf %89, %94 : vector<16x16xf32>
    %c8 = arith.constant 8 : index
    %96 = memref.load %arg2[%c8] : memref<98xf32, #tpu.memory_space<smem>>
    %97 = vector.extract_strided_slice %90 {offsets = [1, 0], sizes = [16, 16], strides = [1, 1]} : vector<22x16xf32> to vector<16x16xf32>
    %98 = vector.broadcast %96 : f32 to vector<16x16xf32>
    %99 = arith.mulf %97, %98 : vector<16x16xf32>
    %100 = arith.addf %84, %99 : vector<16x16xf32>
    %c15 = arith.constant 15 : index
    %101 = memref.load %arg2[%c15] : memref<98xf32, #tpu.memory_space<smem>>
    %102 = vector.extract_strided_slice %90 {offsets = [2, 0], sizes = [16, 16], strides = [1, 1]} : vector<22x16xf32> to vector<16x16xf32>
    %103 = vector.broadcast %101 : f32 to vector<16x16xf32>
    %104 = arith.mulf %102, %103 : vector<16x16xf32>
    %105 = arith.addf %95, %104 : vector<16x16xf32>
    %c22 = arith.constant 22 : index
    %106 = memref.load %arg2[%c22] : memref<98xf32, #tpu.memory_space<smem>>
    %107 = vector.extract_strided_slice %90 {offsets = [3, 0], sizes = [16, 16], strides = [1, 1]} : vector<22x16xf32> to vector<16x16xf32>
    %108 = vector.broadcast %106 : f32 to vector<16x16xf32>
    %109 = arith.mulf %107, %108 : vector<16x16xf32>
    %110 = arith.addf %100, %109 : vector<16x16xf32>
    %c29 = arith.constant 29 : index
    %111 = memref.load %arg2[%c29] : memref<98xf32, #tpu.memory_space<smem>>
    %112 = vector.extract_strided_slice %90 {offsets = [4, 0], sizes = [16, 16], strides = [1, 1]} : vector<22x16xf32> to vector<16x16xf32>
    %113 = vector.broadcast %111 : f32 to vector<16x16xf32>
    %114 = arith.mulf %112, %113 : vector<16x16xf32>
    %115 = arith.addf %105, %114 : vector<16x16xf32>
    %c36 = arith.constant 36 : index
    %116 = memref.load %arg2[%c36] : memref<98xf32, #tpu.memory_space<smem>>
    %117 = vector.extract_strided_slice %90 {offsets = [5, 0], sizes = [16, 16], strides = [1, 1]} : vector<22x16xf32> to vector<16x16xf32>
    %118 = vector.broadcast %116 : f32 to vector<16x16xf32>
    %119 = arith.mulf %117, %118 : vector<16x16xf32>
    %120 = arith.addf %110, %119 : vector<16x16xf32>
    %c43 = arith.constant 43 : index
    %121 = memref.load %arg2[%c43] : memref<98xf32, #tpu.memory_space<smem>>
    %122 = vector.extract_strided_slice %90 {offsets = [6, 0], sizes = [16, 16], strides = [1, 1]} : vector<22x16xf32> to vector<16x16xf32>
    %123 = vector.broadcast %121 : f32 to vector<16x16xf32>
    %124 = arith.mulf %122, %123 : vector<16x16xf32>
    %125 = arith.addf %115, %124 : vector<16x16xf32>
    %126 = vector.extract_strided_slice %28 {offsets = [0, 2], sizes = [22, 16], strides = [1, 1]} : vector<22x22xf32> to vector<22x16xf32>
    %c2 = arith.constant 2 : index
    %127 = memref.load %arg2[%c2] : memref<98xf32, #tpu.memory_space<smem>>
    %128 = vector.extract_strided_slice %126 {offsets = [0, 0], sizes = [16, 16], strides = [1, 1]} : vector<22x16xf32> to vector<16x16xf32>
    %129 = vector.broadcast %127 : f32 to vector<16x16xf32>
    %130 = arith.mulf %128, %129 : vector<16x16xf32>
    %131 = arith.addf %125, %130 : vector<16x16xf32>
    %c9 = arith.constant 9 : index
    %132 = memref.load %arg2[%c9] : memref<98xf32, #tpu.memory_space<smem>>
    %133 = vector.extract_strided_slice %126 {offsets = [1, 0], sizes = [16, 16], strides = [1, 1]} : vector<22x16xf32> to vector<16x16xf32>
    %134 = vector.broadcast %132 : f32 to vector<16x16xf32>
    %135 = arith.mulf %133, %134 : vector<16x16xf32>
    %136 = arith.addf %120, %135 : vector<16x16xf32>
    %c16 = arith.constant 16 : index
    %137 = memref.load %arg2[%c16] : memref<98xf32, #tpu.memory_space<smem>>
    %138 = vector.extract_strided_slice %126 {offsets = [2, 0], sizes = [16, 16], strides = [1, 1]} : vector<22x16xf32> to vector<16x16xf32>
    %139 = vector.broadcast %137 : f32 to vector<16x16xf32>
    %140 = arith.mulf %138, %139 : vector<16x16xf32>
    %141 = arith.addf %131, %140 : vector<16x16xf32>
    %c23 = arith.constant 23 : index
    %142 = memref.load %arg2[%c23] : memref<98xf32, #tpu.memory_space<smem>>
    %143 = vector.extract_strided_slice %126 {offsets = [3, 0], sizes = [16, 16], strides = [1, 1]} : vector<22x16xf32> to vector<16x16xf32>
    %144 = vector.broadcast %142 : f32 to vector<16x16xf32>
    %145 = arith.mulf %143, %144 : vector<16x16xf32>
    %146 = arith.addf %136, %145 : vector<16x16xf32>
    %c30 = arith.constant 30 : index
    %147 = memref.load %arg2[%c30] : memref<98xf32, #tpu.memory_space<smem>>
    %148 = vector.extract_strided_slice %126 {offsets = [4, 0], sizes = [16, 16], strides = [1, 1]} : vector<22x16xf32> to vector<16x16xf32>
    %149 = vector.broadcast %147 : f32 to vector<16x16xf32>
    %150 = arith.mulf %148, %149 : vector<16x16xf32>
    %151 = arith.addf %141, %150 : vector<16x16xf32>
    %c37 = arith.constant 37 : index
    %152 = memref.load %arg2[%c37] : memref<98xf32, #tpu.memory_space<smem>>
    %153 = vector.extract_strided_slice %126 {offsets = [5, 0], sizes = [16, 16], strides = [1, 1]} : vector<22x16xf32> to vector<16x16xf32>
    %154 = vector.broadcast %152 : f32 to vector<16x16xf32>
    %155 = arith.mulf %153, %154 : vector<16x16xf32>
    %156 = arith.addf %146, %155 : vector<16x16xf32>
    %c44 = arith.constant 44 : index
    %157 = memref.load %arg2[%c44] : memref<98xf32, #tpu.memory_space<smem>>
    %158 = vector.extract_strided_slice %126 {offsets = [6, 0], sizes = [16, 16], strides = [1, 1]} : vector<22x16xf32> to vector<16x16xf32>
    %159 = vector.broadcast %157 : f32 to vector<16x16xf32>
    %160 = arith.mulf %158, %159 : vector<16x16xf32>
    %161 = arith.addf %151, %160 : vector<16x16xf32>
    %162 = vector.extract_strided_slice %28 {offsets = [0, 3], sizes = [22, 16], strides = [1, 1]} : vector<22x22xf32> to vector<22x16xf32>
    %c3 = arith.constant 3 : index
    %163 = memref.load %arg2[%c3] : memref<98xf32, #tpu.memory_space<smem>>
    %164 = vector.extract_strided_slice %162 {offsets = [0, 0], sizes = [16, 16], strides = [1, 1]} : vector<22x16xf32> to vector<16x16xf32>
    %165 = vector.broadcast %163 : f32 to vector<16x16xf32>
    %166 = arith.mulf %164, %165 : vector<16x16xf32>
    %167 = arith.addf %161, %166 : vector<16x16xf32>
    %c10 = arith.constant 10 : index
    %168 = memref.load %arg2[%c10] : memref<98xf32, #tpu.memory_space<smem>>
    %169 = vector.extract_strided_slice %162 {offsets = [1, 0], sizes = [16, 16], strides = [1, 1]} : vector<22x16xf32> to vector<16x16xf32>
    %170 = vector.broadcast %168 : f32 to vector<16x16xf32>
    %171 = arith.mulf %169, %170 : vector<16x16xf32>
    %172 = arith.addf %156, %171 : vector<16x16xf32>
    %c17 = arith.constant 17 : index
    %173 = memref.load %arg2[%c17] : memref<98xf32, #tpu.memory_space<smem>>
    %174 = vector.extract_strided_slice %162 {offsets = [2, 0], sizes = [16, 16], strides = [1, 1]} : vector<22x16xf32> to vector<16x16xf32>
    %175 = vector.broadcast %173 : f32 to vector<16x16xf32>
    %176 = arith.mulf %174, %175 : vector<16x16xf32>
    %177 = arith.addf %167, %176 : vector<16x16xf32>
    %c24 = arith.constant 24 : index
    %178 = memref.load %arg2[%c24] : memref<98xf32, #tpu.memory_space<smem>>
    %179 = vector.extract_strided_slice %162 {offsets = [3, 0], sizes = [16, 16], strides = [1, 1]} : vector<22x16xf32> to vector<16x16xf32>
    %180 = vector.broadcast %178 : f32 to vector<16x16xf32>
    %181 = arith.mulf %179, %180 : vector<16x16xf32>
    %182 = arith.addf %172, %181 : vector<16x16xf32>
    %c31 = arith.constant 31 : index
    %183 = memref.load %arg2[%c31] : memref<98xf32, #tpu.memory_space<smem>>
    %184 = vector.extract_strided_slice %162 {offsets = [4, 0], sizes = [16, 16], strides = [1, 1]} : vector<22x16xf32> to vector<16x16xf32>
    %185 = vector.broadcast %183 : f32 to vector<16x16xf32>
    %186 = arith.mulf %184, %185 : vector<16x16xf32>
    %187 = arith.addf %177, %186 : vector<16x16xf32>
    %c38 = arith.constant 38 : index
    %188 = memref.load %arg2[%c38] : memref<98xf32, #tpu.memory_space<smem>>
    %189 = vector.extract_strided_slice %162 {offsets = [5, 0], sizes = [16, 16], strides = [1, 1]} : vector<22x16xf32> to vector<16x16xf32>
    %190 = vector.broadcast %188 : f32 to vector<16x16xf32>
    %191 = arith.mulf %189, %190 : vector<16x16xf32>
    %192 = arith.addf %182, %191 : vector<16x16xf32>
    %c45 = arith.constant 45 : index
    %193 = memref.load %arg2[%c45] : memref<98xf32, #tpu.memory_space<smem>>
    %194 = vector.extract_strided_slice %162 {offsets = [6, 0], sizes = [16, 16], strides = [1, 1]} : vector<22x16xf32> to vector<16x16xf32>
    %195 = vector.broadcast %193 : f32 to vector<16x16xf32>
    %196 = arith.mulf %194, %195 : vector<16x16xf32>
    %197 = arith.addf %187, %196 : vector<16x16xf32>
    %198 = vector.extract_strided_slice %28 {offsets = [0, 4], sizes = [22, 16], strides = [1, 1]} : vector<22x22xf32> to vector<22x16xf32>
    %c4 = arith.constant 4 : index
    %199 = memref.load %arg2[%c4] : memref<98xf32, #tpu.memory_space<smem>>
    %200 = vector.extract_strided_slice %198 {offsets = [0, 0], sizes = [16, 16], strides = [1, 1]} : vector<22x16xf32> to vector<16x16xf32>
    %201 = vector.broadcast %199 : f32 to vector<16x16xf32>
    %202 = arith.mulf %200, %201 : vector<16x16xf32>
    %203 = arith.addf %197, %202 : vector<16x16xf32>
    %c11 = arith.constant 11 : index
    %204 = memref.load %arg2[%c11] : memref<98xf32, #tpu.memory_space<smem>>
    %205 = vector.extract_strided_slice %198 {offsets = [1, 0], sizes = [16, 16], strides = [1, 1]} : vector<22x16xf32> to vector<16x16xf32>
    %206 = vector.broadcast %204 : f32 to vector<16x16xf32>
    %207 = arith.mulf %205, %206 : vector<16x16xf32>
    %208 = arith.addf %192, %207 : vector<16x16xf32>
    %c18 = arith.constant 18 : index
    %209 = memref.load %arg2[%c18] : memref<98xf32, #tpu.memory_space<smem>>
    %210 = vector.extract_strided_slice %198 {offsets = [2, 0], sizes = [16, 16], strides = [1, 1]} : vector<22x16xf32> to vector<16x16xf32>
    %211 = vector.broadcast %209 : f32 to vector<16x16xf32>
    %212 = arith.mulf %210, %211 : vector<16x16xf32>
    %213 = arith.addf %203, %212 : vector<16x16xf32>
    %c25 = arith.constant 25 : index
    %214 = memref.load %arg2[%c25] : memref<98xf32, #tpu.memory_space<smem>>
    %215 = vector.extract_strided_slice %198 {offsets = [3, 0], sizes = [16, 16], strides = [1, 1]} : vector<22x16xf32> to vector<16x16xf32>
    %216 = vector.broadcast %214 : f32 to vector<16x16xf32>
    %217 = arith.mulf %215, %216 : vector<16x16xf32>
    %218 = arith.addf %208, %217 : vector<16x16xf32>
    %c32 = arith.constant 32 : index
    %219 = memref.load %arg2[%c32] : memref<98xf32, #tpu.memory_space<smem>>
    %220 = vector.extract_strided_slice %198 {offsets = [4, 0], sizes = [16, 16], strides = [1, 1]} : vector<22x16xf32> to vector<16x16xf32>
    %221 = vector.broadcast %219 : f32 to vector<16x16xf32>
    %222 = arith.mulf %220, %221 : vector<16x16xf32>
    %223 = arith.addf %213, %222 : vector<16x16xf32>
    %c39 = arith.constant 39 : index
    %224 = memref.load %arg2[%c39] : memref<98xf32, #tpu.memory_space<smem>>
    %225 = vector.extract_strided_slice %198 {offsets = [5, 0], sizes = [16, 16], strides = [1, 1]} : vector<22x16xf32> to vector<16x16xf32>
    %226 = vector.broadcast %224 : f32 to vector<16x16xf32>
    %227 = arith.mulf %225, %226 : vector<16x16xf32>
    %228 = arith.addf %218, %227 : vector<16x16xf32>
    %c46 = arith.constant 46 : index
    %229 = memref.load %arg2[%c46] : memref<98xf32, #tpu.memory_space<smem>>
    %230 = vector.extract_strided_slice %198 {offsets = [6, 0], sizes = [16, 16], strides = [1, 1]} : vector<22x16xf32> to vector<16x16xf32>
    %231 = vector.broadcast %229 : f32 to vector<16x16xf32>
    %232 = arith.mulf %230, %231 : vector<16x16xf32>
    %233 = arith.addf %223, %232 : vector<16x16xf32>
    %234 = vector.extract_strided_slice %28 {offsets = [0, 5], sizes = [22, 16], strides = [1, 1]} : vector<22x22xf32> to vector<22x16xf32>
    %c5 = arith.constant 5 : index
    %235 = memref.load %arg2[%c5] : memref<98xf32, #tpu.memory_space<smem>>
    %236 = vector.extract_strided_slice %234 {offsets = [0, 0], sizes = [16, 16], strides = [1, 1]} : vector<22x16xf32> to vector<16x16xf32>
    %237 = vector.broadcast %235 : f32 to vector<16x16xf32>
    %238 = arith.mulf %236, %237 : vector<16x16xf32>
    %239 = arith.addf %233, %238 : vector<16x16xf32>
    %c12 = arith.constant 12 : index
    %240 = memref.load %arg2[%c12] : memref<98xf32, #tpu.memory_space<smem>>
    %241 = vector.extract_strided_slice %234 {offsets = [1, 0], sizes = [16, 16], strides = [1, 1]} : vector<22x16xf32> to vector<16x16xf32>
    %242 = vector.broadcast %240 : f32 to vector<16x16xf32>
    %243 = arith.mulf %241, %242 : vector<16x16xf32>
    %244 = arith.addf %228, %243 : vector<16x16xf32>
    %c19 = arith.constant 19 : index
    %245 = memref.load %arg2[%c19] : memref<98xf32, #tpu.memory_space<smem>>
    %246 = vector.extract_strided_slice %234 {offsets = [2, 0], sizes = [16, 16], strides = [1, 1]} : vector<22x16xf32> to vector<16x16xf32>
    %247 = vector.broadcast %245 : f32 to vector<16x16xf32>
    %248 = arith.mulf %246, %247 : vector<16x16xf32>
    %249 = arith.addf %239, %248 : vector<16x16xf32>
    %c26 = arith.constant 26 : index
    %250 = memref.load %arg2[%c26] : memref<98xf32, #tpu.memory_space<smem>>
    %251 = vector.extract_strided_slice %234 {offsets = [3, 0], sizes = [16, 16], strides = [1, 1]} : vector<22x16xf32> to vector<16x16xf32>
    %252 = vector.broadcast %250 : f32 to vector<16x16xf32>
    %253 = arith.mulf %251, %252 : vector<16x16xf32>
    %254 = arith.addf %244, %253 : vector<16x16xf32>
    %c33 = arith.constant 33 : index
    %255 = memref.load %arg2[%c33] : memref<98xf32, #tpu.memory_space<smem>>
    %256 = vector.extract_strided_slice %234 {offsets = [4, 0], sizes = [16, 16], strides = [1, 1]} : vector<22x16xf32> to vector<16x16xf32>
    %257 = vector.broadcast %255 : f32 to vector<16x16xf32>
    %258 = arith.mulf %256, %257 : vector<16x16xf32>
    %259 = arith.addf %249, %258 : vector<16x16xf32>
    %c40 = arith.constant 40 : index
    %260 = memref.load %arg2[%c40] : memref<98xf32, #tpu.memory_space<smem>>
    %261 = vector.extract_strided_slice %234 {offsets = [5, 0], sizes = [16, 16], strides = [1, 1]} : vector<22x16xf32> to vector<16x16xf32>
    %262 = vector.broadcast %260 : f32 to vector<16x16xf32>
    %263 = arith.mulf %261, %262 : vector<16x16xf32>
    %264 = arith.addf %254, %263 : vector<16x16xf32>
    %c47 = arith.constant 47 : index
    %265 = memref.load %arg2[%c47] : memref<98xf32, #tpu.memory_space<smem>>
    %266 = vector.extract_strided_slice %234 {offsets = [6, 0], sizes = [16, 16], strides = [1, 1]} : vector<22x16xf32> to vector<16x16xf32>
    %267 = vector.broadcast %265 : f32 to vector<16x16xf32>
    %268 = arith.mulf %266, %267 : vector<16x16xf32>
    %269 = arith.addf %259, %268 : vector<16x16xf32>
    %270 = vector.extract_strided_slice %28 {offsets = [0, 6], sizes = [22, 16], strides = [1, 1]} : vector<22x22xf32> to vector<22x16xf32>
    %c6 = arith.constant 6 : index
    %271 = memref.load %arg2[%c6] : memref<98xf32, #tpu.memory_space<smem>>
    %272 = vector.extract_strided_slice %270 {offsets = [0, 0], sizes = [16, 16], strides = [1, 1]} : vector<22x16xf32> to vector<16x16xf32>
    %273 = vector.broadcast %271 : f32 to vector<16x16xf32>
    %274 = arith.mulf %272, %273 : vector<16x16xf32>
    %275 = arith.addf %269, %274 : vector<16x16xf32>
    %c13 = arith.constant 13 : index
    %276 = memref.load %arg2[%c13] : memref<98xf32, #tpu.memory_space<smem>>
    %277 = vector.extract_strided_slice %270 {offsets = [1, 0], sizes = [16, 16], strides = [1, 1]} : vector<22x16xf32> to vector<16x16xf32>
    %278 = vector.broadcast %276 : f32 to vector<16x16xf32>
    %279 = arith.mulf %277, %278 : vector<16x16xf32>
    %280 = arith.addf %264, %279 : vector<16x16xf32>
    %c20 = arith.constant 20 : index
    %281 = memref.load %arg2[%c20] : memref<98xf32, #tpu.memory_space<smem>>
    %282 = vector.extract_strided_slice %270 {offsets = [2, 0], sizes = [16, 16], strides = [1, 1]} : vector<22x16xf32> to vector<16x16xf32>
    %283 = vector.broadcast %281 : f32 to vector<16x16xf32>
    %284 = arith.mulf %282, %283 : vector<16x16xf32>
    %285 = arith.addf %275, %284 : vector<16x16xf32>
    %c27 = arith.constant 27 : index
    %286 = memref.load %arg2[%c27] : memref<98xf32, #tpu.memory_space<smem>>
    %287 = vector.extract_strided_slice %270 {offsets = [3, 0], sizes = [16, 16], strides = [1, 1]} : vector<22x16xf32> to vector<16x16xf32>
    %288 = vector.broadcast %286 : f32 to vector<16x16xf32>
    %289 = arith.mulf %287, %288 : vector<16x16xf32>
    %290 = arith.addf %280, %289 : vector<16x16xf32>
    %c34 = arith.constant 34 : index
    %291 = memref.load %arg2[%c34] : memref<98xf32, #tpu.memory_space<smem>>
    %292 = vector.extract_strided_slice %270 {offsets = [4, 0], sizes = [16, 16], strides = [1, 1]} : vector<22x16xf32> to vector<16x16xf32>
    %293 = vector.broadcast %291 : f32 to vector<16x16xf32>
    %294 = arith.mulf %292, %293 : vector<16x16xf32>
    %295 = arith.addf %285, %294 : vector<16x16xf32>
    %c41 = arith.constant 41 : index
    %296 = memref.load %arg2[%c41] : memref<98xf32, #tpu.memory_space<smem>>
    %297 = vector.extract_strided_slice %270 {offsets = [5, 0], sizes = [16, 16], strides = [1, 1]} : vector<22x16xf32> to vector<16x16xf32>
    %298 = vector.broadcast %296 : f32 to vector<16x16xf32>
    %299 = arith.mulf %297, %298 : vector<16x16xf32>
    %300 = arith.addf %290, %299 : vector<16x16xf32>
    %c48 = arith.constant 48 : index
    %301 = memref.load %arg2[%c48] : memref<98xf32, #tpu.memory_space<smem>>
    %302 = vector.extract_strided_slice %270 {offsets = [6, 0], sizes = [16, 16], strides = [1, 1]} : vector<22x16xf32> to vector<16x16xf32>
    %303 = vector.broadcast %301 : f32 to vector<16x16xf32>
    %304 = arith.mulf %302, %303 : vector<16x16xf32>
    %305 = arith.addf %295, %304 : vector<16x16xf32>
    %306 = vector.extract_strided_slice %49 {offsets = [0, 0], sizes = [22, 16], strides = [1, 1]} : vector<22x22xf32> to vector<22x16xf32>
    %c49 = arith.constant 49 : index
    %307 = memref.load %arg2[%c49] : memref<98xf32, #tpu.memory_space<smem>>
    %308 = vector.extract_strided_slice %306 {offsets = [0, 0], sizes = [16, 16], strides = [1, 1]} : vector<22x16xf32> to vector<16x16xf32>
    %309 = vector.broadcast %307 : f32 to vector<16x16xf32>
    %310 = arith.mulf %308, %309 : vector<16x16xf32>
    %311 = arith.addf %52, %310 : vector<16x16xf32>
    %c56 = arith.constant 56 : index
    %312 = memref.load %arg2[%c56] : memref<98xf32, #tpu.memory_space<smem>>
    %313 = vector.extract_strided_slice %306 {offsets = [1, 0], sizes = [16, 16], strides = [1, 1]} : vector<22x16xf32> to vector<16x16xf32>
    %314 = vector.broadcast %312 : f32 to vector<16x16xf32>
    %315 = arith.mulf %313, %314 : vector<16x16xf32>
    %316 = arith.addf %53, %315 : vector<16x16xf32>
    %c63 = arith.constant 63 : index
    %317 = memref.load %arg2[%c63] : memref<98xf32, #tpu.memory_space<smem>>
    %318 = vector.extract_strided_slice %306 {offsets = [2, 0], sizes = [16, 16], strides = [1, 1]} : vector<22x16xf32> to vector<16x16xf32>
    %319 = vector.broadcast %317 : f32 to vector<16x16xf32>
    %320 = arith.mulf %318, %319 : vector<16x16xf32>
    %321 = arith.addf %311, %320 : vector<16x16xf32>
    %c70 = arith.constant 70 : index
    %322 = memref.load %arg2[%c70] : memref<98xf32, #tpu.memory_space<smem>>
    %323 = vector.extract_strided_slice %306 {offsets = [3, 0], sizes = [16, 16], strides = [1, 1]} : vector<22x16xf32> to vector<16x16xf32>
    %324 = vector.broadcast %322 : f32 to vector<16x16xf32>
    %325 = arith.mulf %323, %324 : vector<16x16xf32>
    %326 = arith.addf %316, %325 : vector<16x16xf32>
    %c77 = arith.constant 77 : index
    %327 = memref.load %arg2[%c77] : memref<98xf32, #tpu.memory_space<smem>>
    %328 = vector.extract_strided_slice %306 {offsets = [4, 0], sizes = [16, 16], strides = [1, 1]} : vector<22x16xf32> to vector<16x16xf32>
    %329 = vector.broadcast %327 : f32 to vector<16x16xf32>
    %330 = arith.mulf %328, %329 : vector<16x16xf32>
    %331 = arith.addf %321, %330 : vector<16x16xf32>
    %c84 = arith.constant 84 : index
    %332 = memref.load %arg2[%c84] : memref<98xf32, #tpu.memory_space<smem>>
    %333 = vector.extract_strided_slice %306 {offsets = [5, 0], sizes = [16, 16], strides = [1, 1]} : vector<22x16xf32> to vector<16x16xf32>
    %334 = vector.broadcast %332 : f32 to vector<16x16xf32>
    %335 = arith.mulf %333, %334 : vector<16x16xf32>
    %336 = arith.addf %326, %335 : vector<16x16xf32>
    %c91 = arith.constant 91 : index
    %337 = memref.load %arg2[%c91] : memref<98xf32, #tpu.memory_space<smem>>
    %338 = vector.extract_strided_slice %306 {offsets = [6, 0], sizes = [16, 16], strides = [1, 1]} : vector<22x16xf32> to vector<16x16xf32>
    %339 = vector.broadcast %337 : f32 to vector<16x16xf32>
    %340 = arith.mulf %338, %339 : vector<16x16xf32>
    %341 = arith.addf %331, %340 : vector<16x16xf32>
    %342 = vector.extract_strided_slice %49 {offsets = [0, 1], sizes = [22, 16], strides = [1, 1]} : vector<22x22xf32> to vector<22x16xf32>
    %c50 = arith.constant 50 : index
    %343 = memref.load %arg2[%c50] : memref<98xf32, #tpu.memory_space<smem>>
    %344 = vector.extract_strided_slice %342 {offsets = [0, 0], sizes = [16, 16], strides = [1, 1]} : vector<22x16xf32> to vector<16x16xf32>
    %345 = vector.broadcast %343 : f32 to vector<16x16xf32>
    %346 = arith.mulf %344, %345 : vector<16x16xf32>
    %347 = arith.addf %341, %346 : vector<16x16xf32>
    %c57 = arith.constant 57 : index
    %348 = memref.load %arg2[%c57] : memref<98xf32, #tpu.memory_space<smem>>
    %349 = vector.extract_strided_slice %342 {offsets = [1, 0], sizes = [16, 16], strides = [1, 1]} : vector<22x16xf32> to vector<16x16xf32>
    %350 = vector.broadcast %348 : f32 to vector<16x16xf32>
    %351 = arith.mulf %349, %350 : vector<16x16xf32>
    %352 = arith.addf %336, %351 : vector<16x16xf32>
    %c64 = arith.constant 64 : index
    %353 = memref.load %arg2[%c64] : memref<98xf32, #tpu.memory_space<smem>>
    %354 = vector.extract_strided_slice %342 {offsets = [2, 0], sizes = [16, 16], strides = [1, 1]} : vector<22x16xf32> to vector<16x16xf32>
    %355 = vector.broadcast %353 : f32 to vector<16x16xf32>
    %356 = arith.mulf %354, %355 : vector<16x16xf32>
    %357 = arith.addf %347, %356 : vector<16x16xf32>
    %c71 = arith.constant 71 : index
    %358 = memref.load %arg2[%c71] : memref<98xf32, #tpu.memory_space<smem>>
    %359 = vector.extract_strided_slice %342 {offsets = [3, 0], sizes = [16, 16], strides = [1, 1]} : vector<22x16xf32> to vector<16x16xf32>
    %360 = vector.broadcast %358 : f32 to vector<16x16xf32>
    %361 = arith.mulf %359, %360 : vector<16x16xf32>
    %362 = arith.addf %352, %361 : vector<16x16xf32>
    %c78 = arith.constant 78 : index
    %363 = memref.load %arg2[%c78] : memref<98xf32, #tpu.memory_space<smem>>
    %364 = vector.extract_strided_slice %342 {offsets = [4, 0], sizes = [16, 16], strides = [1, 1]} : vector<22x16xf32> to vector<16x16xf32>
    %365 = vector.broadcast %363 : f32 to vector<16x16xf32>
    %366 = arith.mulf %364, %365 : vector<16x16xf32>
    %367 = arith.addf %357, %366 : vector<16x16xf32>
    %c85 = arith.constant 85 : index
    %368 = memref.load %arg2[%c85] : memref<98xf32, #tpu.memory_space<smem>>
    %369 = vector.extract_strided_slice %342 {offsets = [5, 0], sizes = [16, 16], strides = [1, 1]} : vector<22x16xf32> to vector<16x16xf32>
    %370 = vector.broadcast %368 : f32 to vector<16x16xf32>
    %371 = arith.mulf %369, %370 : vector<16x16xf32>
    %372 = arith.addf %362, %371 : vector<16x16xf32>
    %c92 = arith.constant 92 : index
    %373 = memref.load %arg2[%c92] : memref<98xf32, #tpu.memory_space<smem>>
    %374 = vector.extract_strided_slice %342 {offsets = [6, 0], sizes = [16, 16], strides = [1, 1]} : vector<22x16xf32> to vector<16x16xf32>
    %375 = vector.broadcast %373 : f32 to vector<16x16xf32>
    %376 = arith.mulf %374, %375 : vector<16x16xf32>
    %377 = arith.addf %367, %376 : vector<16x16xf32>
    %378 = vector.extract_strided_slice %49 {offsets = [0, 2], sizes = [22, 16], strides = [1, 1]} : vector<22x22xf32> to vector<22x16xf32>
    %c51 = arith.constant 51 : index
    %379 = memref.load %arg2[%c51] : memref<98xf32, #tpu.memory_space<smem>>
    %380 = vector.extract_strided_slice %378 {offsets = [0, 0], sizes = [16, 16], strides = [1, 1]} : vector<22x16xf32> to vector<16x16xf32>
    %381 = vector.broadcast %379 : f32 to vector<16x16xf32>
    %382 = arith.mulf %380, %381 : vector<16x16xf32>
    %383 = arith.addf %377, %382 : vector<16x16xf32>
    %c58 = arith.constant 58 : index
    %384 = memref.load %arg2[%c58] : memref<98xf32, #tpu.memory_space<smem>>
    %385 = vector.extract_strided_slice %378 {offsets = [1, 0], sizes = [16, 16], strides = [1, 1]} : vector<22x16xf32> to vector<16x16xf32>
    %386 = vector.broadcast %384 : f32 to vector<16x16xf32>
    %387 = arith.mulf %385, %386 : vector<16x16xf32>
    %388 = arith.addf %372, %387 : vector<16x16xf32>
    %c65 = arith.constant 65 : index
    %389 = memref.load %arg2[%c65] : memref<98xf32, #tpu.memory_space<smem>>
    %390 = vector.extract_strided_slice %378 {offsets = [2, 0], sizes = [16, 16], strides = [1, 1]} : vector<22x16xf32> to vector<16x16xf32>
    %391 = vector.broadcast %389 : f32 to vector<16x16xf32>
    %392 = arith.mulf %390, %391 : vector<16x16xf32>
    %393 = arith.addf %383, %392 : vector<16x16xf32>
    %c72 = arith.constant 72 : index
    %394 = memref.load %arg2[%c72] : memref<98xf32, #tpu.memory_space<smem>>
    %395 = vector.extract_strided_slice %378 {offsets = [3, 0], sizes = [16, 16], strides = [1, 1]} : vector<22x16xf32> to vector<16x16xf32>
    %396 = vector.broadcast %394 : f32 to vector<16x16xf32>
    %397 = arith.mulf %395, %396 : vector<16x16xf32>
    %398 = arith.addf %388, %397 : vector<16x16xf32>
    %c79 = arith.constant 79 : index
    %399 = memref.load %arg2[%c79] : memref<98xf32, #tpu.memory_space<smem>>
    %400 = vector.extract_strided_slice %378 {offsets = [4, 0], sizes = [16, 16], strides = [1, 1]} : vector<22x16xf32> to vector<16x16xf32>
    %401 = vector.broadcast %399 : f32 to vector<16x16xf32>
    %402 = arith.mulf %400, %401 : vector<16x16xf32>
    %403 = arith.addf %393, %402 : vector<16x16xf32>
    %c86 = arith.constant 86 : index
    %404 = memref.load %arg2[%c86] : memref<98xf32, #tpu.memory_space<smem>>
    %405 = vector.extract_strided_slice %378 {offsets = [5, 0], sizes = [16, 16], strides = [1, 1]} : vector<22x16xf32> to vector<16x16xf32>
    %406 = vector.broadcast %404 : f32 to vector<16x16xf32>
    %407 = arith.mulf %405, %406 : vector<16x16xf32>
    %408 = arith.addf %398, %407 : vector<16x16xf32>
    %c93 = arith.constant 93 : index
    %409 = memref.load %arg2[%c93] : memref<98xf32, #tpu.memory_space<smem>>
    %410 = vector.extract_strided_slice %378 {offsets = [6, 0], sizes = [16, 16], strides = [1, 1]} : vector<22x16xf32> to vector<16x16xf32>
    %411 = vector.broadcast %409 : f32 to vector<16x16xf32>
    %412 = arith.mulf %410, %411 : vector<16x16xf32>
    %413 = arith.addf %403, %412 : vector<16x16xf32>
    %414 = vector.extract_strided_slice %49 {offsets = [0, 3], sizes = [22, 16], strides = [1, 1]} : vector<22x22xf32> to vector<22x16xf32>
    %c52 = arith.constant 52 : index
    %415 = memref.load %arg2[%c52] : memref<98xf32, #tpu.memory_space<smem>>
    %416 = vector.extract_strided_slice %414 {offsets = [0, 0], sizes = [16, 16], strides = [1, 1]} : vector<22x16xf32> to vector<16x16xf32>
    %417 = vector.broadcast %415 : f32 to vector<16x16xf32>
    %418 = arith.mulf %416, %417 : vector<16x16xf32>
    %419 = arith.addf %413, %418 : vector<16x16xf32>
    %c59 = arith.constant 59 : index
    %420 = memref.load %arg2[%c59] : memref<98xf32, #tpu.memory_space<smem>>
    %421 = vector.extract_strided_slice %414 {offsets = [1, 0], sizes = [16, 16], strides = [1, 1]} : vector<22x16xf32> to vector<16x16xf32>
    %422 = vector.broadcast %420 : f32 to vector<16x16xf32>
    %423 = arith.mulf %421, %422 : vector<16x16xf32>
    %424 = arith.addf %408, %423 : vector<16x16xf32>
    %c66 = arith.constant 66 : index
    %425 = memref.load %arg2[%c66] : memref<98xf32, #tpu.memory_space<smem>>
    %426 = vector.extract_strided_slice %414 {offsets = [2, 0], sizes = [16, 16], strides = [1, 1]} : vector<22x16xf32> to vector<16x16xf32>
    %427 = vector.broadcast %425 : f32 to vector<16x16xf32>
    %428 = arith.mulf %426, %427 : vector<16x16xf32>
    %429 = arith.addf %419, %428 : vector<16x16xf32>
    %c73 = arith.constant 73 : index
    %430 = memref.load %arg2[%c73] : memref<98xf32, #tpu.memory_space<smem>>
    %431 = vector.extract_strided_slice %414 {offsets = [3, 0], sizes = [16, 16], strides = [1, 1]} : vector<22x16xf32> to vector<16x16xf32>
    %432 = vector.broadcast %430 : f32 to vector<16x16xf32>
    %433 = arith.mulf %431, %432 : vector<16x16xf32>
    %434 = arith.addf %424, %433 : vector<16x16xf32>
    %c80 = arith.constant 80 : index
    %435 = memref.load %arg2[%c80] : memref<98xf32, #tpu.memory_space<smem>>
    %436 = vector.extract_strided_slice %414 {offsets = [4, 0], sizes = [16, 16], strides = [1, 1]} : vector<22x16xf32> to vector<16x16xf32>
    %437 = vector.broadcast %435 : f32 to vector<16x16xf32>
    %438 = arith.mulf %436, %437 : vector<16x16xf32>
    %439 = arith.addf %429, %438 : vector<16x16xf32>
    %c87 = arith.constant 87 : index
    %440 = memref.load %arg2[%c87] : memref<98xf32, #tpu.memory_space<smem>>
    %441 = vector.extract_strided_slice %414 {offsets = [5, 0], sizes = [16, 16], strides = [1, 1]} : vector<22x16xf32> to vector<16x16xf32>
    %442 = vector.broadcast %440 : f32 to vector<16x16xf32>
    %443 = arith.mulf %441, %442 : vector<16x16xf32>
    %444 = arith.addf %434, %443 : vector<16x16xf32>
    %c94 = arith.constant 94 : index
    %445 = memref.load %arg2[%c94] : memref<98xf32, #tpu.memory_space<smem>>
    %446 = vector.extract_strided_slice %414 {offsets = [6, 0], sizes = [16, 16], strides = [1, 1]} : vector<22x16xf32> to vector<16x16xf32>
    %447 = vector.broadcast %445 : f32 to vector<16x16xf32>
    %448 = arith.mulf %446, %447 : vector<16x16xf32>
    %449 = arith.addf %439, %448 : vector<16x16xf32>
    %450 = vector.extract_strided_slice %49 {offsets = [0, 4], sizes = [22, 16], strides = [1, 1]} : vector<22x22xf32> to vector<22x16xf32>
    %c53 = arith.constant 53 : index
    %451 = memref.load %arg2[%c53] : memref<98xf32, #tpu.memory_space<smem>>
    %452 = vector.extract_strided_slice %450 {offsets = [0, 0], sizes = [16, 16], strides = [1, 1]} : vector<22x16xf32> to vector<16x16xf32>
    %453 = vector.broadcast %451 : f32 to vector<16x16xf32>
    %454 = arith.mulf %452, %453 : vector<16x16xf32>
    %455 = arith.addf %449, %454 : vector<16x16xf32>
    %c60 = arith.constant 60 : index
    %456 = memref.load %arg2[%c60] : memref<98xf32, #tpu.memory_space<smem>>
    %457 = vector.extract_strided_slice %450 {offsets = [1, 0], sizes = [16, 16], strides = [1, 1]} : vector<22x16xf32> to vector<16x16xf32>
    %458 = vector.broadcast %456 : f32 to vector<16x16xf32>
    %459 = arith.mulf %457, %458 : vector<16x16xf32>
    %460 = arith.addf %444, %459 : vector<16x16xf32>
    %c67 = arith.constant 67 : index
    %461 = memref.load %arg2[%c67] : memref<98xf32, #tpu.memory_space<smem>>
    %462 = vector.extract_strided_slice %450 {offsets = [2, 0], sizes = [16, 16], strides = [1, 1]} : vector<22x16xf32> to vector<16x16xf32>
    %463 = vector.broadcast %461 : f32 to vector<16x16xf32>
    %464 = arith.mulf %462, %463 : vector<16x16xf32>
    %465 = arith.addf %455, %464 : vector<16x16xf32>
    %c74 = arith.constant 74 : index
    %466 = memref.load %arg2[%c74] : memref<98xf32, #tpu.memory_space<smem>>
    %467 = vector.extract_strided_slice %450 {offsets = [3, 0], sizes = [16, 16], strides = [1, 1]} : vector<22x16xf32> to vector<16x16xf32>
    %468 = vector.broadcast %466 : f32 to vector<16x16xf32>
    %469 = arith.mulf %467, %468 : vector<16x16xf32>
    %470 = arith.addf %460, %469 : vector<16x16xf32>
    %c81 = arith.constant 81 : index
    %471 = memref.load %arg2[%c81] : memref<98xf32, #tpu.memory_space<smem>>
    %472 = vector.extract_strided_slice %450 {offsets = [4, 0], sizes = [16, 16], strides = [1, 1]} : vector<22x16xf32> to vector<16x16xf32>
    %473 = vector.broadcast %471 : f32 to vector<16x16xf32>
    %474 = arith.mulf %472, %473 : vector<16x16xf32>
    %475 = arith.addf %465, %474 : vector<16x16xf32>
    %c88 = arith.constant 88 : index
    %476 = memref.load %arg2[%c88] : memref<98xf32, #tpu.memory_space<smem>>
    %477 = vector.extract_strided_slice %450 {offsets = [5, 0], sizes = [16, 16], strides = [1, 1]} : vector<22x16xf32> to vector<16x16xf32>
    %478 = vector.broadcast %476 : f32 to vector<16x16xf32>
    %479 = arith.mulf %477, %478 : vector<16x16xf32>
    %480 = arith.addf %470, %479 : vector<16x16xf32>
    %c95 = arith.constant 95 : index
    %481 = memref.load %arg2[%c95] : memref<98xf32, #tpu.memory_space<smem>>
    %482 = vector.extract_strided_slice %450 {offsets = [6, 0], sizes = [16, 16], strides = [1, 1]} : vector<22x16xf32> to vector<16x16xf32>
    %483 = vector.broadcast %481 : f32 to vector<16x16xf32>
    %484 = arith.mulf %482, %483 : vector<16x16xf32>
    %485 = arith.addf %475, %484 : vector<16x16xf32>
    %486 = vector.extract_strided_slice %49 {offsets = [0, 5], sizes = [22, 16], strides = [1, 1]} : vector<22x22xf32> to vector<22x16xf32>
    %c54 = arith.constant 54 : index
    %487 = memref.load %arg2[%c54] : memref<98xf32, #tpu.memory_space<smem>>
    %488 = vector.extract_strided_slice %486 {offsets = [0, 0], sizes = [16, 16], strides = [1, 1]} : vector<22x16xf32> to vector<16x16xf32>
    %489 = vector.broadcast %487 : f32 to vector<16x16xf32>
    %490 = arith.mulf %488, %489 : vector<16x16xf32>
    %491 = arith.addf %485, %490 : vector<16x16xf32>
    %c61 = arith.constant 61 : index
    %492 = memref.load %arg2[%c61] : memref<98xf32, #tpu.memory_space<smem>>
    %493 = vector.extract_strided_slice %486 {offsets = [1, 0], sizes = [16, 16], strides = [1, 1]} : vector<22x16xf32> to vector<16x16xf32>
    %494 = vector.broadcast %492 : f32 to vector<16x16xf32>
    %495 = arith.mulf %493, %494 : vector<16x16xf32>
    %496 = arith.addf %480, %495 : vector<16x16xf32>
    %c68 = arith.constant 68 : index
    %497 = memref.load %arg2[%c68] : memref<98xf32, #tpu.memory_space<smem>>
    %498 = vector.extract_strided_slice %486 {offsets = [2, 0], sizes = [16, 16], strides = [1, 1]} : vector<22x16xf32> to vector<16x16xf32>
    %499 = vector.broadcast %497 : f32 to vector<16x16xf32>
    %500 = arith.mulf %498, %499 : vector<16x16xf32>
    %501 = arith.addf %491, %500 : vector<16x16xf32>
    %c75 = arith.constant 75 : index
    %502 = memref.load %arg2[%c75] : memref<98xf32, #tpu.memory_space<smem>>
    %503 = vector.extract_strided_slice %486 {offsets = [3, 0], sizes = [16, 16], strides = [1, 1]} : vector<22x16xf32> to vector<16x16xf32>
    %504 = vector.broadcast %502 : f32 to vector<16x16xf32>
    %505 = arith.mulf %503, %504 : vector<16x16xf32>
    %506 = arith.addf %496, %505 : vector<16x16xf32>
    %c82 = arith.constant 82 : index
    %507 = memref.load %arg2[%c82] : memref<98xf32, #tpu.memory_space<smem>>
    %508 = vector.extract_strided_slice %486 {offsets = [4, 0], sizes = [16, 16], strides = [1, 1]} : vector<22x16xf32> to vector<16x16xf32>
    %509 = vector.broadcast %507 : f32 to vector<16x16xf32>
    %510 = arith.mulf %508, %509 : vector<16x16xf32>
    %511 = arith.addf %501, %510 : vector<16x16xf32>
    %c89 = arith.constant 89 : index
    %512 = memref.load %arg2[%c89] : memref<98xf32, #tpu.memory_space<smem>>
    %513 = vector.extract_strided_slice %486 {offsets = [5, 0], sizes = [16, 16], strides = [1, 1]} : vector<22x16xf32> to vector<16x16xf32>
    %514 = vector.broadcast %512 : f32 to vector<16x16xf32>
    %515 = arith.mulf %513, %514 : vector<16x16xf32>
    %516 = arith.addf %506, %515 : vector<16x16xf32>
    %c96 = arith.constant 96 : index
    %517 = memref.load %arg2[%c96] : memref<98xf32, #tpu.memory_space<smem>>
    %518 = vector.extract_strided_slice %486 {offsets = [6, 0], sizes = [16, 16], strides = [1, 1]} : vector<22x16xf32> to vector<16x16xf32>
    %519 = vector.broadcast %517 : f32 to vector<16x16xf32>
    %520 = arith.mulf %518, %519 : vector<16x16xf32>
    %521 = arith.addf %511, %520 : vector<16x16xf32>
    %522 = vector.extract_strided_slice %49 {offsets = [0, 6], sizes = [22, 16], strides = [1, 1]} : vector<22x22xf32> to vector<22x16xf32>
    %c55 = arith.constant 55 : index
    %523 = memref.load %arg2[%c55] : memref<98xf32, #tpu.memory_space<smem>>
    %524 = vector.extract_strided_slice %522 {offsets = [0, 0], sizes = [16, 16], strides = [1, 1]} : vector<22x16xf32> to vector<16x16xf32>
    %525 = vector.broadcast %523 : f32 to vector<16x16xf32>
    %526 = arith.mulf %524, %525 : vector<16x16xf32>
    %527 = arith.addf %521, %526 : vector<16x16xf32>
    %c62 = arith.constant 62 : index
    %528 = memref.load %arg2[%c62] : memref<98xf32, #tpu.memory_space<smem>>
    %529 = vector.extract_strided_slice %522 {offsets = [1, 0], sizes = [16, 16], strides = [1, 1]} : vector<22x16xf32> to vector<16x16xf32>
    %530 = vector.broadcast %528 : f32 to vector<16x16xf32>
    %531 = arith.mulf %529, %530 : vector<16x16xf32>
    %532 = arith.addf %516, %531 : vector<16x16xf32>
    %c69 = arith.constant 69 : index
    %533 = memref.load %arg2[%c69] : memref<98xf32, #tpu.memory_space<smem>>
    %534 = vector.extract_strided_slice %522 {offsets = [2, 0], sizes = [16, 16], strides = [1, 1]} : vector<22x16xf32> to vector<16x16xf32>
    %535 = vector.broadcast %533 : f32 to vector<16x16xf32>
    %536 = arith.mulf %534, %535 : vector<16x16xf32>
    %537 = arith.addf %527, %536 : vector<16x16xf32>
    %c76 = arith.constant 76 : index
    %538 = memref.load %arg2[%c76] : memref<98xf32, #tpu.memory_space<smem>>
    %539 = vector.extract_strided_slice %522 {offsets = [3, 0], sizes = [16, 16], strides = [1, 1]} : vector<22x16xf32> to vector<16x16xf32>
    %540 = vector.broadcast %538 : f32 to vector<16x16xf32>
    %541 = arith.mulf %539, %540 : vector<16x16xf32>
    %542 = arith.addf %532, %541 : vector<16x16xf32>
    %c83 = arith.constant 83 : index
    %543 = memref.load %arg2[%c83] : memref<98xf32, #tpu.memory_space<smem>>
    %544 = vector.extract_strided_slice %522 {offsets = [4, 0], sizes = [16, 16], strides = [1, 1]} : vector<22x16xf32> to vector<16x16xf32>
    %545 = vector.broadcast %543 : f32 to vector<16x16xf32>
    %546 = arith.mulf %544, %545 : vector<16x16xf32>
    %547 = arith.addf %537, %546 : vector<16x16xf32>
    %c90 = arith.constant 90 : index
    %548 = memref.load %arg2[%c90] : memref<98xf32, #tpu.memory_space<smem>>
    %549 = vector.extract_strided_slice %522 {offsets = [5, 0], sizes = [16, 16], strides = [1, 1]} : vector<22x16xf32> to vector<16x16xf32>
    %550 = vector.broadcast %548 : f32 to vector<16x16xf32>
    %551 = arith.mulf %549, %550 : vector<16x16xf32>
    %552 = arith.addf %542, %551 : vector<16x16xf32>
    %c97 = arith.constant 97 : index
    %553 = memref.load %arg2[%c97] : memref<98xf32, #tpu.memory_space<smem>>
    %554 = vector.extract_strided_slice %522 {offsets = [6, 0], sizes = [16, 16], strides = [1, 1]} : vector<22x16xf32> to vector<16x16xf32>
    %555 = vector.broadcast %553 : f32 to vector<16x16xf32>
    %556 = arith.mulf %554, %555 : vector<16x16xf32>
    %557 = arith.addf %547, %556 : vector<16x16xf32>
    %558 = arith.addf %305, %300 : vector<16x16xf32>
    %559 = arith.addf %557, %552 : vector<16x16xf32>
    %560 = arith.addf %558, %559 : vector<16x16xf32>
    %c0_13 = arith.constant 0 : index
    %561 = memref.load %arg3[%c0_13] : memref<1xf32, #tpu.memory_space<smem>>
    %562 = vector.broadcast %561 : f32 to vector<16x16xf32>
    %563 = arith.addf %560, %562 : vector<16x16xf32>
    %564 = arith.negf %563 : vector<16x16xf32>
    %565 = math.exp %564 : vector<16x16xf32>
    %cst_14 = arith.constant 1.000000e+00 : f32
    %566 = vector.broadcast %cst_14 : f32 to vector<16x16xf32>
    %567 = arith.addf %566, %565 : vector<16x16xf32>
    %568 = arith.divf %566, %567 : vector<16x16xf32>
    %569 = vector.extract_strided_slice %568 {offsets = [0, 0], sizes = [1, 16], strides = [1, 1]} : vector<16x16xf32> to vector<1x16xf32>
    %570 = vector.extract_strided_slice %568 {offsets = [1, 0], sizes = [1, 16], strides = [1, 1]} : vector<16x16xf32> to vector<1x16xf32>
    %571 = vector.extract_strided_slice %568 {offsets = [2, 0], sizes = [1, 16], strides = [1, 1]} : vector<16x16xf32> to vector<1x16xf32>
    %572 = vector.extract_strided_slice %568 {offsets = [3, 0], sizes = [1, 16], strides = [1, 1]} : vector<16x16xf32> to vector<1x16xf32>
    %573 = vector.extract_strided_slice %568 {offsets = [4, 0], sizes = [1, 16], strides = [1, 1]} : vector<16x16xf32> to vector<1x16xf32>
    %574 = vector.extract_strided_slice %568 {offsets = [5, 0], sizes = [1, 16], strides = [1, 1]} : vector<16x16xf32> to vector<1x16xf32>
    %575 = vector.extract_strided_slice %568 {offsets = [6, 0], sizes = [1, 16], strides = [1, 1]} : vector<16x16xf32> to vector<1x16xf32>
    %576 = vector.extract_strided_slice %568 {offsets = [7, 0], sizes = [1, 16], strides = [1, 1]} : vector<16x16xf32> to vector<1x16xf32>
    %577 = vector.extract_strided_slice %568 {offsets = [8, 0], sizes = [1, 16], strides = [1, 1]} : vector<16x16xf32> to vector<1x16xf32>
    %578 = vector.extract_strided_slice %568 {offsets = [9, 0], sizes = [1, 16], strides = [1, 1]} : vector<16x16xf32> to vector<1x16xf32>
    %579 = vector.extract_strided_slice %568 {offsets = [10, 0], sizes = [1, 16], strides = [1, 1]} : vector<16x16xf32> to vector<1x16xf32>
    %580 = vector.extract_strided_slice %568 {offsets = [11, 0], sizes = [1, 16], strides = [1, 1]} : vector<16x16xf32> to vector<1x16xf32>
    %581 = vector.extract_strided_slice %568 {offsets = [12, 0], sizes = [1, 16], strides = [1, 1]} : vector<16x16xf32> to vector<1x16xf32>
    %582 = vector.extract_strided_slice %568 {offsets = [13, 0], sizes = [1, 16], strides = [1, 1]} : vector<16x16xf32> to vector<1x16xf32>
    %583 = vector.extract_strided_slice %568 {offsets = [14, 0], sizes = [1, 16], strides = [1, 1]} : vector<16x16xf32> to vector<1x16xf32>
    %584 = vector.extract_strided_slice %568 {offsets = [15, 0], sizes = [1, 16], strides = [1, 1]} : vector<16x16xf32> to vector<1x16xf32>
    %585 = tpu.concatenate %569, %570, %571, %572, %573, %574, %575, %576, %577, %578, %579, %580, %581, %582, %583, %584 in 1 : vector<1x16xf32>, vector<1x16xf32>, vector<1x16xf32>, vector<1x16xf32>, vector<1x16xf32>, vector<1x16xf32>, vector<1x16xf32>, vector<1x16xf32>, vector<1x16xf32>, vector<1x16xf32>, vector<1x16xf32>, vector<1x16xf32>, vector<1x16xf32>, vector<1x16xf32>, vector<1x16xf32>, vector<1x16xf32> -> vector<1x256xf32>
    %586 = vector.broadcast %585 : vector<1x256xf32> to vector<4x256xf32>
    %587 = arith.mulf %1, %586 : vector<4x256xf32>
    %c0_15 = arith.constant 0 : index
    %c0_16 = arith.constant 0 : index
    %c0_17 = arith.constant 0 : index
    %588 = vector.load %arg4[%c0_15, %c0_16, %c0_17] : memref<2x4x256xf32, #tpu.memory_space<vmem>>, vector<1x4x256xf32>
    %589 = vector.shape_cast %588 : vector<1x4x256xf32> to vector<4x256xf32>
    %590 = vector.shape_cast %587 : vector<4x256xf32> to vector<1x4x256xf32>
    tpu.vector_store %arg4[%c0_15, %c0_16, %c0_17], %590 {strides = array<i32>} : memref<2x4x256xf32, #tpu.memory_space<vmem>>, vector<1x4x256xf32>,
    %c1_18 = arith.constant 1 : index
    %c0_19 = arith.constant 0 : index
    %c0_20 = arith.constant 0 : index
    %591 = vector.load %arg1[%c1_18, %c0_19, %c0_20] : memref<2x4x256xf32, #tpu.memory_space<vmem>>, vector<1x4x256xf32>
    %592 = vector.shape_cast %591 : vector<1x4x256xf32> to vector<4x256xf32>
    %cst_21 = arith.constant dense<0xFF800000> : vector<256xf32>
    %593 = vector.multi_reduction <maximumf>, %592, %cst_21 [0] : vector<4x256xf32> to vector<256xf32>
    %594 = vector.shape_cast %593 : vector<256xf32> to vector<1x256xf32>
    %cst_22 = arith.constant dense<0.000000e+00> : vector<256xf32>
    %595 = vector.multi_reduction <add>, %592, %cst_22 [0] : vector<4x256xf32> to vector<256xf32>
    %596 = vector.shape_cast %595 : vector<256xf32> to vector<1x256xf32>
    %cst_23 = arith.constant 2.500000e-01 : f32
    %597 = vector.broadcast %cst_23 : f32 to vector<1x256xf32>
    %598 = arith.mulf %596, %597 : vector<1x256xf32>
    %599 = vector.extract_strided_slice %594 {offsets = [0, 0], sizes = [1, 16], strides = [1, 1]} : vector<1x256xf32> to vector<1x16xf32>
    %600 = vector.extract_strided_slice %594 {offsets = [0, 16], sizes = [1, 16], strides = [1, 1]} : vector<1x256xf32> to vector<1x16xf32>
    %601 = vector.extract_strided_slice %594 {offsets = [0, 32], sizes = [1, 16], strides = [1, 1]} : vector<1x256xf32> to vector<1x16xf32>
    %602 = vector.extract_strided_slice %594 {offsets = [0, 48], sizes = [1, 16], strides = [1, 1]} : vector<1x256xf32> to vector<1x16xf32>
    %603 = vector.extract_strided_slice %594 {offsets = [0, 64], sizes = [1, 16], strides = [1, 1]} : vector<1x256xf32> to vector<1x16xf32>
    %604 = vector.extract_strided_slice %594 {offsets = [0, 80], sizes = [1, 16], strides = [1, 1]} : vector<1x256xf32> to vector<1x16xf32>
    %605 = vector.extract_strided_slice %594 {offsets = [0, 96], sizes = [1, 16], strides = [1, 1]} : vector<1x256xf32> to vector<1x16xf32>
    %606 = vector.extract_strided_slice %594 {offsets = [0, 112], sizes = [1, 16], strides = [1, 1]} : vector<1x256xf32> to vector<1x16xf32>
    %607 = vector.extract_strided_slice %594 {offsets = [0, 128], sizes = [1, 16], strides = [1, 1]} : vector<1x256xf32> to vector<1x16xf32>
    %608 = vector.extract_strided_slice %594 {offsets = [0, 144], sizes = [1, 16], strides = [1, 1]} : vector<1x256xf32> to vector<1x16xf32>
    %609 = vector.extract_strided_slice %594 {offsets = [0, 160], sizes = [1, 16], strides = [1, 1]} : vector<1x256xf32> to vector<1x16xf32>
    %610 = vector.extract_strided_slice %594 {offsets = [0, 176], sizes = [1, 16], strides = [1, 1]} : vector<1x256xf32> to vector<1x16xf32>
    %611 = vector.extract_strided_slice %594 {offsets = [0, 192], sizes = [1, 16], strides = [1, 1]} : vector<1x256xf32> to vector<1x16xf32>
    %612 = vector.extract_strided_slice %594 {offsets = [0, 208], sizes = [1, 16], strides = [1, 1]} : vector<1x256xf32> to vector<1x16xf32>
    %613 = vector.extract_strided_slice %594 {offsets = [0, 224], sizes = [1, 16], strides = [1, 1]} : vector<1x256xf32> to vector<1x16xf32>
    %614 = vector.extract_strided_slice %594 {offsets = [0, 240], sizes = [1, 16], strides = [1, 1]} : vector<1x256xf32> to vector<1x16xf32>
    %615 = tpu.concatenate %599, %600, %601, %602, %603, %604, %605, %606, %607, %608, %609, %610, %611, %612, %613, %614 in 0 : vector<1x16xf32>, vector<1x16xf32>, vector<1x16xf32>, vector<1x16xf32>, vector<1x16xf32>, vector<1x16xf32>, vector<1x16xf32>, vector<1x16xf32>, vector<1x16xf32>, vector<1x16xf32>, vector<1x16xf32>, vector<1x16xf32>, vector<1x16xf32>, vector<1x16xf32>, vector<1x16xf32>, vector<1x16xf32> -> vector<16x16xf32>
    %cst_24 = arith.constant 0.000000e+00 : f32
    %616 = vector.broadcast %cst_24 : f32 to vector<3x16xf32>
    %617 = tpu.concatenate %616, %615, %616 in 0 : vector<3x16xf32>, vector<16x16xf32>, vector<3x16xf32> -> vector<22x16xf32>
    %cst_25 = arith.constant 0.000000e+00 : f32
    %618 = vector.broadcast %cst_25 : f32 to vector<22x3xf32>
    %619 = tpu.concatenate %618, %617, %618 in 1 : vector<22x3xf32>, vector<22x16xf32>, vector<22x3xf32> -> vector<22x22xf32>
    %620 = vector.extract_strided_slice %598 {offsets = [0, 0], sizes = [1, 16], strides = [1, 1]} : vector<1x256xf32> to vector<1x16xf32>
    %621 = vector.extract_strided_slice %598 {offsets = [0, 16], sizes = [1, 16], strides = [1, 1]} : vector<1x256xf32> to vector<1x16xf32>
    %622 = vector.extract_strided_slice %598 {offsets = [0, 32], sizes = [1, 16], strides = [1, 1]} : vector<1x256xf32> to vector<1x16xf32>
    %623 = vector.extract_strided_slice %598 {offsets = [0, 48], sizes = [1, 16], strides = [1, 1]} : vector<1x256xf32> to vector<1x16xf32>
    %624 = vector.extract_strided_slice %598 {offsets = [0, 64], sizes = [1, 16], strides = [1, 1]} : vector<1x256xf32> to vector<1x16xf32>
    %625 = vector.extract_strided_slice %598 {offsets = [0, 80], sizes = [1, 16], strides = [1, 1]} : vector<1x256xf32> to vector<1x16xf32>
    %626 = vector.extract_strided_slice %598 {offsets = [0, 96], sizes = [1, 16], strides = [1, 1]} : vector<1x256xf32> to vector<1x16xf32>
    %627 = vector.extract_strided_slice %598 {offsets = [0, 112], sizes = [1, 16], strides = [1, 1]} : vector<1x256xf32> to vector<1x16xf32>
    %628 = vector.extract_strided_slice %598 {offsets = [0, 128], sizes = [1, 16], strides = [1, 1]} : vector<1x256xf32> to vector<1x16xf32>
    %629 = vector.extract_strided_slice %598 {offsets = [0, 144], sizes = [1, 16], strides = [1, 1]} : vector<1x256xf32> to vector<1x16xf32>
    %630 = vector.extract_strided_slice %598 {offsets = [0, 160], sizes = [1, 16], strides = [1, 1]} : vector<1x256xf32> to vector<1x16xf32>
    %631 = vector.extract_strided_slice %598 {offsets = [0, 176], sizes = [1, 16], strides = [1, 1]} : vector<1x256xf32> to vector<1x16xf32>
    %632 = vector.extract_strided_slice %598 {offsets = [0, 192], sizes = [1, 16], strides = [1, 1]} : vector<1x256xf32> to vector<1x16xf32>
    %633 = vector.extract_strided_slice %598 {offsets = [0, 208], sizes = [1, 16], strides = [1, 1]} : vector<1x256xf32> to vector<1x16xf32>
    %634 = vector.extract_strided_slice %598 {offsets = [0, 224], sizes = [1, 16], strides = [1, 1]} : vector<1x256xf32> to vector<1x16xf32>
    %635 = vector.extract_strided_slice %598 {offsets = [0, 240], sizes = [1, 16], strides = [1, 1]} : vector<1x256xf32> to vector<1x16xf32>
    %636 = tpu.concatenate %620, %621, %622, %623, %624, %625, %626, %627, %628, %629, %630, %631, %632, %633, %634, %635 in 0 : vector<1x16xf32>, vector<1x16xf32>, vector<1x16xf32>, vector<1x16xf32>, vector<1x16xf32>, vector<1x16xf32>, vector<1x16xf32>, vector<1x16xf32>, vector<1x16xf32>, vector<1x16xf32>, vector<1x16xf32>, vector<1x16xf32>, vector<1x16xf32>, vector<1x16xf32>, vector<1x16xf32>, vector<1x16xf32> -> vector<16x16xf32>
    %cst_26 = arith.constant 0.000000e+00 : f32
    %637 = vector.broadcast %cst_26 : f32 to vector<3x16xf32>
    %638 = tpu.concatenate %637, %636, %637 in 0 : vector<3x16xf32>, vector<16x16xf32>, vector<3x16xf32> -> vector<22x16xf32>
    %cst_27 = arith.constant 0.000000e+00 : f32
    %639 = vector.broadcast %cst_27 : f32 to vector<22x3xf32>
    %640 = tpu.concatenate %639, %638, %639 in 1 : vector<22x3xf32>, vector<22x16xf32>, vector<22x3xf32> -> vector<22x22xf32>
    %cst_28 = arith.constant 0.000000e+00 : f32
    %641 = vector.broadcast %cst_28 : f32 to vector<16x16xf32>
    %cst_29 = arith.constant 0.000000e+00 : f32
    %642 = vector.broadcast %cst_29 : f32 to vector<16x16xf32>
    %cst_30 = arith.constant 0.000000e+00 : f32
    %643 = vector.broadcast %cst_30 : f32 to vector<16x16xf32>
    %cst_31 = arith.constant 0.000000e+00 : f32
    %644 = vector.broadcast %cst_31 : f32 to vector<16x16xf32>
    %645 = vector.extract_strided_slice %619 {offsets = [0, 0], sizes = [22, 16], strides = [1, 1]} : vector<22x22xf32> to vector<22x16xf32>
    %c0_32 = arith.constant 0 : index
    %646 = memref.load %arg2[%c0_32] : memref<98xf32, #tpu.memory_space<smem>>
    %647 = vector.extract_strided_slice %645 {offsets = [0, 0], sizes = [16, 16], strides = [1, 1]} : vector<22x16xf32> to vector<16x16xf32>
    %648 = vector.broadcast %646 : f32 to vector<16x16xf32>
    %649 = arith.mulf %647, %648 : vector<16x16xf32>
    %650 = arith.addf %641, %649 : vector<16x16xf32>
    %c7_33 = arith.constant 7 : index
    %651 = memref.load %arg2[%c7_33] : memref<98xf32, #tpu.memory_space<smem>>
    %652 = vector.extract_strided_slice %645 {offsets = [1, 0], sizes = [16, 16], strides = [1, 1]} : vector<22x16xf32> to vector<16x16xf32>
    %653 = vector.broadcast %651 : f32 to vector<16x16xf32>
    %654 = arith.mulf %652, %653 : vector<16x16xf32>
    %655 = arith.addf %642, %654 : vector<16x16xf32>
    %c14_34 = arith.constant 14 : index
    %656 = memref.load %arg2[%c14_34] : memref<98xf32, #tpu.memory_space<smem>>
    %657 = vector.extract_strided_slice %645 {offsets = [2, 0], sizes = [16, 16], strides = [1, 1]} : vector<22x16xf32> to vector<16x16xf32>
    %658 = vector.broadcast %656 : f32 to vector<16x16xf32>
    %659 = arith.mulf %657, %658 : vector<16x16xf32>
    %660 = arith.addf %650, %659 : vector<16x16xf32>
    %c21_35 = arith.constant 21 : index
    %661 = memref.load %arg2[%c21_35] : memref<98xf32, #tpu.memory_space<smem>>
    %662 = vector.extract_strided_slice %645 {offsets = [3, 0], sizes = [16, 16], strides = [1, 1]} : vector<22x16xf32> to vector<16x16xf32>
    %663 = vector.broadcast %661 : f32 to vector<16x16xf32>
    %664 = arith.mulf %662, %663 : vector<16x16xf32>
    %665 = arith.addf %655, %664 : vector<16x16xf32>
    %c28_36 = arith.constant 28 : index
    %666 = memref.load %arg2[%c28_36] : memref<98xf32, #tpu.memory_space<smem>>
    %667 = vector.extract_strided_slice %645 {offsets = [4, 0], sizes = [16, 16], strides = [1, 1]} : vector<22x16xf32> to vector<16x16xf32>
    %668 = vector.broadcast %666 : f32 to vector<16x16xf32>
    %669 = arith.mulf %667, %668 : vector<16x16xf32>
    %670 = arith.addf %660, %669 : vector<16x16xf32>
    %c35_37 = arith.constant 35 : index
    %671 = memref.load %arg2[%c35_37] : memref<98xf32, #tpu.memory_space<smem>>
    %672 = vector.extract_strided_slice %645 {offsets = [5, 0], sizes = [16, 16], strides = [1, 1]} : vector<22x16xf32> to vector<16x16xf32>
    %673 = vector.broadcast %671 : f32 to vector<16x16xf32>
    %674 = arith.mulf %672, %673 : vector<16x16xf32>
    %675 = arith.addf %665, %674 : vector<16x16xf32>
    %c42_38 = arith.constant 42 : index
    %676 = memref.load %arg2[%c42_38] : memref<98xf32, #tpu.memory_space<smem>>
    %677 = vector.extract_strided_slice %645 {offsets = [6, 0], sizes = [16, 16], strides = [1, 1]} : vector<22x16xf32> to vector<16x16xf32>
    %678 = vector.broadcast %676 : f32 to vector<16x16xf32>
    %679 = arith.mulf %677, %678 : vector<16x16xf32>
    %680 = arith.addf %670, %679 : vector<16x16xf32>
    %681 = vector.extract_strided_slice %619 {offsets = [0, 1], sizes = [22, 16], strides = [1, 1]} : vector<22x22xf32> to vector<22x16xf32>
    %c1_39 = arith.constant 1 : index
    %682 = memref.load %arg2[%c1_39] : memref<98xf32, #tpu.memory_space<smem>>
    %683 = vector.extract_strided_slice %681 {offsets = [0, 0], sizes = [16, 16], strides = [1, 1]} : vector<22x16xf32> to vector<16x16xf32>
    %684 = vector.broadcast %682 : f32 to vector<16x16xf32>
    %685 = arith.mulf %683, %684 : vector<16x16xf32>
    %686 = arith.addf %680, %685 : vector<16x16xf32>
    %c8_40 = arith.constant 8 : index
    %687 = memref.load %arg2[%c8_40] : memref<98xf32, #tpu.memory_space<smem>>
    %688 = vector.extract_strided_slice %681 {offsets = [1, 0], sizes = [16, 16], strides = [1, 1]} : vector<22x16xf32> to vector<16x16xf32>
    %689 = vector.broadcast %687 : f32 to vector<16x16xf32>
    %690 = arith.mulf %688, %689 : vector<16x16xf32>
    %691 = arith.addf %675, %690 : vector<16x16xf32>
    %c15_41 = arith.constant 15 : index
    %692 = memref.load %arg2[%c15_41] : memref<98xf32, #tpu.memory_space<smem>>
    %693 = vector.extract_strided_slice %681 {offsets = [2, 0], sizes = [16, 16], strides = [1, 1]} : vector<22x16xf32> to vector<16x16xf32>
    %694 = vector.broadcast %692 : f32 to vector<16x16xf32>
    %695 = arith.mulf %693, %694 : vector<16x16xf32>
    %696 = arith.addf %686, %695 : vector<16x16xf32>
    %c22_42 = arith.constant 22 : index
    %697 = memref.load %arg2[%c22_42] : memref<98xf32, #tpu.memory_space<smem>>
    %698 = vector.extract_strided_slice %681 {offsets = [3, 0], sizes = [16, 16], strides = [1, 1]} : vector<22x16xf32> to vector<16x16xf32>
    %699 = vector.broadcast %697 : f32 to vector<16x16xf32>
    %700 = arith.mulf %698, %699 : vector<16x16xf32>
    %701 = arith.addf %691, %700 : vector<16x16xf32>
    %c29_43 = arith.constant 29 : index
    %702 = memref.load %arg2[%c29_43] : memref<98xf32, #tpu.memory_space<smem>>
    %703 = vector.extract_strided_slice %681 {offsets = [4, 0], sizes = [16, 16], strides = [1, 1]} : vector<22x16xf32> to vector<16x16xf32>
    %704 = vector.broadcast %702 : f32 to vector<16x16xf32>
    %705 = arith.mulf %703, %704 : vector<16x16xf32>
    %706 = arith.addf %696, %705 : vector<16x16xf32>
    %c36_44 = arith.constant 36 : index
    %707 = memref.load %arg2[%c36_44] : memref<98xf32, #tpu.memory_space<smem>>
    %708 = vector.extract_strided_slice %681 {offsets = [5, 0], sizes = [16, 16], strides = [1, 1]} : vector<22x16xf32> to vector<16x16xf32>
    %709 = vector.broadcast %707 : f32 to vector<16x16xf32>
    %710 = arith.mulf %708, %709 : vector<16x16xf32>
    %711 = arith.addf %701, %710 : vector<16x16xf32>
    %c43_45 = arith.constant 43 : index
    %712 = memref.load %arg2[%c43_45] : memref<98xf32, #tpu.memory_space<smem>>
    %713 = vector.extract_strided_slice %681 {offsets = [6, 0], sizes = [16, 16], strides = [1, 1]} : vector<22x16xf32> to vector<16x16xf32>
    %714 = vector.broadcast %712 : f32 to vector<16x16xf32>
    %715 = arith.mulf %713, %714 : vector<16x16xf32>
    %716 = arith.addf %706, %715 : vector<16x16xf32>
    %717 = vector.extract_strided_slice %619 {offsets = [0, 2], sizes = [22, 16], strides = [1, 1]} : vector<22x22xf32> to vector<22x16xf32>
    %c2_46 = arith.constant 2 : index
    %718 = memref.load %arg2[%c2_46] : memref<98xf32, #tpu.memory_space<smem>>
    %719 = vector.extract_strided_slice %717 {offsets = [0, 0], sizes = [16, 16], strides = [1, 1]} : vector<22x16xf32> to vector<16x16xf32>
    %720 = vector.broadcast %718 : f32 to vector<16x16xf32>
    %721 = arith.mulf %719, %720 : vector<16x16xf32>
    %722 = arith.addf %716, %721 : vector<16x16xf32>
    %c9_47 = arith.constant 9 : index
    %723 = memref.load %arg2[%c9_47] : memref<98xf32, #tpu.memory_space<smem>>
    %724 = vector.extract_strided_slice %717 {offsets = [1, 0], sizes = [16, 16], strides = [1, 1]} : vector<22x16xf32> to vector<16x16xf32>
    %725 = vector.broadcast %723 : f32 to vector<16x16xf32>
    %726 = arith.mulf %724, %725 : vector<16x16xf32>
    %727 = arith.addf %711, %726 : vector<16x16xf32>
    %c16_48 = arith.constant 16 : index
    %728 = memref.load %arg2[%c16_48] : memref<98xf32, #tpu.memory_space<smem>>
    %729 = vector.extract_strided_slice %717 {offsets = [2, 0], sizes = [16, 16], strides = [1, 1]} : vector<22x16xf32> to vector<16x16xf32>
    %730 = vector.broadcast %728 : f32 to vector<16x16xf32>
    %731 = arith.mulf %729, %730 : vector<16x16xf32>
    %732 = arith.addf %722, %731 : vector<16x16xf32>
    %c23_49 = arith.constant 23 : index
    %733 = memref.load %arg2[%c23_49] : memref<98xf32, #tpu.memory_space<smem>>
    %734 = vector.extract_strided_slice %717 {offsets = [3, 0], sizes = [16, 16], strides = [1, 1]} : vector<22x16xf32> to vector<16x16xf32>
    %735 = vector.broadcast %733 : f32 to vector<16x16xf32>
    %736 = arith.mulf %734, %735 : vector<16x16xf32>
    %737 = arith.addf %727, %736 : vector<16x16xf32>
    %c30_50 = arith.constant 30 : index
    %738 = memref.load %arg2[%c30_50] : memref<98xf32, #tpu.memory_space<smem>>
    %739 = vector.extract_strided_slice %717 {offsets = [4, 0], sizes = [16, 16], strides = [1, 1]} : vector<22x16xf32> to vector<16x16xf32>
    %740 = vector.broadcast %738 : f32 to vector<16x16xf32>
    %741 = arith.mulf %739, %740 : vector<16x16xf32>
    %742 = arith.addf %732, %741 : vector<16x16xf32>
    %c37_51 = arith.constant 37 : index
    %743 = memref.load %arg2[%c37_51] : memref<98xf32, #tpu.memory_space<smem>>
    %744 = vector.extract_strided_slice %717 {offsets = [5, 0], sizes = [16, 16], strides = [1, 1]} : vector<22x16xf32> to vector<16x16xf32>
    %745 = vector.broadcast %743 : f32 to vector<16x16xf32>
    %746 = arith.mulf %744, %745 : vector<16x16xf32>
    %747 = arith.addf %737, %746 : vector<16x16xf32>
    %c44_52 = arith.constant 44 : index
    %748 = memref.load %arg2[%c44_52] : memref<98xf32, #tpu.memory_space<smem>>
    %749 = vector.extract_strided_slice %717 {offsets = [6, 0], sizes = [16, 16], strides = [1, 1]} : vector<22x16xf32> to vector<16x16xf32>
    %750 = vector.broadcast %748 : f32 to vector<16x16xf32>
    %751 = arith.mulf %749, %750 : vector<16x16xf32>
    %752 = arith.addf %742, %751 : vector<16x16xf32>
    %753 = vector.extract_strided_slice %619 {offsets = [0, 3], sizes = [22, 16], strides = [1, 1]} : vector<22x22xf32> to vector<22x16xf32>
    %c3_53 = arith.constant 3 : index
    %754 = memref.load %arg2[%c3_53] : memref<98xf32, #tpu.memory_space<smem>>
    %755 = vector.extract_strided_slice %753 {offsets = [0, 0], sizes = [16, 16], strides = [1, 1]} : vector<22x16xf32> to vector<16x16xf32>
    %756 = vector.broadcast %754 : f32 to vector<16x16xf32>
    %757 = arith.mulf %755, %756 : vector<16x16xf32>
    %758 = arith.addf %752, %757 : vector<16x16xf32>
    %c10_54 = arith.constant 10 : index
    %759 = memref.load %arg2[%c10_54] : memref<98xf32, #tpu.memory_space<smem>>
    %760 = vector.extract_strided_slice %753 {offsets = [1, 0], sizes = [16, 16], strides = [1, 1]} : vector<22x16xf32> to vector<16x16xf32>
    %761 = vector.broadcast %759 : f32 to vector<16x16xf32>
    %762 = arith.mulf %760, %761 : vector<16x16xf32>
    %763 = arith.addf %747, %762 : vector<16x16xf32>
    %c17_55 = arith.constant 17 : index
    %764 = memref.load %arg2[%c17_55] : memref<98xf32, #tpu.memory_space<smem>>
    %765 = vector.extract_strided_slice %753 {offsets = [2, 0], sizes = [16, 16], strides = [1, 1]} : vector<22x16xf32> to vector<16x16xf32>
    %766 = vector.broadcast %764 : f32 to vector<16x16xf32>
    %767 = arith.mulf %765, %766 : vector<16x16xf32>
    %768 = arith.addf %758, %767 : vector<16x16xf32>
    %c24_56 = arith.constant 24 : index
    %769 = memref.load %arg2[%c24_56] : memref<98xf32, #tpu.memory_space<smem>>
    %770 = vector.extract_strided_slice %753 {offsets = [3, 0], sizes = [16, 16], strides = [1, 1]} : vector<22x16xf32> to vector<16x16xf32>
    %771 = vector.broadcast %769 : f32 to vector<16x16xf32>
    %772 = arith.mulf %770, %771 : vector<16x16xf32>
    %773 = arith.addf %763, %772 : vector<16x16xf32>
    %c31_57 = arith.constant 31 : index
    %774 = memref.load %arg2[%c31_57] : memref<98xf32, #tpu.memory_space<smem>>
    %775 = vector.extract_strided_slice %753 {offsets = [4, 0], sizes = [16, 16], strides = [1, 1]} : vector<22x16xf32> to vector<16x16xf32>
    %776 = vector.broadcast %774 : f32 to vector<16x16xf32>
    %777 = arith.mulf %775, %776 : vector<16x16xf32>
    %778 = arith.addf %768, %777 : vector<16x16xf32>
    %c38_58 = arith.constant 38 : index
    %779 = memref.load %arg2[%c38_58] : memref<98xf32, #tpu.memory_space<smem>>
    %780 = vector.extract_strided_slice %753 {offsets = [5, 0], sizes = [16, 16], strides = [1, 1]} : vector<22x16xf32> to vector<16x16xf32>
    %781 = vector.broadcast %779 : f32 to vector<16x16xf32>
    %782 = arith.mulf %780, %781 : vector<16x16xf32>
    %783 = arith.addf %773, %782 : vector<16x16xf32>
    %c45_59 = arith.constant 45 : index
    %784 = memref.load %arg2[%c45_59] : memref<98xf32, #tpu.memory_space<smem>>
    %785 = vector.extract_strided_slice %753 {offsets = [6, 0], sizes = [16, 16], strides = [1, 1]} : vector<22x16xf32> to vector<16x16xf32>
    %786 = vector.broadcast %784 : f32 to vector<16x16xf32>
    %787 = arith.mulf %785, %786 : vector<16x16xf32>
    %788 = arith.addf %778, %787 : vector<16x16xf32>
    %789 = vector.extract_strided_slice %619 {offsets = [0, 4], sizes = [22, 16], strides = [1, 1]} : vector<22x22xf32> to vector<22x16xf32>
    %c4_60 = arith.constant 4 : index
    %790 = memref.load %arg2[%c4_60] : memref<98xf32, #tpu.memory_space<smem>>
    %791 = vector.extract_strided_slice %789 {offsets = [0, 0], sizes = [16, 16], strides = [1, 1]} : vector<22x16xf32> to vector<16x16xf32>
    %792 = vector.broadcast %790 : f32 to vector<16x16xf32>
    %793 = arith.mulf %791, %792 : vector<16x16xf32>
    %794 = arith.addf %788, %793 : vector<16x16xf32>
    %c11_61 = arith.constant 11 : index
    %795 = memref.load %arg2[%c11_61] : memref<98xf32, #tpu.memory_space<smem>>
    %796 = vector.extract_strided_slice %789 {offsets = [1, 0], sizes = [16, 16], strides = [1, 1]} : vector<22x16xf32> to vector<16x16xf32>
    %797 = vector.broadcast %795 : f32 to vector<16x16xf32>
    %798 = arith.mulf %796, %797 : vector<16x16xf32>
    %799 = arith.addf %783, %798 : vector<16x16xf32>
    %c18_62 = arith.constant 18 : index
    %800 = memref.load %arg2[%c18_62] : memref<98xf32, #tpu.memory_space<smem>>
    %801 = vector.extract_strided_slice %789 {offsets = [2, 0], sizes = [16, 16], strides = [1, 1]} : vector<22x16xf32> to vector<16x16xf32>
    %802 = vector.broadcast %800 : f32 to vector<16x16xf32>
    %803 = arith.mulf %801, %802 : vector<16x16xf32>
    %804 = arith.addf %794, %803 : vector<16x16xf32>
    %c25_63 = arith.constant 25 : index
    %805 = memref.load %arg2[%c25_63] : memref<98xf32, #tpu.memory_space<smem>>
    %806 = vector.extract_strided_slice %789 {offsets = [3, 0], sizes = [16, 16], strides = [1, 1]} : vector<22x16xf32> to vector<16x16xf32>
    %807 = vector.broadcast %805 : f32 to vector<16x16xf32>
    %808 = arith.mulf %806, %807 : vector<16x16xf32>
    %809 = arith.addf %799, %808 : vector<16x16xf32>
    %c32_64 = arith.constant 32 : index
    %810 = memref.load %arg2[%c32_64] : memref<98xf32, #tpu.memory_space<smem>>
    %811 = vector.extract_strided_slice %789 {offsets = [4, 0], sizes = [16, 16], strides = [1, 1]} : vector<22x16xf32> to vector<16x16xf32>
    %812 = vector.broadcast %810 : f32 to vector<16x16xf32>
    %813 = arith.mulf %811, %812 : vector<16x16xf32>
    %814 = arith.addf %804, %813 : vector<16x16xf32>
    %c39_65 = arith.constant 39 : index
    %815 = memref.load %arg2[%c39_65] : memref<98xf32, #tpu.memory_space<smem>>
    %816 = vector.extract_strided_slice %789 {offsets = [5, 0], sizes = [16, 16], strides = [1, 1]} : vector<22x16xf32> to vector<16x16xf32>
    %817 = vector.broadcast %815 : f32 to vector<16x16xf32>
    %818 = arith.mulf %816, %817 : vector<16x16xf32>
    %819 = arith.addf %809, %818 : vector<16x16xf32>
    %c46_66 = arith.constant 46 : index
    %820 = memref.load %arg2[%c46_66] : memref<98xf32, #tpu.memory_space<smem>>
    %821 = vector.extract_strided_slice %789 {offsets = [6, 0], sizes = [16, 16], strides = [1, 1]} : vector<22x16xf32> to vector<16x16xf32>
    %822 = vector.broadcast %820 : f32 to vector<16x16xf32>
    %823 = arith.mulf %821, %822 : vector<16x16xf32>
    %824 = arith.addf %814, %823 : vector<16x16xf32>
    %825 = vector.extract_strided_slice %619 {offsets = [0, 5], sizes = [22, 16], strides = [1, 1]} : vector<22x22xf32> to vector<22x16xf32>
    %c5_67 = arith.constant 5 : index
    %826 = memref.load %arg2[%c5_67] : memref<98xf32, #tpu.memory_space<smem>>
    %827 = vector.extract_strided_slice %825 {offsets = [0, 0], sizes = [16, 16], strides = [1, 1]} : vector<22x16xf32> to vector<16x16xf32>
    %828 = vector.broadcast %826 : f32 to vector<16x16xf32>
    %829 = arith.mulf %827, %828 : vector<16x16xf32>
    %830 = arith.addf %824, %829 : vector<16x16xf32>
    %c12_68 = arith.constant 12 : index
    %831 = memref.load %arg2[%c12_68] : memref<98xf32, #tpu.memory_space<smem>>
    %832 = vector.extract_strided_slice %825 {offsets = [1, 0], sizes = [16, 16], strides = [1, 1]} : vector<22x16xf32> to vector<16x16xf32>
    %833 = vector.broadcast %831 : f32 to vector<16x16xf32>
    %834 = arith.mulf %832, %833 : vector<16x16xf32>
    %835 = arith.addf %819, %834 : vector<16x16xf32>
    %c19_69 = arith.constant 19 : index
    %836 = memref.load %arg2[%c19_69] : memref<98xf32, #tpu.memory_space<smem>>
    %837 = vector.extract_strided_slice %825 {offsets = [2, 0], sizes = [16, 16], strides = [1, 1]} : vector<22x16xf32> to vector<16x16xf32>
    %838 = vector.broadcast %836 : f32 to vector<16x16xf32>
    %839 = arith.mulf %837, %838 : vector<16x16xf32>
    %840 = arith.addf %830, %839 : vector<16x16xf32>
    %c26_70 = arith.constant 26 : index
    %841 = memref.load %arg2[%c26_70] : memref<98xf32, #tpu.memory_space<smem>>
    %842 = vector.extract_strided_slice %825 {offsets = [3, 0], sizes = [16, 16], strides = [1, 1]} : vector<22x16xf32> to vector<16x16xf32>
    %843 = vector.broadcast %841 : f32 to vector<16x16xf32>
    %844 = arith.mulf %842, %843 : vector<16x16xf32>
    %845 = arith.addf %835, %844 : vector<16x16xf32>
    %c33_71 = arith.constant 33 : index
    %846 = memref.load %arg2[%c33_71] : memref<98xf32, #tpu.memory_space<smem>>
    %847 = vector.extract_strided_slice %825 {offsets = [4, 0], sizes = [16, 16], strides = [1, 1]} : vector<22x16xf32> to vector<16x16xf32>
    %848 = vector.broadcast %846 : f32 to vector<16x16xf32>
    %849 = arith.mulf %847, %848 : vector<16x16xf32>
    %850 = arith.addf %840, %849 : vector<16x16xf32>
    %c40_72 = arith.constant 40 : index
    %851 = memref.load %arg2[%c40_72] : memref<98xf32, #tpu.memory_space<smem>>
    %852 = vector.extract_strided_slice %825 {offsets = [5, 0], sizes = [16, 16], strides = [1, 1]} : vector<22x16xf32> to vector<16x16xf32>
    %853 = vector.broadcast %851 : f32 to vector<16x16xf32>
    %854 = arith.mulf %852, %853 : vector<16x16xf32>
    %855 = arith.addf %845, %854 : vector<16x16xf32>
    %c47_73 = arith.constant 47 : index
    %856 = memref.load %arg2[%c47_73] : memref<98xf32, #tpu.memory_space<smem>>
    %857 = vector.extract_strided_slice %825 {offsets = [6, 0], sizes = [16, 16], strides = [1, 1]} : vector<22x16xf32> to vector<16x16xf32>
    %858 = vector.broadcast %856 : f32 to vector<16x16xf32>
    %859 = arith.mulf %857, %858 : vector<16x16xf32>
    %860 = arith.addf %850, %859 : vector<16x16xf32>
    %861 = vector.extract_strided_slice %619 {offsets = [0, 6], sizes = [22, 16], strides = [1, 1]} : vector<22x22xf32> to vector<22x16xf32>
    %c6_74 = arith.constant 6 : index
    %862 = memref.load %arg2[%c6_74] : memref<98xf32, #tpu.memory_space<smem>>
    %863 = vector.extract_strided_slice %861 {offsets = [0, 0], sizes = [16, 16], strides = [1, 1]} : vector<22x16xf32> to vector<16x16xf32>
    %864 = vector.broadcast %862 : f32 to vector<16x16xf32>
    %865 = arith.mulf %863, %864 : vector<16x16xf32>
    %866 = arith.addf %860, %865 : vector<16x16xf32>
    %c13_75 = arith.constant 13 : index
    %867 = memref.load %arg2[%c13_75] : memref<98xf32, #tpu.memory_space<smem>>
    %868 = vector.extract_strided_slice %861 {offsets = [1, 0], sizes = [16, 16], strides = [1, 1]} : vector<22x16xf32> to vector<16x16xf32>
    %869 = vector.broadcast %867 : f32 to vector<16x16xf32>
    %870 = arith.mulf %868, %869 : vector<16x16xf32>
    %871 = arith.addf %855, %870 : vector<16x16xf32>
    %c20_76 = arith.constant 20 : index
    %872 = memref.load %arg2[%c20_76] : memref<98xf32, #tpu.memory_space<smem>>
    %873 = vector.extract_strided_slice %861 {offsets = [2, 0], sizes = [16, 16], strides = [1, 1]} : vector<22x16xf32> to vector<16x16xf32>
    %874 = vector.broadcast %872 : f32 to vector<16x16xf32>
    %875 = arith.mulf %873, %874 : vector<16x16xf32>
    %876 = arith.addf %866, %875 : vector<16x16xf32>
    %c27_77 = arith.constant 27 : index
    %877 = memref.load %arg2[%c27_77] : memref<98xf32, #tpu.memory_space<smem>>
    %878 = vector.extract_strided_slice %861 {offsets = [3, 0], sizes = [16, 16], strides = [1, 1]} : vector<22x16xf32> to vector<16x16xf32>
    %879 = vector.broadcast %877 : f32 to vector<16x16xf32>
    %880 = arith.mulf %878, %879 : vector<16x16xf32>
    %881 = arith.addf %871, %880 : vector<16x16xf32>
    %c34_78 = arith.constant 34 : index
    %882 = memref.load %arg2[%c34_78] : memref<98xf32, #tpu.memory_space<smem>>
    %883 = vector.extract_strided_slice %861 {offsets = [4, 0], sizes = [16, 16], strides = [1, 1]} : vector<22x16xf32> to vector<16x16xf32>
    %884 = vector.broadcast %882 : f32 to vector<16x16xf32>
    %885 = arith.mulf %883, %884 : vector<16x16xf32>
    %886 = arith.addf %876, %885 : vector<16x16xf32>
    %c41_79 = arith.constant 41 : index
    %887 = memref.load %arg2[%c41_79] : memref<98xf32, #tpu.memory_space<smem>>
    %888 = vector.extract_strided_slice %861 {offsets = [5, 0], sizes = [16, 16], strides = [1, 1]} : vector<22x16xf32> to vector<16x16xf32>
    %889 = vector.broadcast %887 : f32 to vector<16x16xf32>
    %890 = arith.mulf %888, %889 : vector<16x16xf32>
    %891 = arith.addf %881, %890 : vector<16x16xf32>
    %c48_80 = arith.constant 48 : index
    %892 = memref.load %arg2[%c48_80] : memref<98xf32, #tpu.memory_space<smem>>
    %893 = vector.extract_strided_slice %861 {offsets = [6, 0], sizes = [16, 16], strides = [1, 1]} : vector<22x16xf32> to vector<16x16xf32>
    %894 = vector.broadcast %892 : f32 to vector<16x16xf32>
    %895 = arith.mulf %893, %894 : vector<16x16xf32>
    %896 = arith.addf %886, %895 : vector<16x16xf32>
    %897 = vector.extract_strided_slice %640 {offsets = [0, 0], sizes = [22, 16], strides = [1, 1]} : vector<22x22xf32> to vector<22x16xf32>
    %c49_81 = arith.constant 49 : index
    %898 = memref.load %arg2[%c49_81] : memref<98xf32, #tpu.memory_space<smem>>
    %899 = vector.extract_strided_slice %897 {offsets = [0, 0], sizes = [16, 16], strides = [1, 1]} : vector<22x16xf32> to vector<16x16xf32>
    %900 = vector.broadcast %898 : f32 to vector<16x16xf32>
    %901 = arith.mulf %899, %900 : vector<16x16xf32>
    %902 = arith.addf %643, %901 : vector<16x16xf32>
    %c56_82 = arith.constant 56 : index
    %903 = memref.load %arg2[%c56_82] : memref<98xf32, #tpu.memory_space<smem>>
    %904 = vector.extract_strided_slice %897 {offsets = [1, 0], sizes = [16, 16], strides = [1, 1]} : vector<22x16xf32> to vector<16x16xf32>
    %905 = vector.broadcast %903 : f32 to vector<16x16xf32>
    %906 = arith.mulf %904, %905 : vector<16x16xf32>
    %907 = arith.addf %644, %906 : vector<16x16xf32>
    %c63_83 = arith.constant 63 : index
    %908 = memref.load %arg2[%c63_83] : memref<98xf32, #tpu.memory_space<smem>>
    %909 = vector.extract_strided_slice %897 {offsets = [2, 0], sizes = [16, 16], strides = [1, 1]} : vector<22x16xf32> to vector<16x16xf32>
    %910 = vector.broadcast %908 : f32 to vector<16x16xf32>
    %911 = arith.mulf %909, %910 : vector<16x16xf32>
    %912 = arith.addf %902, %911 : vector<16x16xf32>
    %c70_84 = arith.constant 70 : index
    %913 = memref.load %arg2[%c70_84] : memref<98xf32, #tpu.memory_space<smem>>
    %914 = vector.extract_strided_slice %897 {offsets = [3, 0], sizes = [16, 16], strides = [1, 1]} : vector<22x16xf32> to vector<16x16xf32>
    %915 = vector.broadcast %913 : f32 to vector<16x16xf32>
    %916 = arith.mulf %914, %915 : vector<16x16xf32>
    %917 = arith.addf %907, %916 : vector<16x16xf32>
    %c77_85 = arith.constant 77 : index
    %918 = memref.load %arg2[%c77_85] : memref<98xf32, #tpu.memory_space<smem>>
    %919 = vector.extract_strided_slice %897 {offsets = [4, 0], sizes = [16, 16], strides = [1, 1]} : vector<22x16xf32> to vector<16x16xf32>
    %920 = vector.broadcast %918 : f32 to vector<16x16xf32>
    %921 = arith.mulf %919, %920 : vector<16x16xf32>
    %922 = arith.addf %912, %921 : vector<16x16xf32>
    %c84_86 = arith.constant 84 : index
    %923 = memref.load %arg2[%c84_86] : memref<98xf32, #tpu.memory_space<smem>>
    %924 = vector.extract_strided_slice %897 {offsets = [5, 0], sizes = [16, 16], strides = [1, 1]} : vector<22x16xf32> to vector<16x16xf32>
    %925 = vector.broadcast %923 : f32 to vector<16x16xf32>
    %926 = arith.mulf %924, %925 : vector<16x16xf32>
    %927 = arith.addf %917, %926 : vector<16x16xf32>
    %c91_87 = arith.constant 91 : index
    %928 = memref.load %arg2[%c91_87] : memref<98xf32, #tpu.memory_space<smem>>
    %929 = vector.extract_strided_slice %897 {offsets = [6, 0], sizes = [16, 16], strides = [1, 1]} : vector<22x16xf32> to vector<16x16xf32>
    %930 = vector.broadcast %928 : f32 to vector<16x16xf32>
    %931 = arith.mulf %929, %930 : vector<16x16xf32>
    %932 = arith.addf %922, %931 : vector<16x16xf32>
    %933 = vector.extract_strided_slice %640 {offsets = [0, 1], sizes = [22, 16], strides = [1, 1]} : vector<22x22xf32> to vector<22x16xf32>
    %c50_88 = arith.constant 50 : index
    %934 = memref.load %arg2[%c50_88] : memref<98xf32, #tpu.memory_space<smem>>
    %935 = vector.extract_strided_slice %933 {offsets = [0, 0], sizes = [16, 16], strides = [1, 1]} : vector<22x16xf32> to vector<16x16xf32>
    %936 = vector.broadcast %934 : f32 to vector<16x16xf32>
    %937 = arith.mulf %935, %936 : vector<16x16xf32>
    %938 = arith.addf %932, %937 : vector<16x16xf32>
    %c57_89 = arith.constant 57 : index
    %939 = memref.load %arg2[%c57_89] : memref<98xf32, #tpu.memory_space<smem>>
    %940 = vector.extract_strided_slice %933 {offsets = [1, 0], sizes = [16, 16], strides = [1, 1]} : vector<22x16xf32> to vector<16x16xf32>
    %941 = vector.broadcast %939 : f32 to vector<16x16xf32>
    %942 = arith.mulf %940, %941 : vector<16x16xf32>
    %943 = arith.addf %927, %942 : vector<16x16xf32>
    %c64_90 = arith.constant 64 : index
    %944 = memref.load %arg2[%c64_90] : memref<98xf32, #tpu.memory_space<smem>>
    %945 = vector.extract_strided_slice %933 {offsets = [2, 0], sizes = [16, 16], strides = [1, 1]} : vector<22x16xf32> to vector<16x16xf32>
    %946 = vector.broadcast %944 : f32 to vector<16x16xf32>
    %947 = arith.mulf %945, %946 : vector<16x16xf32>
    %948 = arith.addf %938, %947 : vector<16x16xf32>
    %c71_91 = arith.constant 71 : index
    %949 = memref.load %arg2[%c71_91] : memref<98xf32, #tpu.memory_space<smem>>
    %950 = vector.extract_strided_slice %933 {offsets = [3, 0], sizes = [16, 16], strides = [1, 1]} : vector<22x16xf32> to vector<16x16xf32>
    %951 = vector.broadcast %949 : f32 to vector<16x16xf32>
    %952 = arith.mulf %950, %951 : vector<16x16xf32>
    %953 = arith.addf %943, %952 : vector<16x16xf32>
    %c78_92 = arith.constant 78 : index
    %954 = memref.load %arg2[%c78_92] : memref<98xf32, #tpu.memory_space<smem>>
    %955 = vector.extract_strided_slice %933 {offsets = [4, 0], sizes = [16, 16], strides = [1, 1]} : vector<22x16xf32> to vector<16x16xf32>
    %956 = vector.broadcast %954 : f32 to vector<16x16xf32>
    %957 = arith.mulf %955, %956 : vector<16x16xf32>
    %958 = arith.addf %948, %957 : vector<16x16xf32>
    %c85_93 = arith.constant 85 : index
    %959 = memref.load %arg2[%c85_93] : memref<98xf32, #tpu.memory_space<smem>>
    %960 = vector.extract_strided_slice %933 {offsets = [5, 0], sizes = [16, 16], strides = [1, 1]} : vector<22x16xf32> to vector<16x16xf32>
    %961 = vector.broadcast %959 : f32 to vector<16x16xf32>
    %962 = arith.mulf %960, %961 : vector<16x16xf32>
    %963 = arith.addf %953, %962 : vector<16x16xf32>
    %c92_94 = arith.constant 92 : index
    %964 = memref.load %arg2[%c92_94] : memref<98xf32, #tpu.memory_space<smem>>
    %965 = vector.extract_strided_slice %933 {offsets = [6, 0], sizes = [16, 16], strides = [1, 1]} : vector<22x16xf32> to vector<16x16xf32>
    %966 = vector.broadcast %964 : f32 to vector<16x16xf32>
    %967 = arith.mulf %965, %966 : vector<16x16xf32>
    %968 = arith.addf %958, %967 : vector<16x16xf32>
    %969 = vector.extract_strided_slice %640 {offsets = [0, 2], sizes = [22, 16], strides = [1, 1]} : vector<22x22xf32> to vector<22x16xf32>
    %c51_95 = arith.constant 51 : index
    %970 = memref.load %arg2[%c51_95] : memref<98xf32, #tpu.memory_space<smem>>
    %971 = vector.extract_strided_slice %969 {offsets = [0, 0], sizes = [16, 16], strides = [1, 1]} : vector<22x16xf32> to vector<16x16xf32>
    %972 = vector.broadcast %970 : f32 to vector<16x16xf32>
    %973 = arith.mulf %971, %972 : vector<16x16xf32>
    %974 = arith.addf %968, %973 : vector<16x16xf32>
    %c58_96 = arith.constant 58 : index
    %975 = memref.load %arg2[%c58_96] : memref<98xf32, #tpu.memory_space<smem>>
    %976 = vector.extract_strided_slice %969 {offsets = [1, 0], sizes = [16, 16], strides = [1, 1]} : vector<22x16xf32> to vector<16x16xf32>
    %977 = vector.broadcast %975 : f32 to vector<16x16xf32>
    %978 = arith.mulf %976, %977 : vector<16x16xf32>
    %979 = arith.addf %963, %978 : vector<16x16xf32>
    %c65_97 = arith.constant 65 : index
    %980 = memref.load %arg2[%c65_97] : memref<98xf32, #tpu.memory_space<smem>>
    %981 = vector.extract_strided_slice %969 {offsets = [2, 0], sizes = [16, 16], strides = [1, 1]} : vector<22x16xf32> to vector<16x16xf32>
    %982 = vector.broadcast %980 : f32 to vector<16x16xf32>
    %983 = arith.mulf %981, %982 : vector<16x16xf32>
    %984 = arith.addf %974, %983 : vector<16x16xf32>
    %c72_98 = arith.constant 72 : index
    %985 = memref.load %arg2[%c72_98] : memref<98xf32, #tpu.memory_space<smem>>
    %986 = vector.extract_strided_slice %969 {offsets = [3, 0], sizes = [16, 16], strides = [1, 1]} : vector<22x16xf32> to vector<16x16xf32>
    %987 = vector.broadcast %985 : f32 to vector<16x16xf32>
    %988 = arith.mulf %986, %987 : vector<16x16xf32>
    %989 = arith.addf %979, %988 : vector<16x16xf32>
    %c79_99 = arith.constant 79 : index
    %990 = memref.load %arg2[%c79_99] : memref<98xf32, #tpu.memory_space<smem>>
    %991 = vector.extract_strided_slice %969 {offsets = [4, 0], sizes = [16, 16], strides = [1, 1]} : vector<22x16xf32> to vector<16x16xf32>
    %992 = vector.broadcast %990 : f32 to vector<16x16xf32>
    %993 = arith.mulf %991, %992 : vector<16x16xf32>
    %994 = arith.addf %984, %993 : vector<16x16xf32>
    %c86_100 = arith.constant 86 : index
    %995 = memref.load %arg2[%c86_100] : memref<98xf32, #tpu.memory_space<smem>>
    %996 = vector.extract_strided_slice %969 {offsets = [5, 0], sizes = [16, 16], strides = [1, 1]} : vector<22x16xf32> to vector<16x16xf32>
    %997 = vector.broadcast %995 : f32 to vector<16x16xf32>
    %998 = arith.mulf %996, %997 : vector<16x16xf32>
    %999 = arith.addf %989, %998 : vector<16x16xf32>
    %c93_101 = arith.constant 93 : index
    %1000 = memref.load %arg2[%c93_101] : memref<98xf32, #tpu.memory_space<smem>>
    %1001 = vector.extract_strided_slice %969 {offsets = [6, 0], sizes = [16, 16], strides = [1, 1]} : vector<22x16xf32> to vector<16x16xf32>
    %1002 = vector.broadcast %1000 : f32 to vector<16x16xf32>
    %1003 = arith.mulf %1001, %1002 : vector<16x16xf32>
    %1004 = arith.addf %994, %1003 : vector<16x16xf32>
    %1005 = vector.extract_strided_slice %640 {offsets = [0, 3], sizes = [22, 16], strides = [1, 1]} : vector<22x22xf32> to vector<22x16xf32>
    %c52_102 = arith.constant 52 : index
    %1006 = memref.load %arg2[%c52_102] : memref<98xf32, #tpu.memory_space<smem>>
    %1007 = vector.extract_strided_slice %1005 {offsets = [0, 0], sizes = [16, 16], strides = [1, 1]} : vector<22x16xf32> to vector<16x16xf32>
    %1008 = vector.broadcast %1006 : f32 to vector<16x16xf32>
    %1009 = arith.mulf %1007, %1008 : vector<16x16xf32>
    %1010 = arith.addf %1004, %1009 : vector<16x16xf32>
    %c59_103 = arith.constant 59 : index
    %1011 = memref.load %arg2[%c59_103] : memref<98xf32, #tpu.memory_space<smem>>
    %1012 = vector.extract_strided_slice %1005 {offsets = [1, 0], sizes = [16, 16], strides = [1, 1]} : vector<22x16xf32> to vector<16x16xf32>
    %1013 = vector.broadcast %1011 : f32 to vector<16x16xf32>
    %1014 = arith.mulf %1012, %1013 : vector<16x16xf32>
    %1015 = arith.addf %999, %1014 : vector<16x16xf32>
    %c66_104 = arith.constant 66 : index
    %1016 = memref.load %arg2[%c66_104] : memref<98xf32, #tpu.memory_space<smem>>
    %1017 = vector.extract_strided_slice %1005 {offsets = [2, 0], sizes = [16, 16], strides = [1, 1]} : vector<22x16xf32> to vector<16x16xf32>
    %1018 = vector.broadcast %1016 : f32 to vector<16x16xf32>
    %1019 = arith.mulf %1017, %1018 : vector<16x16xf32>
    %1020 = arith.addf %1010, %1019 : vector<16x16xf32>
    %c73_105 = arith.constant 73 : index
    %1021 = memref.load %arg2[%c73_105] : memref<98xf32, #tpu.memory_space<smem>>
    %1022 = vector.extract_strided_slice %1005 {offsets = [3, 0], sizes = [16, 16], strides = [1, 1]} : vector<22x16xf32> to vector<16x16xf32>
    %1023 = vector.broadcast %1021 : f32 to vector<16x16xf32>
    %1024 = arith.mulf %1022, %1023 : vector<16x16xf32>
    %1025 = arith.addf %1015, %1024 : vector<16x16xf32>
    %c80_106 = arith.constant 80 : index
    %1026 = memref.load %arg2[%c80_106] : memref<98xf32, #tpu.memory_space<smem>>
    %1027 = vector.extract_strided_slice %1005 {offsets = [4, 0], sizes = [16, 16], strides = [1, 1]} : vector<22x16xf32> to vector<16x16xf32>
    %1028 = vector.broadcast %1026 : f32 to vector<16x16xf32>
    %1029 = arith.mulf %1027, %1028 : vector<16x16xf32>
    %1030 = arith.addf %1020, %1029 : vector<16x16xf32>
    %c87_107 = arith.constant 87 : index
    %1031 = memref.load %arg2[%c87_107] : memref<98xf32, #tpu.memory_space<smem>>
    %1032 = vector.extract_strided_slice %1005 {offsets = [5, 0], sizes = [16, 16], strides = [1, 1]} : vector<22x16xf32> to vector<16x16xf32>
    %1033 = vector.broadcast %1031 : f32 to vector<16x16xf32>
    %1034 = arith.mulf %1032, %1033 : vector<16x16xf32>
    %1035 = arith.addf %1025, %1034 : vector<16x16xf32>
    %c94_108 = arith.constant 94 : index
    %1036 = memref.load %arg2[%c94_108] : memref<98xf32, #tpu.memory_space<smem>>
    %1037 = vector.extract_strided_slice %1005 {offsets = [6, 0], sizes = [16, 16], strides = [1, 1]} : vector<22x16xf32> to vector<16x16xf32>
    %1038 = vector.broadcast %1036 : f32 to vector<16x16xf32>
    %1039 = arith.mulf %1037, %1038 : vector<16x16xf32>
    %1040 = arith.addf %1030, %1039 : vector<16x16xf32>
    %1041 = vector.extract_strided_slice %640 {offsets = [0, 4], sizes = [22, 16], strides = [1, 1]} : vector<22x22xf32> to vector<22x16xf32>
    %c53_109 = arith.constant 53 : index
    %1042 = memref.load %arg2[%c53_109] : memref<98xf32, #tpu.memory_space<smem>>
    %1043 = vector.extract_strided_slice %1041 {offsets = [0, 0], sizes = [16, 16], strides = [1, 1]} : vector<22x16xf32> to vector<16x16xf32>
    %1044 = vector.broadcast %1042 : f32 to vector<16x16xf32>
    %1045 = arith.mulf %1043, %1044 : vector<16x16xf32>
    %1046 = arith.addf %1040, %1045 : vector<16x16xf32>
    %c60_110 = arith.constant 60 : index
    %1047 = memref.load %arg2[%c60_110] : memref<98xf32, #tpu.memory_space<smem>>
    %1048 = vector.extract_strided_slice %1041 {offsets = [1, 0], sizes = [16, 16], strides = [1, 1]} : vector<22x16xf32> to vector<16x16xf32>
    %1049 = vector.broadcast %1047 : f32 to vector<16x16xf32>
    %1050 = arith.mulf %1048, %1049 : vector<16x16xf32>
    %1051 = arith.addf %1035, %1050 : vector<16x16xf32>
    %c67_111 = arith.constant 67 : index
    %1052 = memref.load %arg2[%c67_111] : memref<98xf32, #tpu.memory_space<smem>>
    %1053 = vector.extract_strided_slice %1041 {offsets = [2, 0], sizes = [16, 16], strides = [1, 1]} : vector<22x16xf32> to vector<16x16xf32>
    %1054 = vector.broadcast %1052 : f32 to vector<16x16xf32>
    %1055 = arith.mulf %1053, %1054 : vector<16x16xf32>
    %1056 = arith.addf %1046, %1055 : vector<16x16xf32>
    %c74_112 = arith.constant 74 : index
    %1057 = memref.load %arg2[%c74_112] : memref<98xf32, #tpu.memory_space<smem>>
    %1058 = vector.extract_strided_slice %1041 {offsets = [3, 0], sizes = [16, 16], strides = [1, 1]} : vector<22x16xf32> to vector<16x16xf32>
    %1059 = vector.broadcast %1057 : f32 to vector<16x16xf32>
    %1060 = arith.mulf %1058, %1059 : vector<16x16xf32>
    %1061 = arith.addf %1051, %1060 : vector<16x16xf32>
    %c81_113 = arith.constant 81 : index
    %1062 = memref.load %arg2[%c81_113] : memref<98xf32, #tpu.memory_space<smem>>
    %1063 = vector.extract_strided_slice %1041 {offsets = [4, 0], sizes = [16, 16], strides = [1, 1]} : vector<22x16xf32> to vector<16x16xf32>
    %1064 = vector.broadcast %1062 : f32 to vector<16x16xf32>
    %1065 = arith.mulf %1063, %1064 : vector<16x16xf32>
    %1066 = arith.addf %1056, %1065 : vector<16x16xf32>
    %c88_114 = arith.constant 88 : index
    %1067 = memref.load %arg2[%c88_114] : memref<98xf32, #tpu.memory_space<smem>>
    %1068 = vector.extract_strided_slice %1041 {offsets = [5, 0], sizes = [16, 16], strides = [1, 1]} : vector<22x16xf32> to vector<16x16xf32>
    %1069 = vector.broadcast %1067 : f32 to vector<16x16xf32>
    %1070 = arith.mulf %1068, %1069 : vector<16x16xf32>
    %1071 = arith.addf %1061, %1070 : vector<16x16xf32>
    %c95_115 = arith.constant 95 : index
    %1072 = memref.load %arg2[%c95_115] : memref<98xf32, #tpu.memory_space<smem>>
    %1073 = vector.extract_strided_slice %1041 {offsets = [6, 0], sizes = [16, 16], strides = [1, 1]} : vector<22x16xf32> to vector<16x16xf32>
    %1074 = vector.broadcast %1072 : f32 to vector<16x16xf32>
    %1075 = arith.mulf %1073, %1074 : vector<16x16xf32>
    %1076 = arith.addf %1066, %1075 : vector<16x16xf32>
    %1077 = vector.extract_strided_slice %640 {offsets = [0, 5], sizes = [22, 16], strides = [1, 1]} : vector<22x22xf32> to vector<22x16xf32>
    %c54_116 = arith.constant 54 : index
    %1078 = memref.load %arg2[%c54_116] : memref<98xf32, #tpu.memory_space<smem>>
    %1079 = vector.extract_strided_slice %1077 {offsets = [0, 0], sizes = [16, 16], strides = [1, 1]} : vector<22x16xf32> to vector<16x16xf32>
    %1080 = vector.broadcast %1078 : f32 to vector<16x16xf32>
    %1081 = arith.mulf %1079, %1080 : vector<16x16xf32>
    %1082 = arith.addf %1076, %1081 : vector<16x16xf32>
    %c61_117 = arith.constant 61 : index
    %1083 = memref.load %arg2[%c61_117] : memref<98xf32, #tpu.memory_space<smem>>
    %1084 = vector.extract_strided_slice %1077 {offsets = [1, 0], sizes = [16, 16], strides = [1, 1]} : vector<22x16xf32> to vector<16x16xf32>
    %1085 = vector.broadcast %1083 : f32 to vector<16x16xf32>
    %1086 = arith.mulf %1084, %1085 : vector<16x16xf32>
    %1087 = arith.addf %1071, %1086 : vector<16x16xf32>
    %c68_118 = arith.constant 68 : index
    %1088 = memref.load %arg2[%c68_118] : memref<98xf32, #tpu.memory_space<smem>>
    %1089 = vector.extract_strided_slice %1077 {offsets = [2, 0], sizes = [16, 16], strides = [1, 1]} : vector<22x16xf32> to vector<16x16xf32>
    %1090 = vector.broadcast %1088 : f32 to vector<16x16xf32>
    %1091 = arith.mulf %1089, %1090 : vector<16x16xf32>
    %1092 = arith.addf %1082, %1091 : vector<16x16xf32>
    %c75_119 = arith.constant 75 : index
    %1093 = memref.load %arg2[%c75_119] : memref<98xf32, #tpu.memory_space<smem>>
    %1094 = vector.extract_strided_slice %1077 {offsets = [3, 0], sizes = [16, 16], strides = [1, 1]} : vector<22x16xf32> to vector<16x16xf32>
    %1095 = vector.broadcast %1093 : f32 to vector<16x16xf32>
    %1096 = arith.mulf %1094, %1095 : vector<16x16xf32>
    %1097 = arith.addf %1087, %1096 : vector<16x16xf32>
    %c82_120 = arith.constant 82 : index
    %1098 = memref.load %arg2[%c82_120] : memref<98xf32, #tpu.memory_space<smem>>
    %1099 = vector.extract_strided_slice %1077 {offsets = [4, 0], sizes = [16, 16], strides = [1, 1]} : vector<22x16xf32> to vector<16x16xf32>
    %1100 = vector.broadcast %1098 : f32 to vector<16x16xf32>
    %1101 = arith.mulf %1099, %1100 : vector<16x16xf32>
    %1102 = arith.addf %1092, %1101 : vector<16x16xf32>
    %c89_121 = arith.constant 89 : index
    %1103 = memref.load %arg2[%c89_121] : memref<98xf32, #tpu.memory_space<smem>>
    %1104 = vector.extract_strided_slice %1077 {offsets = [5, 0], sizes = [16, 16], strides = [1, 1]} : vector<22x16xf32> to vector<16x16xf32>
    %1105 = vector.broadcast %1103 : f32 to vector<16x16xf32>
    %1106 = arith.mulf %1104, %1105 : vector<16x16xf32>
    %1107 = arith.addf %1097, %1106 : vector<16x16xf32>
    %c96_122 = arith.constant 96 : index
    %1108 = memref.load %arg2[%c96_122] : memref<98xf32, #tpu.memory_space<smem>>
    %1109 = vector.extract_strided_slice %1077 {offsets = [6, 0], sizes = [16, 16], strides = [1, 1]} : vector<22x16xf32> to vector<16x16xf32>
    %1110 = vector.broadcast %1108 : f32 to vector<16x16xf32>
    %1111 = arith.mulf %1109, %1110 : vector<16x16xf32>
    %1112 = arith.addf %1102, %1111 : vector<16x16xf32>
    %1113 = vector.extract_strided_slice %640 {offsets = [0, 6], sizes = [22, 16], strides = [1, 1]} : vector<22x22xf32> to vector<22x16xf32>
    %c55_123 = arith.constant 55 : index
    %1114 = memref.load %arg2[%c55_123] : memref<98xf32, #tpu.memory_space<smem>>
    %1115 = vector.extract_strided_slice %1113 {offsets = [0, 0], sizes = [16, 16], strides = [1, 1]} : vector<22x16xf32> to vector<16x16xf32>
    %1116 = vector.broadcast %1114 : f32 to vector<16x16xf32>
    %1117 = arith.mulf %1115, %1116 : vector<16x16xf32>
    %1118 = arith.addf %1112, %1117 : vector<16x16xf32>
    %c62_124 = arith.constant 62 : index
    %1119 = memref.load %arg2[%c62_124] : memref<98xf32, #tpu.memory_space<smem>>
    %1120 = vector.extract_strided_slice %1113 {offsets = [1, 0], sizes = [16, 16], strides = [1, 1]} : vector<22x16xf32> to vector<16x16xf32>
    %1121 = vector.broadcast %1119 : f32 to vector<16x16xf32>
    %1122 = arith.mulf %1120, %1121 : vector<16x16xf32>
    %1123 = arith.addf %1107, %1122 : vector<16x16xf32>
    %c69_125 = arith.constant 69 : index
    %1124 = memref.load %arg2[%c69_125] : memref<98xf32, #tpu.memory_space<smem>>
    %1125 = vector.extract_strided_slice %1113 {offsets = [2, 0], sizes = [16, 16], strides = [1, 1]} : vector<22x16xf32> to vector<16x16xf32>
    %1126 = vector.broadcast %1124 : f32 to vector<16x16xf32>
    %1127 = arith.mulf %1125, %1126 : vector<16x16xf32>
    %1128 = arith.addf %1118, %1127 : vector<16x16xf32>
    %c76_126 = arith.constant 76 : index
    %1129 = memref.load %arg2[%c76_126] : memref<98xf32, #tpu.memory_space<smem>>
    %1130 = vector.extract_strided_slice %1113 {offsets = [3, 0], sizes = [16, 16], strides = [1, 1]} : vector<22x16xf32> to vector<16x16xf32>
    %1131 = vector.broadcast %1129 : f32 to vector<16x16xf32>
    %1132 = arith.mulf %1130, %1131 : vector<16x16xf32>
    %1133 = arith.addf %1123, %1132 : vector<16x16xf32>
    %c83_127 = arith.constant 83 : index
    %1134 = memref.load %arg2[%c83_127] : memref<98xf32, #tpu.memory_space<smem>>
    %1135 = vector.extract_strided_slice %1113 {offsets = [4, 0], sizes = [16, 16], strides = [1, 1]} : vector<22x16xf32> to vector<16x16xf32>
    %1136 = vector.broadcast %1134 : f32 to vector<16x16xf32>
    %1137 = arith.mulf %1135, %1136 : vector<16x16xf32>
    %1138 = arith.addf %1128, %1137 : vector<16x16xf32>
    %c90_128 = arith.constant 90 : index
    %1139 = memref.load %arg2[%c90_128] : memref<98xf32, #tpu.memory_space<smem>>
    %1140 = vector.extract_strided_slice %1113 {offsets = [5, 0], sizes = [16, 16], strides = [1, 1]} : vector<22x16xf32> to vector<16x16xf32>
    %1141 = vector.broadcast %1139 : f32 to vector<16x16xf32>
    %1142 = arith.mulf %1140, %1141 : vector<16x16xf32>
    %1143 = arith.addf %1133, %1142 : vector<16x16xf32>
    %c97_129 = arith.constant 97 : index
    %1144 = memref.load %arg2[%c97_129] : memref<98xf32, #tpu.memory_space<smem>>
    %1145 = vector.extract_strided_slice %1113 {offsets = [6, 0], sizes = [16, 16], strides = [1, 1]} : vector<22x16xf32> to vector<16x16xf32>
    %1146 = vector.broadcast %1144 : f32 to vector<16x16xf32>
    %1147 = arith.mulf %1145, %1146 : vector<16x16xf32>
    %1148 = arith.addf %1138, %1147 : vector<16x16xf32>
    %1149 = arith.addf %896, %891 : vector<16x16xf32>
    %1150 = arith.addf %1148, %1143 : vector<16x16xf32>
    %1151 = arith.addf %1149, %1150 : vector<16x16xf32>
    %c0_130 = arith.constant 0 : index
    %1152 = memref.load %arg3[%c0_130] : memref<1xf32, #tpu.memory_space<smem>>
    %1153 = vector.broadcast %1152 : f32 to vector<16x16xf32>
    %1154 = arith.addf %1151, %1153 : vector<16x16xf32>
    %1155 = arith.negf %1154 : vector<16x16xf32>
    %1156 = math.exp %1155 : vector<16x16xf32>
    %cst_131 = arith.constant 1.000000e+00 : f32
    %1157 = vector.broadcast %cst_131 : f32 to vector<16x16xf32>
    %1158 = arith.addf %1157, %1156 : vector<16x16xf32>
    %1159 = arith.divf %1157, %1158 : vector<16x16xf32>
    %1160 = vector.extract_strided_slice %1159 {offsets = [0, 0], sizes = [1, 16], strides = [1, 1]} : vector<16x16xf32> to vector<1x16xf32>
    %1161 = vector.extract_strided_slice %1159 {offsets = [1, 0], sizes = [1, 16], strides = [1, 1]} : vector<16x16xf32> to vector<1x16xf32>
    %1162 = vector.extract_strided_slice %1159 {offsets = [2, 0], sizes = [1, 16], strides = [1, 1]} : vector<16x16xf32> to vector<1x16xf32>
    %1163 = vector.extract_strided_slice %1159 {offsets = [3, 0], sizes = [1, 16], strides = [1, 1]} : vector<16x16xf32> to vector<1x16xf32>
    %1164 = vector.extract_strided_slice %1159 {offsets = [4, 0], sizes = [1, 16], strides = [1, 1]} : vector<16x16xf32> to vector<1x16xf32>
    %1165 = vector.extract_strided_slice %1159 {offsets = [5, 0], sizes = [1, 16], strides = [1, 1]} : vector<16x16xf32> to vector<1x16xf32>
    %1166 = vector.extract_strided_slice %1159 {offsets = [6, 0], sizes = [1, 16], strides = [1, 1]} : vector<16x16xf32> to vector<1x16xf32>
    %1167 = vector.extract_strided_slice %1159 {offsets = [7, 0], sizes = [1, 16], strides = [1, 1]} : vector<16x16xf32> to vector<1x16xf32>
    %1168 = vector.extract_strided_slice %1159 {offsets = [8, 0], sizes = [1, 16], strides = [1, 1]} : vector<16x16xf32> to vector<1x16xf32>
    %1169 = vector.extract_strided_slice %1159 {offsets = [9, 0], sizes = [1, 16], strides = [1, 1]} : vector<16x16xf32> to vector<1x16xf32>
    %1170 = vector.extract_strided_slice %1159 {offsets = [10, 0], sizes = [1, 16], strides = [1, 1]} : vector<16x16xf32> to vector<1x16xf32>
    %1171 = vector.extract_strided_slice %1159 {offsets = [11, 0], sizes = [1, 16], strides = [1, 1]} : vector<16x16xf32> to vector<1x16xf32>
    %1172 = vector.extract_strided_slice %1159 {offsets = [12, 0], sizes = [1, 16], strides = [1, 1]} : vector<16x16xf32> to vector<1x16xf32>
    %1173 = vector.extract_strided_slice %1159 {offsets = [13, 0], sizes = [1, 16], strides = [1, 1]} : vector<16x16xf32> to vector<1x16xf32>
    %1174 = vector.extract_strided_slice %1159 {offsets = [14, 0], sizes = [1, 16], strides = [1, 1]} : vector<16x16xf32> to vector<1x16xf32>
    %1175 = vector.extract_strided_slice %1159 {offsets = [15, 0], sizes = [1, 16], strides = [1, 1]} : vector<16x16xf32> to vector<1x16xf32>
    %1176 = tpu.concatenate %1160, %1161, %1162, %1163, %1164, %1165, %1166, %1167, %1168, %1169, %1170, %1171, %1172, %1173, %1174, %1175 in 1 : vector<1x16xf32>, vector<1x16xf32>, vector<1x16xf32>, vector<1x16xf32>, vector<1x16xf32>, vector<1x16xf32>, vector<1x16xf32>, vector<1x16xf32>, vector<1x16xf32>, vector<1x16xf32>, vector<1x16xf32>, vector<1x16xf32>, vector<1x16xf32>, vector<1x16xf32>, vector<1x16xf32>, vector<1x16xf32> -> vector<1x256xf32>
    %1177 = vector.broadcast %1176 : vector<1x256xf32> to vector<4x256xf32>
    %1178 = arith.mulf %592, %1177 : vector<4x256xf32>
    %c1_132 = arith.constant 1 : index
    %c0_133 = arith.constant 0 : index
    %c0_134 = arith.constant 0 : index
    %1179 = vector.load %arg4[%c1_132, %c0_133, %c0_134] : memref<2x4x256xf32, #tpu.memory_space<vmem>>, vector<1x4x256xf32>
    %1180 = vector.shape_cast %1179 : vector<1x4x256xf32> to vector<4x256xf32>
    %1181 = vector.shape_cast %1178 : vector<4x256xf32> to vector<1x4x256xf32>
    tpu.vector_store %arg4[%c1_132, %c0_133, %c0_134], %1181 {strides = array<i32>} : memref<2x4x256xf32, #tpu.memory_space<vmem>>, vector<1x4x256xf32>,
    return
  }
  func.func @transform_0(%arg0: i32) -> (i32, i32, i32) {
    %c0_i32 = arith.constant 0 : i32
    %c0_i32_0 = arith.constant 0 : i32
    %c0_i32_1 = arith.constant 0 : i32
    return %arg0, %c0_i32, %c0_i32_0 : i32, i32, i32
  }
  func.func @transform_1(%arg0: i32) -> i32 {
    %c0_i32 = arith.constant 0 : i32
    %c0_i32_0 = arith.constant 0 : i32
    return %c0_i32 : i32
  }
  func.func @transform_2(%arg0: i32) -> i32 {
    %c0_i32 = arith.constant 0 : i32
    %c0_i32_0 = arith.constant 0 : i32
    return %c0_i32 : i32
  }
  func.func @transform_3(%arg0: i32) -> (i32, i32, i32) {
    %c0_i32 = arith.constant 0 : i32
    %c0_i32_0 = arith.constant 0 : i32
    %c0_i32_1 = arith.constant 0 : i32
    return %arg0, %c0_i32, %c0_i32_0 : i32, i32, i32
  }
}

</mosaic_0001>

<llo_original>
// kernel: tpu_custom_call.1
$region0: #{tpu_custom_call.1}
  #allocation0 [shape = 'u32[]', space=smem, size = 0x4, offset = 0x4, fixed_abs, tag = 'smem constant byte address 0x4 - core index']
  #allocation1 [shape = 'u32[144,128]{1,0:T(1,128)}', space=vmem, size = 0x12000, scoped, tag = 'internal scratch']
  #allocation2 [shape = 'f32[1]{0:T(128)S(6)}', space=smem, size = 0x200, scoped, tag = 'scoped memory for tpu_custom_call.1']
  %s0 = inlined_call_operand.hbm [shape: f32[2,4,256], index: 0, kind: input, shape index: {}]
  %s1 = inlined_call_operand.vmem [shape: f32[98], index: 1, kind: input, shape index: {}]
  %s2 = inlined_call_operand.<no memory space> [shape: f32[1], index: 2, kind: input, shape index: {}]
  %s3 = inlined_call_operand.hbm [shape: f32[2,4,256], index: 3, kind: output, shape index: {}]
  %s4 = sld [smem:[#allocation0]]
  $region30: #{tpu_custom_call.1} parent=0
    _
  %s6 = ssub.s32 1, %s4
  %s7 = scalar_select 0, %s6, %s4
  %8 = sst [smem:[#allocation2]] %s2
  $region1: #{tpu_custom_call.1} parent=0
    #allocation3 [shape = 'u8[8192]{0}', space=vmem, size = 0x2000, scoped, tag = 'input window, operand 0, single buffered']
    #allocation4 [shape = 's32[1]{0}', space=sflag, size = 0x4, scoped, tag = 'scoped memory for tpu_custom_call.1']
    #allocation5 [shape = 's32[1]{0}', space=sflag, size = 0x4, scoped, tag = 'scoped memory for tpu_custom_call.1']
    #allocation6 [shape = 's32[1]{0}', space=sflag, size = 0x4, scoped, tag = 'scoped memory for tpu_custom_call.1']
    #allocation7 [shape = 'u8[512]{0}', space=smem, size = 0x200, scoped, tag = 'input window, operand 1, single buffered']
    #allocation8 [shape = 'u8[8192]{0}', space=vmem, size = 0x2000, scoped, tag = 'output window, operand 0, single buffered']
    %9 = vsyncpa [#allocation4], 0
    %10 = vsyncpa [#allocation6], 0
    %11 = vsyncpa [#allocation5], 0
    // Predicated region
    $region2: #{tpu_custom_call.1} parent=1 // pred_check
      _
    $region3: #{tpu_custom_call.1} parent=1 // pred_check_branch
      %13 = sbr.rel (0) target = $region5
    $region4: #{tpu_custom_call.1} parent=1 // pred_region
      %s15 = ssub.s32 256, 256
      %16 = vsyncadd [#allocation4], %s15
      %s17 = sshll.u32 [#allocation3], 4
      %s18 = int_to_ptr.vmem [resolvable:$true] %s17
      %23 = dma.hbm_to_vmem [thread:$0]  %s0, 256, %s18, [#allocation4], 128, 128, 8
    $region5: #{tpu_custom_call.1} parent=1 // pred_fallthru
      _
    // Predicated region
    $region6: #{tpu_custom_call.1} parent=1 // pred_check
      _
    $region7: #{tpu_custom_call.1} parent=1 // pred_check_branch
      %25 = sbr.rel (0) target = $region9
    $region8: #{tpu_custom_call.1} parent=1 // pred_region
      %s27 = ssub.s32 16, 16
      %28 = vsyncadd [#allocation6], %s27
      %s30 = sshll.u32 %s1, 4
      %s31 = int_to_ptr.vmem [resolvable:$true] %s30
      %33 = dma.vmem_to_smem %s31, 16, [#allocation7], [#allocation6]
    $region9: #{tpu_custom_call.1} parent=1 // pred_fallthru
      _
    // Predicated region
    $region10: #{tpu_custom_call.1} parent=1 // pred_check
      _
    $region11: #{tpu_custom_call.1} parent=1 // pred_check_branch
      %35 = sbr.rel (0) target = $region13
    $region12: #{tpu_custom_call.1} parent=1 // pred_region
      _
    $region13: #{tpu_custom_call.1} parent=1 // pred_fallthru
      _
    // Predicated region
    $region14: #{tpu_custom_call.1} parent=1 // pred_check
      _
    $region15: #{tpu_custom_call.1} parent=1 // pred_check_branch
      %37 = sbr.rel (0) target = $region17
    $region16: #{tpu_custom_call.1} parent=1 // pred_region
      %38 = dma.done [#allocation4], 256
    $region17: #{tpu_custom_call.1} parent=1 // pred_fallthru
      _
    // Predicated region
    $region18: #{tpu_custom_call.1} parent=1 // pred_check
      _
    $region19: #{tpu_custom_call.1} parent=1 // pred_check_branch
      %40 = sbr.rel (0) target = $region21
    $region20: #{tpu_custom_call.1} parent=1 // pred_region
      %41 = dma.done [#allocation6], 16
    $region21: #{tpu_custom_call.1} parent=1 // pred_fallthru
      _
    %42 = sfence
    %v43 = vld [vmem:[#allocation3] sm:$0xff]
    %v45 = vcombine.high %v43, %v43
    %vm47 = vcmask 1043456
    %v48 = vsel %vm47, %v43, -inf
    %v49 = vrot.slane %v48, 4
    %v50 = vmax.f32 %v48, %v49
    %v51 = vrot.slane %v50, 2
    %v52 = vmax.f32 %v50, %v51
    %v53 = vrot.slane %v52, 1
    %v54 = vmax.f32 %v52, %v53
    %v55 = vsel %vm47, %v45, -inf
    %v56 = vrot.slane %v55, 4
    %v57 = vmax.f32 %v55, %v56
    %v58 = vrot.slane %v57, 2
    %v59 = vmax.f32 %v57, %v58
    %v60 = vrot.slane %v59, 1
    %v61 = vmax.f32 %v59, %v60
    %v62 = vsel %vm47, %v43, 0.0
    %v63 = vrot.slane %v62, 4
    %v64 = vadd.f32 %v62, %v63
    %v65 = vrot.slane %v64, 2
    %v66 = vadd.f32 %v64, %v65
    %v67 = vrot.slane %v66, 1
    %v68 = vadd.f32 %v66, %v67
    %v69 = vsel %vm47, %v45, 0.0
    %v70 = vrot.slane %v69, 4
    %v71 = vadd.f32 %v69, %v70
    %v72 = vrot.slane %v71, 2
    %v73 = vadd.f32 %v71, %v72
    %v74 = vrot.slane %v73, 1
    %v75 = vadd.f32 %v73, %v74
    %v76 = vmul.f32 %v68, 0.25
    %v77 = vmul.f32 %v75, 0.25
    %79 = vrot.lane.b32.xlu0 %v54, 112
    %v80 = vpop.permute.xlu0 %79
    %82 = vrot.lane.b32.xlu0 %v54, 96
    %v83 = vpop.permute.xlu0 %82
    %85 = vrot.lane.b32.xlu0 %v54, 80
    %v86 = vpop.permute.xlu0 %85
    %88 = vrot.lane.b32.xlu0 %v54, 64
    %v89 = vpop.permute.xlu0 %88
    %91 = vrot.lane.b32.xlu0 %v54, 48
    %v92 = vpop.permute.xlu0 %91
    %94 = vrot.lane.b32.xlu0 %v54, 32
    %v95 = vpop.permute.xlu0 %94
    %97 = vrot.lane.b32.xlu0 %v54, 16
    %v98 = vpop.permute.xlu0 %97
    %101 = vrot.lane.b32.xlu0 %v61, 112
    %v102 = vpop.permute.xlu0 %101
    %104 = vrot.lane.b32.xlu0 %v61, 96
    %v105 = vpop.permute.xlu0 %104
    %107 = vrot.lane.b32.xlu0 %v61, 80
    %v108 = vpop.permute.xlu0 %107
    %110 = vrot.lane.b32.xlu0 %v61, 64
    %v111 = vpop.permute.xlu0 %110
    %113 = vrot.lane.b32.xlu0 %v61, 48
    %v114 = vpop.permute.xlu0 %113
    %116 = vrot.lane.b32.xlu0 %v61, 32
    %v117 = vpop.permute.xlu0 %116
    %119 = vrot.lane.b32.xlu0 %v61, 16
    %v120 = vpop.permute.xlu0 %119
    %vm122 = vcmask 1040384
    %v123 = vsel %vm122, %v54, %v80
    %vm124 = vcmask 1041408
    %v125 = vsel %vm124, %v123, %v83
    %vm126 = vcmask 1042432
    %v127 = vsel %vm126, %v125, %v86
    %v128 = vsel %vm47, %v127, %v89
    %vm129 = vcmask 1044480
    %v130 = vsel %vm129, %v128, %v92
    %vm131 = vcmask 1045504
    %v132 = vsel %vm131, %v130, %v95
    %vm133 = vcmask 1046528
    %v134 = vsel %vm133, %v132, %v98
    %v135 = vsel %vm122, %v61, %v102
    %v136 = vsel %vm124, %v135, %v105
    %v137 = vsel %vm126, %v136, %v108
    %v138 = vsel %vm47, %v137, %v111
    %v139 = vsel %vm129, %v138, %v114
    %v140 = vsel %vm131, %v139, %v117
    %v141 = vsel %vm133, %v140, %v120
    %v144 = vrot.slane %v134, 5
    %v145 = vrot.slane %v141, 5
    %v146 = vsel %vm126, %v144, %v145
    %v149 = vsel %vm126, 0.0, %v144
    %v150 = vsel %vm126, %v145, 0.0
    %153 = vrot.lane.b32.xlu0 %v149, 3
    %v154 = vpop.permute.xlu0 %153
    %155 = vrot.lane.b32.xlu0 %v146, 3
    %v156 = vpop.permute.xlu0 %155
    %157 = vrot.lane.b32.xlu0 %v150, 3
    %v158 = vpop.permute.xlu0 %157
    %vm162 = vcmask 23552
    %v163 = vsel %vm162, 0.0, %v154
    %v164 = vsel %vm162, 0.0, %v156
    %v165 = vsel %vm162, 0.0, %v158
    %vm166 = vcmask 154624
    %v167 = vsel %vm166, %v163, 0.0
    %v168 = vsel %vm166, %v164, 0.0
    %v169 = vsel %vm166, %v165, 0.0
    %171 = vrot.lane.b32.xlu0 %v76, 112
    %v172 = vpop.permute.xlu0 %171
    %174 = vrot.lane.b32.xlu0 %v76, 96
    %v175 = vpop.permute.xlu0 %174
    %177 = vrot.lane.b32.xlu0 %v76, 80
    %v178 = vpop.permute.xlu0 %177
    %180 = vrot.lane.b32.xlu0 %v76, 64
    %v181 = vpop.permute.xlu0 %180
    %183 = vrot.lane.b32.xlu0 %v76, 48
    %v184 = vpop.permute.xlu0 %183
    %186 = vrot.lane.b32.xlu0 %v76, 32
    %v187 = vpop.permute.xlu0 %186
    %189 = vrot.lane.b32.xlu0 %v76, 16
    %v190 = vpop.permute.xlu0 %189
    %193 = vrot.lane.b32.xlu0 %v77, 112
    %v194 = vpop.permute.xlu0 %193
    %196 = vrot.lane.b32.xlu0 %v77, 96
    %v197 = vpop.permute.xlu0 %196
    %199 = vrot.lane.b32.xlu0 %v77, 80
    %v200 = vpop.permute.xlu0 %199
    %202 = vrot.lane.b32.xlu0 %v77, 64
    %v203 = vpop.permute.xlu0 %202
    %205 = vrot.lane.b32.xlu0 %v77, 48
    %v206 = vpop.permute.xlu0 %205
    %208 = vrot.lane.b32.xlu0 %v77, 32
    %v209 = vpop.permute.xlu0 %208
    %211 = vrot.lane.b32.xlu0 %v77, 16
    %v212 = vpop.permute.xlu0 %211
    %v214 = vsel %vm122, %v76, %v172
    %v215 = vsel %vm124, %v214, %v175
    %v216 = vsel %vm126, %v215, %v178
    %v217 = vsel %vm47, %v216, %v181
    %v218 = vsel %vm129, %v217, %v184
    %v219 = vsel %vm131, %v218, %v187
    %v220 = vsel %vm133, %v219, %v190
    %v221 = vsel %vm122, %v77, %v194
    %v222 = vsel %vm124, %v221, %v197
    %v223 = vsel %vm126, %v222, %v200
    %v224 = vsel %vm47, %v223, %v203
    %v225 = vsel %vm129, %v224, %v206
    %v226 = vsel %vm131, %v225, %v209
    %v227 = vsel %vm133, %v226, %v212
    %v230 = vrot.slane %v220, 5
    %v231 = vrot.slane %v227, 5
    %v232 = vsel %vm126, %v230, %v231
    %v235 = vsel %vm126, 0.0, %v230
    %v236 = vsel %vm126, %v231, 0.0
    %239 = vrot.lane.b32.xlu0 %v235, 3
    %v240 = vpop.permute.xlu0 %239
    %241 = vrot.lane.b32.xlu0 %v232, 3
    %v242 = vpop.permute.xlu0 %241
    %243 = vrot.lane.b32.xlu0 %v236, 3
    %v244 = vpop.permute.xlu0 %243
    %v248 = vsel %vm162, 0.0, %v240
    %v249 = vsel %vm162, 0.0, %v242
    %v250 = vsel %vm162, 0.0, %v244
    %v251 = vsel %vm166, %v248, 0.0
    %v252 = vsel %vm166, %v249, 0.0
    %v253 = vsel %vm166, %v250, 0.0
    %s254 = sld [smem:[#allocation7]]
    %v255 = vstv %s254
    %v256 = vmul.f32 %v167, %v255
    %v257 = vmul.f32 %v168, %v255
    %v258 = vadd.f32 %v256, 0.0
    %v259 = vadd.f32 %v257, 0.0
    %s260 = sld [smem:[#allocation7 + $0x7]]
    %v261 = vstv %s260
    %v262 = vmul.f32 %v167, %v261
    %v263 = vmul.f32 %v168, %v261
    %v264 = vmul.f32 %v169, %v261
    %v265 = vadd.f32 %v262, 0.0
    %v266 = vadd.f32 %v263, 0.0
    %v267 = vadd.f32 %v264, 0.0
    %s268 = sld [smem:[#allocation7 + $0xe]]
    %v269 = vstv %s268
    %v270 = vmul.f32 %v167, %v269
    %v271 = vmul.f32 %v168, %v269
    %v272 = vmul.f32 %v169, %v269
    %v276 = vrot.slane %v270, 2
    %v277 = vrot.slane %v271, 2
    %v278 = vsel %vm131, %v276, %v277
    %v279 = vrot.slane %v272, 2
    %v280 = vsel %vm131, %v277, %v279
    %v283 = vadd.f32 %v258, %v278
    %v284 = vadd.f32 %v259, %v280
    %s285 = sld [smem:[#allocation7 + $0x15]]
    %v286 = vstv %s285
    %v287 = vmul.f32 %v167, %v286
    %v288 = vmul.f32 %v168, %v286
    %v289 = vmul.f32 %v169, %v286
    %v293 = vrot.slane %v287, 2
    %v294 = vrot.slane %v288, 2
    %v295 = vsel %vm131, %v293, %v294
    %v296 = vrot.slane %v289, 2
    %v297 = vsel %vm131, %v294, %v296
    %v301 = vadd.f32 %v265, %v295
    %v302 = vadd.f32 %v266, %v297
    %v303 = vadd.f32 %v267, %v296
    %s304 = sld [smem:[#allocation7 + $0x1c]]
    %v305 = vstv %s304
    %v306 = vmul.f32 %v167, %v305
    %v307 = vmul.f32 %v168, %v305
    %v308 = vmul.f32 %v169, %v305
    %v312 = vrot.slane %v306, 4
    %v313 = vrot.slane %v307, 4
    %v314 = vsel %vm47, %v312, %v313
    %v315 = vrot.slane %v308, 4
    %v316 = vsel %vm47, %v313, %v315
    %v319 = vadd.f32 %v283, %v314
    %v320 = vadd.f32 %v284, %v316
    %s321 = sld [smem:[#allocation7 + $0x23]]
    %v322 = vstv %s321
    %v323 = vmul.f32 %v167, %v322
    %v324 = vmul.f32 %v168, %v322
    %v325 = vmul.f32 %v169, %v322
    %v329 = vrot.slane %v323, 4
    %v330 = vrot.slane %v324, 4
    %v331 = vsel %vm47, %v329, %v330
    %v332 = vrot.slane %v325, 4
    %v333 = vsel %vm47, %v330, %v332
    %v337 = vadd.f32 %v301, %v331
    %v338 = vadd.f32 %v302, %v333
    %v339 = vadd.f32 %v303, %v332
    %s340 = sld [smem:[#allocation7 + $0x2a]]
    %v341 = vstv %s340
    %v342 = vmul.f32 %v167, %v341
    %v343 = vmul.f32 %v168, %v341
    %v344 = vmul.f32 %v169, %v341
    %v348 = vrot.slane %v342, 6
    %v349 = vrot.slane %v343, 6
    %v350 = vsel %vm124, %v348, %v349
    %v351 = vrot.slane %v344, 6
    %v352 = vsel %vm124, %v349, %v351
    %v355 = vadd.f32 %v319, %v350
    %v356 = vadd.f32 %v320, %v352
    %s357 = sld [smem:[#allocation7 + $0x1]]
    %v358 = vstv %s357
    %v359 = vmul.f32 %v167, %v358
    %v360 = vmul.f32 %v168, %v358
    %363 = vrot.lane.b32.xlu0 %v359, 127
    %v364 = vpop.permute.xlu0 %363
    %365 = vrot.lane.b32.xlu0 %v360, 127
    %v366 = vpop.permute.xlu0 %365
    %v369 = vadd.f32 %v355, %v364
    %v370 = vadd.f32 %v356, %v366
    %s371 = sld [smem:[#allocation7 + $0x8]]
    %v372 = vstv %s371
    %v373 = vmul.f32 %v167, %v372
    %v374 = vmul.f32 %v168, %v372
    %v375 = vmul.f32 %v169, %v372
    %379 = vrot.lane.b32.xlu0 %v373, 127
    %v380 = vpop.permute.xlu0 %379
    %381 = vrot.lane.b32.xlu0 %v374, 127
    %v382 = vpop.permute.xlu0 %381
    %383 = vrot.lane.b32.xlu0 %v375, 127
    %v384 = vpop.permute.xlu0 %383
    %v388 = vadd.f32 %v337, %v380
    %v389 = vadd.f32 %v338, %v382
    %v390 = vadd.f32 %v339, %v384
    %s391 = sld [smem:[#allocation7 + $0xf]]
    %v392 = vstv %s391
    %v393 = vmul.f32 %v167, %v392
    %v394 = vmul.f32 %v168, %v392
    %v395 = vmul.f32 %v169, %v392
    %v399 = vrot.slane %v393, 2
    %v400 = vrot.slane %v394, 2
    %v401 = vsel %vm131, %v399, %v400
    %v402 = vrot.slane %v395, 2
    %v403 = vsel %vm131, %v400, %v402
    %404 = vrot.lane.b32.xlu0 %v401, 127
    %v405 = vpop.permute.xlu0 %404
    %406 = vrot.lane.b32.xlu0 %v403, 127
    %v407 = vpop.permute.xlu0 %406
    %v410 = vadd.f32 %v369, %v405
    %v411 = vadd.f32 %v370, %v407
    %s412 = sld [smem:[#allocation7 + $0x16]]
    %v413 = vstv %s412
    %v414 = vmul.f32 %v167, %v413
    %v415 = vmul.f32 %v168, %v413
    %v416 = vmul.f32 %v169, %v413
    %v420 = vrot.slane %v414, 2
    %v421 = vrot.slane %v415, 2
    %v422 = vsel %vm131, %v420, %v421
    %v423 = vrot.slane %v416, 2
    %v424 = vsel %vm131, %v421, %v423
    %425 = vrot.lane.b32.xlu0 %v422, 127
    %v426 = vpop.permute.xlu0 %425
    %427 = vrot.lane.b32.xlu0 %v424, 127
    %v428 = vpop.permute.xlu0 %427
    %429 = vrot.lane.b32.xlu0 %v423, 127
    %v430 = vpop.permute.xlu0 %429
    %v434 = vadd.f32 %v388, %v426
    %v435 = vadd.f32 %v389, %v428
    %v436 = vadd.f32 %v390, %v430
    %s437 = sld [smem:[#allocation7 + $0x1d]]
    %v438 = vstv %s437
    %v439 = vmul.f32 %v167, %v438
    %v440 = vmul.f32 %v168, %v438
    %v441 = vmul.f32 %v169, %v438
    %v445 = vrot.slane %v439, 4
    %v446 = vrot.slane %v440, 4
    %v447 = vsel %vm47, %v445, %v446
    %v448 = vrot.slane %v441, 4
    %v449 = vsel %vm47, %v446, %v448
    %450 = vrot.lane.b32.xlu0 %v447, 127
    %v451 = vpop.permute.xlu0 %450
    %452 = vrot.lane.b32.xlu0 %v449, 127
    %v453 = vpop.permute.xlu0 %452
    %v456 = vadd.f32 %v410, %v451
    %v457 = vadd.f32 %v411, %v453
    %s458 = sld [smem:[#allocation7 + $0x24]]
    %v459 = vstv %s458
    %v460 = vmul.f32 %v167, %v459
    %v461 = vmul.f32 %v168, %v459
    %v462 = vmul.f32 %v169, %v459
    %v466 = vrot.slane %v460, 4
    %v467 = vrot.slane %v461, 4
    %v468 = vsel %vm47, %v466, %v467
    %v469 = vrot.slane %v462, 4
    %v470 = vsel %vm47, %v467, %v469
    %471 = vrot.lane.b32.xlu0 %v468, 127
    %v472 = vpop.permute.xlu0 %471
    %473 = vrot.lane.b32.xlu0 %v470, 127
    %v474 = vpop.permute.xlu0 %473
    %475 = vrot.lane.b32.xlu0 %v469, 127
    %v476 = vpop.permute.xlu0 %475
    %v480 = vadd.f32 %v434, %v472
    %v481 = vadd.f32 %v435, %v474
    %v482 = vadd.f32 %v436, %v476
    %s483 = sld [smem:[#allocation7 + $0x2b]]
    %v484 = vstv %s483
    %v485 = vmul.f32 %v167, %v484
    %v486 = vmul.f32 %v168, %v484
    %v487 = vmul.f32 %v169, %v484
    %v491 = vrot.slane %v485, 6
    %v492 = vrot.slane %v486, 6
    %v493 = vsel %vm124, %v491, %v492
    %v494 = vrot.slane %v487, 6
    %v495 = vsel %vm124, %v492, %v494
    %496 = vrot.lane.b32.xlu0 %v493, 127
    %v497 = vpop.permute.xlu0 %496
    %498 = vrot.lane.b32.xlu0 %v495, 127
    %v499 = vpop.permute.xlu0 %498
    %v502 = vadd.f32 %v456, %v497
    %v503 = vadd.f32 %v457, %v499
    %s504 = sld [smem:[#allocation7 + $0x2]]
    %v505 = vstv %s504
    %v506 = vmul.f32 %v167, %v505
    %v507 = vmul.f32 %v168, %v505
    %510 = vrot.lane.b32.xlu0 %v506, 126
    %v511 = vpop.permute.xlu0 %510
    %512 = vrot.lane.b32.xlu0 %v507, 126
    %v513 = vpop.permute.xlu0 %512
    %v516 = vadd.f32 %v502, %v511
    %v517 = vadd.f32 %v503, %v513
    %s518 = sld [smem:[#allocation7 + $0x9]]
    %v519 = vstv %s518
    %v520 = vmul.f32 %v167, %v519
    %v521 = vmul.f32 %v168, %v519
    %v522 = vmul.f32 %v169, %v519
    %526 = vrot.lane.b32.xlu0 %v520, 126
    %v527 = vpop.permute.xlu0 %526
    %528 = vrot.lane.b32.xlu0 %v521, 126
    %v529 = vpop.permute.xlu0 %528
    %530 = vrot.lane.b32.xlu0 %v522, 126
    %v531 = vpop.permute.xlu0 %530
    %v535 = vadd.f32 %v480, %v527
    %v536 = vadd.f32 %v481, %v529
    %v537 = vadd.f32 %v482, %v531
    %s538 = sld [smem:[#allocation7 + $0x10]]
    %v539 = vstv %s538
    %v540 = vmul.f32 %v167, %v539
    %v541 = vmul.f32 %v168, %v539
    %v542 = vmul.f32 %v169, %v539
    %v546 = vrot.slane %v540, 2
    %v547 = vrot.slane %v541, 2
    %v548 = vsel %vm131, %v546, %v547
    %v549 = vrot.slane %v542, 2
    %v550 = vsel %vm131, %v547, %v549
    %551 = vrot.lane.b32.xlu0 %v548, 126
    %v552 = vpop.permute.xlu0 %551
    %553 = vrot.lane.b32.xlu0 %v550, 126
    %v554 = vpop.permute.xlu0 %553
    %v557 = vadd.f32 %v516, %v552
    %v558 = vadd.f32 %v517, %v554
    %s559 = sld [smem:[#allocation7 + $0x17]]
    %v560 = vstv %s559
    %v561 = vmul.f32 %v167, %v560
    %v562 = vmul.f32 %v168, %v560
    %v563 = vmul.f32 %v169, %v560
    %v567 = vrot.slane %v561, 2
    %v568 = vrot.slane %v562, 2
    %v569 = vsel %vm131, %v567, %v568
    %v570 = vrot.slane %v563, 2
    %v571 = vsel %vm131, %v568, %v570
    %572 = vrot.lane.b32.xlu0 %v569, 126
    %v573 = vpop.permute.xlu0 %572
    %574 = vrot.lane.b32.xlu0 %v571, 126
    %v575 = vpop.permute.xlu0 %574
    %576 = vrot.lane.b32.xlu0 %v570, 126
    %v577 = vpop.permute.xlu0 %576
    %v581 = vadd.f32 %v535, %v573
    %v582 = vadd.f32 %v536, %v575
    %v583 = vadd.f32 %v537, %v577
    %s584 = sld [smem:[#allocation7 + $0x1e]]
    %v585 = vstv %s584
    %v586 = vmul.f32 %v167, %v585
    %v587 = vmul.f32 %v168, %v585
    %v588 = vmul.f32 %v169, %v585
    %v592 = vrot.slane %v586, 4
    %v593 = vrot.slane %v587, 4
    %v594 = vsel %vm47, %v592, %v593
    %v595 = vrot.slane %v588, 4
    %v596 = vsel %vm47, %v593, %v595
    %597 = vrot.lane.b32.xlu0 %v594, 126
    %v598 = vpop.permute.xlu0 %597
    %599 = vrot.lane.b32.xlu0 %v596, 126
    %v600 = vpop.permute.xlu0 %599
    %v603 = vadd.f32 %v557, %v598
    %v604 = vadd.f32 %v558, %v600
    %s605 = sld [smem:[#allocation7 + $0x25]]
    %v606 = vstv %s605
    %v607 = vmul.f32 %v167, %v606
    %v608 = vmul.f32 %v168, %v606
    %v609 = vmul.f32 %v169, %v606
    %v613 = vrot.slane %v607, 4
    %v614 = vrot.slane %v608, 4
    %v615 = vsel %vm47, %v613, %v614
    %v616 = vrot.slane %v609, 4
    %v617 = vsel %vm47, %v614, %v616
    %618 = vrot.lane.b32.xlu0 %v615, 126
    %v619 = vpop.permute.xlu0 %618
    %620 = vrot.lane.b32.xlu0 %v617, 126
    %v621 = vpop.permute.xlu0 %620
    %622 = vrot.lane.b32.xlu0 %v616, 126
    %v623 = vpop.permute.xlu0 %622
    %v627 = vadd.f32 %v581, %v619
    %v628 = vadd.f32 %v582, %v621
    %v629 = vadd.f32 %v583, %v623
    %s630 = sld [smem:[#allocation7 + $0x2c]]
    %v631 = vstv %s630
    %v632 = vmul.f32 %v167, %v631
    %v633 = vmul.f32 %v168, %v631
    %v634 = vmul.f32 %v169, %v631
    %v638 = vrot.slane %v632, 6
    %v639 = vrot.slane %v633, 6
    %v640 = vsel %vm124, %v638, %v639
    %v641 = vrot.slane %v634, 6
    %v642 = vsel %vm124, %v639, %v641
    %643 = vrot.lane.b32.xlu0 %v640, 126
    %v644 = vpop.permute.xlu0 %643
    %645 = vrot.lane.b32.xlu0 %v642, 126
    %v646 = vpop.permute.xlu0 %645
    %v649 = vadd.f32 %v603, %v644
    %v650 = vadd.f32 %v604, %v646
    %s651 = sld [smem:[#allocation7 + $0x3]]
    %v652 = vstv %s651
    %v653 = vmul.f32 %v167, %v652
    %v654 = vmul.f32 %v168, %v652
    %657 = vrot.lane.b32.xlu0 %v653, 125
    %v658 = vpop.permute.xlu0 %657
    %659 = vrot.lane.b32.xlu0 %v654, 125
    %v660 = vpop.permute.xlu0 %659
    %v663 = vadd.f32 %v649, %v658
    %v664 = vadd.f32 %v650, %v660
    %s665 = sld [smem:[#allocation7 + $0xa]]
    %v666 = vstv %s665
    %v667 = vmul.f32 %v167, %v666
    %v668 = vmul.f32 %v168, %v666
    %v669 = vmul.f32 %v169, %v666
    %673 = vrot.lane.b32.xlu0 %v667, 125
    %v674 = vpop.permute.xlu0 %673
    %675 = vrot.lane.b32.xlu0 %v668, 125
    %v676 = vpop.permute.xlu0 %675
    %677 = vrot.lane.b32.xlu0 %v669, 125
    %v678 = vpop.permute.xlu0 %677
    %v682 = vadd.f32 %v627, %v674
    %v683 = vadd.f32 %v628, %v676
    %v684 = vadd.f32 %v629, %v678
    %s685 = sld [smem:[#allocation7 + $0x11]]
    %v686 = vstv %s685
    %v687 = vmul.f32 %v167, %v686
    %v688 = vmul.f32 %v168, %v686
    %v689 = vmul.f32 %v169, %v686
    %v693 = vrot.slane %v687, 2
    %v694 = vrot.slane %v688, 2
    %v695 = vsel %vm131, %v693, %v694
    %v696 = vrot.slane %v689, 2
    %v697 = vsel %vm131, %v694, %v696
    %698 = vrot.lane.b32.xlu0 %v695, 125
    %v699 = vpop.permute.xlu0 %698
    %700 = vrot.lane.b32.xlu0 %v697, 125
    %v701 = vpop.permute.xlu0 %700
    %v704 = vadd.f32 %v663, %v699
    %v705 = vadd.f32 %v664, %v701
    %s706 = sld [smem:[#allocation7 + $0x18]]
    %v707 = vstv %s706
    %v708 = vmul.f32 %v167, %v707
    %v709 = vmul.f32 %v168, %v707
    %v710 = vmul.f32 %v169, %v707
    %v714 = vrot.slane %v708, 2
    %v715 = vrot.slane %v709, 2
    %v716 = vsel %vm131, %v714, %v715
    %v717 = vrot.slane %v710, 2
    %v718 = vsel %vm131, %v715, %v717
    %719 = vrot.lane.b32.xlu0 %v716, 125
    %v720 = vpop.permute.xlu0 %719
    %721 = vrot.lane.b32.xlu0 %v718, 125
    %v722 = vpop.permute.xlu0 %721
    %723 = vrot.lane.b32.xlu0 %v717, 125
    %v724 = vpop.permute.xlu0 %723
    %v728 = vadd.f32 %v682, %v720
    %v729 = vadd.f32 %v683, %v722
    %v730 = vadd.f32 %v684, %v724
    %s731 = sld [smem:[#allocation7 + $0x1f]]
    %v732 = vstv %s731
    %v733 = vmul.f32 %v167, %v732
    %v734 = vmul.f32 %v168, %v732
    %v735 = vmul.f32 %v169, %v732
    %v739 = vrot.slane %v733, 4
    %v740 = vrot.slane %v734, 4
    %v741 = vsel %vm47, %v739, %v740
    %v742 = vrot.slane %v735, 4
    %v743 = vsel %vm47, %v740, %v742
    %744 = vrot.lane.b32.xlu0 %v741, 125
    %v745 = vpop.permute.xlu0 %744
    %746 = vrot.lane.b32.xlu0 %v743, 125
    %v747 = vpop.permute.xlu0 %746
    %v750 = vadd.f32 %v704, %v745
    %v751 = vadd.f32 %v705, %v747
    %s752 = sld [smem:[#allocation7 + $0x26]]
    %v753 = vstv %s752
    %v754 = vmul.f32 %v167, %v753
    %v755 = vmul.f32 %v168, %v753
    %v756 = vmul.f32 %v169, %v753
    %v760 = vrot.slane %v754, 4
    %v761 = vrot.slane %v755, 4
    %v762 = vsel %vm47, %v760, %v761
    %v763 = vrot.slane %v756, 4
    %v764 = vsel %vm47, %v761, %v763
    %765 = vrot.lane.b32.xlu0 %v762, 125
    %v766 = vpop.permute.xlu0 %765
    %767 = vrot.lane.b32.xlu0 %v764, 125
    %v768 = vpop.permute.xlu0 %767
    %769 = vrot.lane.b32.xlu0 %v763, 125
    %v770 = vpop.permute.xlu0 %769
    %v774 = vadd.f32 %v728, %v766
    %v775 = vadd.f32 %v729, %v768
    %v776 = vadd.f32 %v730, %v770
    %s777 = sld [smem:[#allocation7 + $0x2d]]
    %v778 = vstv %s777
    %v779 = vmul.f32 %v167, %v778
    %v780 = vmul.f32 %v168, %v778
    %v781 = vmul.f32 %v169, %v778
    %v785 = vrot.slane %v779, 6
    %v786 = vrot.slane %v780, 6
    %v787 = vsel %vm124, %v785, %v786
    %v788 = vrot.slane %v781, 6
    %v789 = vsel %vm124, %v786, %v788
    %790 = vrot.lane.b32.xlu0 %v787, 125
    %v791 = vpop.permute.xlu0 %790
    %792 = vrot.lane.b32.xlu0 %v789, 125
    %v793 = vpop.permute.xlu0 %792
    %v796 = vadd.f32 %v750, %v791
    %v797 = vadd.f32 %v751, %v793
    %s798 = sld [smem:[#allocation7 + $0x4]]
    %v799 = vstv %s798
    %v800 = vmul.f32 %v167, %v799
    %v801 = vmul.f32 %v168, %v799
    %804 = vrot.lane.b32.xlu0 %v800, 124
    %v805 = vpop.permute.xlu0 %804
    %806 = vrot.lane.b32.xlu0 %v801, 124
    %v807 = vpop.permute.xlu0 %806
    %v810 = vadd.f32 %v796, %v805
    %v811 = vadd.f32 %v797, %v807
    %s812 = sld [smem:[#allocation7 + $0xb]]
    %v813 = vstv %s812
    %v814 = vmul.f32 %v167, %v813
    %v815 = vmul.f32 %v168, %v813
    %v816 = vmul.f32 %v169, %v813
    %820 = vrot.lane.b32.xlu0 %v814, 124
    %v821 = vpop.permute.xlu0 %820
    %822 = vrot.lane.b32.xlu0 %v815, 124
    %v823 = vpop.permute.xlu0 %822
    %824 = vrot.lane.b32.xlu0 %v816, 124
    %v825 = vpop.permute.xlu0 %824
    %v829 = vadd.f32 %v774, %v821
    %v830 = vadd.f32 %v775, %v823
    %v831 = vadd.f32 %v776, %v825
    %s832 = sld [smem:[#allocation7 + $0x12]]
    %v833 = vstv %s832
    %v834 = vmul.f32 %v167, %v833
    %v835 = vmul.f32 %v168, %v833
    %v836 = vmul.f32 %v169, %v833
    %v840 = vrot.slane %v834, 2
    %v841 = vrot.slane %v835, 2
    %v842 = vsel %vm131, %v840, %v841
    %v843 = vrot.slane %v836, 2
    %v844 = vsel %vm131, %v841, %v843
    %845 = vrot.lane.b32.xlu0 %v842, 124
    %v846 = vpop.permute.xlu0 %845
    %847 = vrot.lane.b32.xlu0 %v844, 124
    %v848 = vpop.permute.xlu0 %847
    %v851 = vadd.f32 %v810, %v846
    %v852 = vadd.f32 %v811, %v848
    %s853 = sld [smem:[#allocation7 + $0x19]]
    %v854 = vstv %s853
    %v855 = vmul.f32 %v167, %v854
    %v856 = vmul.f32 %v168, %v854
    %v857 = vmul.f32 %v169, %v854
    %v861 = vrot.slane %v855, 2
    %v862 = vrot.slane %v856, 2
    %v863 = vsel %vm131, %v861, %v862
    %v864 = vrot.slane %v857, 2
    %v865 = vsel %vm131, %v862, %v864
    %866 = vrot.lane.b32.xlu0 %v863, 124
    %v867 = vpop.permute.xlu0 %866
    %868 = vrot.lane.b32.xlu0 %v865, 124
    %v869 = vpop.permute.xlu0 %868
    %870 = vrot.lane.b32.xlu0 %v864, 124
    %v871 = vpop.permute.xlu0 %870
    %v875 = vadd.f32 %v829, %v867
    %v876 = vadd.f32 %v830, %v869
    %v877 = vadd.f32 %v831, %v871
    %s878 = sld [smem:[#allocation7 + $0x20]]
    %v879 = vstv %s878
    %v880 = vmul.f32 %v167, %v879
    %v881 = vmul.f32 %v168, %v879
    %v882 = vmul.f32 %v169, %v879
    %v886 = vrot.slane %v880, 4
    %v887 = vrot.slane %v881, 4
    %v888 = vsel %vm47, %v886, %v887
    %v889 = vrot.slane %v882, 4
    %v890 = vsel %vm47, %v887, %v889
    %891 = vrot.lane.b32.xlu0 %v888, 124
    %v892 = vpop.permute.xlu0 %891
    %893 = vrot.lane.b32.xlu0 %v890, 124
    %v894 = vpop.permute.xlu0 %893
    %v897 = vadd.f32 %v851, %v892
    %v898 = vadd.f32 %v852, %v894
    %s899 = sld [smem:[#allocation7 + $0x27]]
    %v900 = vstv %s899
    %v901 = vmul.f32 %v167, %v900
    %v902 = vmul.f32 %v168, %v900
    %v903 = vmul.f32 %v169, %v900
    %v907 = vrot.slane %v901, 4
    %v908 = vrot.slane %v902, 4
    %v909 = vsel %vm47, %v907, %v908
    %v910 = vrot.slane %v903, 4
    %v911 = vsel %vm47, %v908, %v910
    %912 = vrot.lane.b32.xlu0 %v909, 124
    %v913 = vpop.permute.xlu0 %912
    %914 = vrot.lane.b32.xlu0 %v911, 124
    %v915 = vpop.permute.xlu0 %914
    %916 = vrot.lane.b32.xlu0 %v910, 124
    %v917 = vpop.permute.xlu0 %916
    %v921 = vadd.f32 %v875, %v913
    %v922 = vadd.f32 %v876, %v915
    %v923 = vadd.f32 %v877, %v917
    %s924 = sld [smem:[#allocation7 + $0x2e]]
    %v925 = vstv %s924
    %v926 = vmul.f32 %v167, %v925
    %v927 = vmul.f32 %v168, %v925
    %v928 = vmul.f32 %v169, %v925
    %v932 = vrot.slane %v926, 6
    %v933 = vrot.slane %v927, 6
    %v934 = vsel %vm124, %v932, %v933
    %v935 = vrot.slane %v928, 6
    %v936 = vsel %vm124, %v933, %v935
    %937 = vrot.lane.b32.xlu0 %v934, 124
    %v938 = vpop.permute.xlu0 %937
    %939 = vrot.lane.b32.xlu0 %v936, 124
    %v940 = vpop.permute.xlu0 %939
    %v943 = vadd.f32 %v897, %v938
    %v944 = vadd.f32 %v898, %v940
    %s945 = sld [smem:[#allocation7 + $0x5]]
    %v946 = vstv %s945
    %v947 = vmul.f32 %v167, %v946
    %v948 = vmul.f32 %v168, %v946
    %951 = vrot.lane.b32.xlu0 %v947, 123
    %v952 = vpop.permute.xlu0 %951
    %953 = vrot.lane.b32.xlu0 %v948, 123
    %v954 = vpop.permute.xlu0 %953
    %v957 = vadd.f32 %v943, %v952
    %v958 = vadd.f32 %v944, %v954
    %s959 = sld [smem:[#allocation7 + $0xc]]
    %v960 = vstv %s959
    %v961 = vmul.f32 %v167, %v960
    %v962 = vmul.f32 %v168, %v960
    %v963 = vmul.f32 %v169, %v960
    %967 = vrot.lane.b32.xlu0 %v961, 123
    %v968 = vpop.permute.xlu0 %967
    %969 = vrot.lane.b32.xlu0 %v962, 123
    %v970 = vpop.permute.xlu0 %969
    %971 = vrot.lane.b32.xlu0 %v963, 123
    %v972 = vpop.permute.xlu0 %971
    %v976 = vadd.f32 %v921, %v968
    %v977 = vadd.f32 %v922, %v970
    %v978 = vadd.f32 %v923, %v972
    %s979 = sld [smem:[#allocation7 + $0x13]]
    %v980 = vstv %s979
    %v981 = vmul.f32 %v167, %v980
    %v982 = vmul.f32 %v168, %v980
    %v983 = vmul.f32 %v169, %v980
    %v987 = vrot.slane %v981, 2
    %v988 = vrot.slane %v982, 2
    %v989 = vsel %vm131, %v987, %v988
    %v990 = vrot.slane %v983, 2
    %v991 = vsel %vm131, %v988, %v990
    %992 = vrot.lane.b32.xlu0 %v989, 123
    %v993 = vpop.permute.xlu0 %992
    %994 = vrot.lane.b32.xlu0 %v991, 123
    %v995 = vpop.permute.xlu0 %994
    %v998 = vadd.f32 %v957, %v993
    %v999 = vadd.f32 %v958, %v995
    %s1000 = sld [smem:[#allocation7 + $0x1a]]
    %v1001 = vstv %s1000
    %v1002 = vmul.f32 %v167, %v1001
    %v1003 = vmul.f32 %v168, %v1001
    %v1004 = vmul.f32 %v169, %v1001
    %v1008 = vrot.slane %v1002, 2
    %v1009 = vrot.slane %v1003, 2
    %v1010 = vsel %vm131, %v1008, %v1009
    %v1011 = vrot.slane %v1004, 2
    %v1012 = vsel %vm131, %v1009, %v1011
    %1013 = vrot.lane.b32.xlu0 %v1010, 123
    %v1014 = vpop.permute.xlu0 %1013
    %1015 = vrot.lane.b32.xlu0 %v1012, 123
    %v1016 = vpop.permute.xlu0 %1015
    %1017 = vrot.lane.b32.xlu0 %v1011, 123
    %v1018 = vpop.permute.xlu0 %1017
    %v1022 = vadd.f32 %v976, %v1014
    %v1023 = vadd.f32 %v977, %v1016
    %v1024 = vadd.f32 %v978, %v1018
    %s1025 = sld [smem:[#allocation7 + $0x21]]
    %v1026 = vstv %s1025
    %v1027 = vmul.f32 %v167, %v1026
    %v1028 = vmul.f32 %v168, %v1026
    %v1029 = vmul.f32 %v169, %v1026
    %v1033 = vrot.slane %v1027, 4
    %v1034 = vrot.slane %v1028, 4
    %v1035 = vsel %vm47, %v1033, %v1034
    %v1036 = vrot.slane %v1029, 4
    %v1037 = vsel %vm47, %v1034, %v1036
    %1038 = vrot.lane.b32.xlu0 %v1035, 123
    %v1039 = vpop.permute.xlu0 %1038
    %1040 = vrot.lane.b32.xlu0 %v1037, 123
    %v1041 = vpop.permute.xlu0 %1040
    %v1044 = vadd.f32 %v998, %v1039
    %v1045 = vadd.f32 %v999, %v1041
    %s1046 = sld [smem:[#allocation7 + $0x28]]
    %v1047 = vstv %s1046
    %v1048 = vmul.f32 %v167, %v1047
    %v1049 = vmul.f32 %v168, %v1047
    %v1050 = vmul.f32 %v169, %v1047
    %v1054 = vrot.slane %v1048, 4
    %v1055 = vrot.slane %v1049, 4
    %v1056 = vsel %vm47, %v1054, %v1055
    %v1057 = vrot.slane %v1050, 4
    %v1058 = vsel %vm47, %v1055, %v1057
    %1059 = vrot.lane.b32.xlu0 %v1056, 123
    %v1060 = vpop.permute.xlu0 %1059
    %1061 = vrot.lane.b32.xlu0 %v1058, 123
    %v1062 = vpop.permute.xlu0 %1061
    %1063 = vrot.lane.b32.xlu0 %v1057, 123
    %v1064 = vpop.permute.xlu0 %1063
    %v1068 = vadd.f32 %v1022, %v1060
    %v1069 = vadd.f32 %v1023, %v1062
    %v1070 = vadd.f32 %v1024, %v1064
    %s1071 = sld [smem:[#allocation7 + $0x2f]]
    %v1072 = vstv %s1071
    %v1073 = vmul.f32 %v167, %v1072
    %v1074 = vmul.f32 %v168, %v1072
    %v1075 = vmul.f32 %v169, %v1072
    %v1079 = vrot.slane %v1073, 6
    %v1080 = vrot.slane %v1074, 6
    %v1081 = vsel %vm124, %v1079, %v1080
    %v1082 = vrot.slane %v1075, 6
    %v1083 = vsel %vm124, %v1080, %v1082
    %1084 = vrot.lane.b32.xlu0 %v1081, 123
    %v1085 = vpop.permute.xlu0 %1084
    %1086 = vrot.lane.b32.xlu0 %v1083, 123
    %v1087 = vpop.permute.xlu0 %1086
    %v1090 = vadd.f32 %v1044, %v1085
    %v1091 = vadd.f32 %v1045, %v1087
    %s1092 = sld [smem:[#allocation7 + $0x6]]
    %v1093 = vstv %s1092
    %v1094 = vmul.f32 %v167, %v1093
    %v1095 = vmul.f32 %v168, %v1093
    %1098 = vrot.lane.b32.xlu0 %v1094, 122
    %v1099 = vpop.permute.xlu0 %1098
    %1100 = vrot.lane.b32.xlu0 %v1095, 122
    %v1101 = vpop.permute.xlu0 %1100
    %v1104 = vadd.f32 %v1090, %v1099
    %v1105 = vadd.f32 %v1091, %v1101
    %s1106 = sld [smem:[#allocation7 + $0xd]]
    %v1107 = vstv %s1106
    %v1108 = vmul.f32 %v167, %v1107
    %v1109 = vmul.f32 %v168, %v1107
    %v1110 = vmul.f32 %v169, %v1107
    %1114 = vrot.lane.b32.xlu0 %v1108, 122
    %v1115 = vpop.permute.xlu0 %1114
    %1116 = vrot.lane.b32.xlu0 %v1109, 122
    %v1117 = vpop.permute.xlu0 %1116
    %1118 = vrot.lane.b32.xlu0 %v1110, 122
    %v1119 = vpop.permute.xlu0 %1118
    %v1123 = vadd.f32 %v1068, %v1115
    %v1124 = vadd.f32 %v1069, %v1117
    %v1125 = vadd.f32 %v1070, %v1119
    %s1126 = sld [smem:[#allocation7 + $0x14]]
    %v1127 = vstv %s1126
    %v1128 = vmul.f32 %v167, %v1127
    %v1129 = vmul.f32 %v168, %v1127
    %v1130 = vmul.f32 %v169, %v1127
    %v1134 = vrot.slane %v1128, 2
    %v1135 = vrot.slane %v1129, 2
    %v1136 = vsel %vm131, %v1134, %v1135
    %v1137 = vrot.slane %v1130, 2
    %v1138 = vsel %vm131, %v1135, %v1137
    %1139 = vrot.lane.b32.xlu0 %v1136, 122
    %v1140 = vpop.permute.xlu0 %1139
    %1141 = vrot.lane.b32.xlu0 %v1138, 122
    %v1142 = vpop.permute.xlu0 %1141
    %v1145 = vadd.f32 %v1104, %v1140
    %v1146 = vadd.f32 %v1105, %v1142
    %s1147 = sld [smem:[#allocation7 + $0x1b]]
    %v1148 = vstv %s1147
    %v1149 = vmul.f32 %v167, %v1148
    %v1150 = vmul.f32 %v168, %v1148
    %v1151 = vmul.f32 %v169, %v1148
    %v1155 = vrot.slane %v1149, 2
    %v1156 = vrot.slane %v1150, 2
    %v1157 = vsel %vm131, %v1155, %v1156
    %v1158 = vrot.slane %v1151, 2
    %v1159 = vsel %vm131, %v1156, %v1158
    %1160 = vrot.lane.b32.xlu0 %v1157, 122
    %v1161 = vpop.permute.xlu0 %1160
    %1162 = vrot.lane.b32.xlu0 %v1159, 122
    %v1163 = vpop.permute.xlu0 %1162
    %1164 = vrot.lane.b32.xlu0 %v1158, 122
    %v1165 = vpop.permute.xlu0 %1164
    %v1169 = vadd.f32 %v1123, %v1161
    %v1170 = vadd.f32 %v1124, %v1163
    %v1171 = vadd.f32 %v1125, %v1165
    %s1172 = sld [smem:[#allocation7 + $0x22]]
    %v1173 = vstv %s1172
    %v1174 = vmul.f32 %v167, %v1173
    %v1175 = vmul.f32 %v168, %v1173
    %v1176 = vmul.f32 %v169, %v1173
    %v1180 = vrot.slane %v1174, 4
    %v1181 = vrot.slane %v1175, 4
    %v1182 = vsel %vm47, %v1180, %v1181
    %v1183 = vrot.slane %v1176, 4
    %v1184 = vsel %vm47, %v1181, %v1183
    %1185 = vrot.lane.b32.xlu0 %v1182, 122
    %v1186 = vpop.permute.xlu0 %1185
    %1187 = vrot.lane.b32.xlu0 %v1184, 122
    %v1188 = vpop.permute.xlu0 %1187
    %v1191 = vadd.f32 %v1145, %v1186
    %v1192 = vadd.f32 %v1146, %v1188
    %s1193 = sld [smem:[#allocation7 + $0x29]]
    %v1194 = vstv %s1193
    %v1195 = vmul.f32 %v167, %v1194
    %v1196 = vmul.f32 %v168, %v1194
    %v1197 = vmul.f32 %v169, %v1194
    %v1201 = vrot.slane %v1195, 4
    %v1202 = vrot.slane %v1196, 4
    %v1203 = vsel %vm47, %v1201, %v1202
    %v1204 = vrot.slane %v1197, 4
    %v1205 = vsel %vm47, %v1202, %v1204
    %1206 = vrot.lane.b32.xlu0 %v1203, 122
    %v1207 = vpop.permute.xlu0 %1206
    %1208 = vrot.lane.b32.xlu0 %v1205, 122
    %v1209 = vpop.permute.xlu0 %1208
    %1210 = vrot.lane.b32.xlu0 %v1204, 122
    %v1211 = vpop.permute.xlu0 %1210
    %v1215 = vadd.f32 %v1169, %v1207
    %v1216 = vadd.f32 %v1170, %v1209
    %v1217 = vadd.f32 %v1171, %v1211
    %s1218 = sld [smem:[#allocation7 + $0x30]]
    %v1219 = vstv %s1218
    %v1220 = vmul.f32 %v167, %v1219
    %v1221 = vmul.f32 %v168, %v1219
    %v1222 = vmul.f32 %v169, %v1219
    %v1226 = vrot.slane %v1220, 6
    %v1227 = vrot.slane %v1221, 6
    %v1228 = vsel %vm124, %v1226, %v1227
    %v1229 = vrot.slane %v1222, 6
    %v1230 = vsel %vm124, %v1227, %v1229
    %1231 = vrot.lane.b32.xlu0 %v1228, 122
    %v1232 = vpop.permute.xlu0 %1231
    %1233 = vrot.lane.b32.xlu0 %v1230, 122
    %v1234 = vpop.permute.xlu0 %1233
    %v1237 = vadd.f32 %v1191, %v1232
    %v1238 = vadd.f32 %v1192, %v1234
    %s1239 = sld [smem:[#allocation7 + $0x31]]
    %v1240 = vstv %s1239
    %v1241 = vmul.f32 %v251, %v1240
    %v1242 = vmul.f32 %v252, %v1240
    %v1243 = vadd.f32 %v1241, 0.0
    %v1244 = vadd.f32 %v1242, 0.0
    %s1245 = sld [smem:[#allocation7 + $0x38]]
    %v1246 = vstv %s1245
    %v1247 = vmul.f32 %v251, %v1246
    %v1248 = vmul.f32 %v252, %v1246
    %v1249 = vmul.f32 %v253, %v1246
    %v1250 = vadd.f32 %v1247, 0.0
    %v1251 = vadd.f32 %v1248, 0.0
    %v1252 = vadd.f32 %v1249, 0.0
    %s1253 = sld [smem:[#allocation7 + $0x3f]]
    %v1254 = vstv %s1253
    %v1255 = vmul.f32 %v251, %v1254
    %v1256 = vmul.f32 %v252, %v1254
    %v1257 = vmul.f32 %v253, %v1254
    %v1261 = vrot.slane %v1255, 2
    %v1262 = vrot.slane %v1256, 2
    %v1263 = vsel %vm131, %v1261, %v1262
    %v1264 = vrot.slane %v1257, 2
    %v1265 = vsel %vm131, %v1262, %v1264
    %v1268 = vadd.f32 %v1243, %v1263
    %v1269 = vadd.f32 %v1244, %v1265
    %s1270 = sld [smem:[#allocation7 + $0x46]]
    %v1271 = vstv %s1270
    %v1272 = vmul.f32 %v251, %v1271
    %v1273 = vmul.f32 %v252, %v1271
    %v1274 = vmul.f32 %v253, %v1271
    %v1278 = vrot.slane %v1272, 2
    %v1279 = vrot.slane %v1273, 2
    %v1280 = vsel %vm131, %v1278, %v1279
    %v1281 = vrot.slane %v1274, 2
    %v1282 = vsel %vm131, %v1279, %v1281
    %v1286 = vadd.f32 %v1250, %v1280
    %v1287 = vadd.f32 %v1251, %v1282
    %v1288 = vadd.f32 %v1252, %v1281
    %s1289 = sld [smem:[#allocation7 + $0x4d]]
    %v1290 = vstv %s1289
    %v1291 = vmul.f32 %v251, %v1290
    %v1292 = vmul.f32 %v252, %v1290
    %v1293 = vmul.f32 %v253, %v1290
    %v1297 = vrot.slane %v1291, 4
    %v1298 = vrot.slane %v1292, 4
    %v1299 = vsel %vm47, %v1297, %v1298
    %v1300 = vrot.slane %v1293, 4
    %v1301 = vsel %vm47, %v1298, %v1300
    %v1304 = vadd.f32 %v1268, %v1299
    %v1305 = vadd.f32 %v1269, %v1301
    %s1306 = sld [smem:[#allocation7 + $0x54]]
    %v1307 = vstv %s1306
    %v1308 = vmul.f32 %v251, %v1307
    %v1309 = vmul.f32 %v252, %v1307
    %v1310 = vmul.f32 %v253, %v1307
    %v1314 = vrot.slane %v1308, 4
    %v1315 = vrot.slane %v1309, 4
    %v1316 = vsel %vm47, %v1314, %v1315
    %v1317 = vrot.slane %v1310, 4
    %v1318 = vsel %vm47, %v1315, %v1317
    %v1322 = vadd.f32 %v1286, %v1316
    %v1323 = vadd.f32 %v1287, %v1318
    %v1324 = vadd.f32 %v1288, %v1317
    %s1325 = sld [smem:[#allocation7 + $0x5b]]
    %v1326 = vstv %s1325
    %v1327 = vmul.f32 %v251, %v1326
    %v1328 = vmul.f32 %v252, %v1326
    %v1329 = vmul.f32 %v253, %v1326
    %v1333 = vrot.slane %v1327, 6
    %v1334 = vrot.slane %v1328, 6
    %v1335 = vsel %vm124, %v1333, %v1334
    %v1336 = vrot.slane %v1329, 6
    %v1337 = vsel %vm124, %v1334, %v1336
    %v1340 = vadd.f32 %v1304, %v1335
    %v1341 = vadd.f32 %v1305, %v1337
    %s1342 = sld [smem:[#allocation7 + $0x32]]
    %v1343 = vstv %s1342
    %v1344 = vmul.f32 %v251, %v1343
    %v1345 = vmul.f32 %v252, %v1343
    %1348 = vrot.lane.b32.xlu0 %v1344, 127
    %v1349 = vpop.permute.xlu0 %1348
    %1350 = vrot.lane.b32.xlu0 %v1345, 127
    %v1351 = vpop.permute.xlu0 %1350
    %v1354 = vadd.f32 %v1340, %v1349
    %v1355 = vadd.f32 %v1341, %v1351
    %s1356 = sld [smem:[#allocation7 + $0x39]]
    %v1357 = vstv %s1356
    %v1358 = vmul.f32 %v251, %v1357
    %v1359 = vmul.f32 %v252, %v1357
    %v1360 = vmul.f32 %v253, %v1357
    %1364 = vrot.lane.b32.xlu0 %v1358, 127
    %v1365 = vpop.permute.xlu0 %1364
    %1366 = vrot.lane.b32.xlu0 %v1359, 127
    %v1367 = vpop.permute.xlu0 %1366
    %1368 = vrot.lane.b32.xlu0 %v1360, 127
    %v1369 = vpop.permute.xlu0 %1368
    %v1373 = vadd.f32 %v1322, %v1365
    %v1374 = vadd.f32 %v1323, %v1367
    %v1375 = vadd.f32 %v1324, %v1369
    %s1376 = sld [smem:[#allocation7 + $0x40]]
    %v1377 = vstv %s1376
    %v1378 = vmul.f32 %v251, %v1377
    %v1379 = vmul.f32 %v252, %v1377
    %v1380 = vmul.f32 %v253, %v1377
    %v1384 = vrot.slane %v1378, 2
    %v1385 = vrot.slane %v1379, 2
    %v1386 = vsel %vm131, %v1384, %v1385
    %v1387 = vrot.slane %v1380, 2
    %v1388 = vsel %vm131, %v1385, %v1387
    %1389 = vrot.lane.b32.xlu0 %v1386, 127
    %v1390 = vpop.permute.xlu0 %1389
    %1391 = vrot.lane.b32.xlu0 %v1388, 127
    %v1392 = vpop.permute.xlu0 %1391
    %v1395 = vadd.f32 %v1354, %v1390
    %v1396 = vadd.f32 %v1355, %v1392
    %s1397 = sld [smem:[#allocation7 + $0x47]]
    %v1398 = vstv %s1397
    %v1399 = vmul.f32 %v251, %v1398
    %v1400 = vmul.f32 %v252, %v1398
    %v1401 = vmul.f32 %v253, %v1398
    %v1405 = vrot.slane %v1399, 2
    %v1406 = vrot.slane %v1400, 2
    %v1407 = vsel %vm131, %v1405, %v1406
    %v1408 = vrot.slane %v1401, 2
    %v1409 = vsel %vm131, %v1406, %v1408
    %1410 = vrot.lane.b32.xlu0 %v1407, 127
    %v1411 = vpop.permute.xlu0 %1410
    %1412 = vrot.lane.b32.xlu0 %v1409, 127
    %v1413 = vpop.permute.xlu0 %1412
    %1414 = vrot.lane.b32.xlu0 %v1408, 127
    %v1415 = vpop.permute.xlu0 %1414
    %v1419 = vadd.f32 %v1373, %v1411
    %v1420 = vadd.f32 %v1374, %v1413
    %v1421 = vadd.f32 %v1375, %v1415
    %s1422 = sld [smem:[#allocation7 + $0x4e]]
    %v1423 = vstv %s1422
    %v1424 = vmul.f32 %v251, %v1423
    %v1425 = vmul.f32 %v252, %v1423
    %v1426 = vmul.f32 %v253, %v1423
    %v1430 = vrot.slane %v1424, 4
    %v1431 = vrot.slane %v1425, 4
    %v1432 = vsel %vm47, %v1430, %v1431
    %v1433 = vrot.slane %v1426, 4
    %v1434 = vsel %vm47, %v1431, %v1433
    %1435 = vrot.lane.b32.xlu0 %v1432, 127
    %v1436 = vpop.permute.xlu0 %1435
    %1437 = vrot.lane.b32.xlu0 %v1434, 127
    %v1438 = vpop.permute.xlu0 %1437
    %v1441 = vadd.f32 %v1395, %v1436
    %v1442 = vadd.f32 %v1396, %v1438
    %s1443 = sld [smem:[#allocation7 + $0x55]]
    %v1444 = vstv %s1443
    %v1445 = vmul.f32 %v251, %v1444
    %v1446 = vmul.f32 %v252, %v1444
    %v1447 = vmul.f32 %v253, %v1444
    %v1451 = vrot.slane %v1445, 4
    %v1452 = vrot.slane %v1446, 4
    %v1453 = vsel %vm47, %v1451, %v1452
    %v1454 = vrot.slane %v1447, 4
    %v1455 = vsel %vm47, %v1452, %v1454
    %1456 = vrot.lane.b32.xlu0 %v1453, 127
    %v1457 = vpop.permute.xlu0 %1456
    %1458 = vrot.lane.b32.xlu0 %v1455, 127
    %v1459 = vpop.permute.xlu0 %1458
    %1460 = vrot.lane.b32.xlu0 %v1454, 127
    %v1461 = vpop.permute.xlu0 %1460
    %v1465 = vadd.f32 %v1419, %v1457
    %v1466 = vadd.f32 %v1420, %v1459
    %v1467 = vadd.f32 %v1421, %v1461
    %s1468 = sld [smem:[#allocation7 + $0x5c]]
    %v1469 = vstv %s1468
    %v1470 = vmul.f32 %v251, %v1469
    %v1471 = vmul.f32 %v252, %v1469
    %v1472 = vmul.f32 %v253, %v1469
    %v1476 = vrot.slane %v1470, 6
    %v1477 = vrot.slane %v1471, 6
    %v1478 = vsel %vm124, %v1476, %v1477
    %v1479 = vrot.slane %v1472, 6
    %v1480 = vsel %vm124, %v1477, %v1479
    %1481 = vrot.lane.b32.xlu0 %v1478, 127
    %v1482 = vpop.permute.xlu0 %1481
    %1483 = vrot.lane.b32.xlu0 %v1480, 127
    %v1484 = vpop.permute.xlu0 %1483
    %v1487 = vadd.f32 %v1441, %v1482
    %v1488 = vadd.f32 %v1442, %v1484
    %s1489 = sld [smem:[#allocation7 + $0x33]]
    %v1490 = vstv %s1489
    %v1491 = vmul.f32 %v251, %v1490
    %v1492 = vmul.f32 %v252, %v1490
    %1495 = vrot.lane.b32.xlu0 %v1491, 126
    %v1496 = vpop.permute.xlu0 %1495
    %1497 = vrot.lane.b32.xlu0 %v1492, 126
    %v1498 = vpop.permute.xlu0 %1497
    %v1501 = vadd.f32 %v1487, %v1496
    %v1502 = vadd.f32 %v1488, %v1498
    %s1503 = sld [smem:[#allocation7 + $0x3a]]
    %v1504 = vstv %s1503
    %v1505 = vmul.f32 %v251, %v1504
    %v1506 = vmul.f32 %v252, %v1504
    %v1507 = vmul.f32 %v253, %v1504
    %1511 = vrot.lane.b32.xlu0 %v1505, 126
    %v1512 = vpop.permute.xlu0 %1511
    %1513 = vrot.lane.b32.xlu0 %v1506, 126
    %v1514 = vpop.permute.xlu0 %1513
    %1515 = vrot.lane.b32.xlu0 %v1507, 126
    %v1516 = vpop.permute.xlu0 %1515
    %v1520 = vadd.f32 %v1465, %v1512
    %v1521 = vadd.f32 %v1466, %v1514
    %v1522 = vadd.f32 %v1467, %v1516
    %s1523 = sld [smem:[#allocation7 + $0x41]]
    %v1524 = vstv %s1523
    %v1525 = vmul.f32 %v251, %v1524
    %v1526 = vmul.f32 %v252, %v1524
    %v1527 = vmul.f32 %v253, %v1524
    %v1531 = vrot.slane %v1525, 2
    %v1532 = vrot.slane %v1526, 2
    %v1533 = vsel %vm131, %v1531, %v1532
    %v1534 = vrot.slane %v1527, 2
    %v1535 = vsel %vm131, %v1532, %v1534
    %1536 = vrot.lane.b32.xlu0 %v1533, 126
    %v1537 = vpop.permute.xlu0 %1536
    %1538 = vrot.lane.b32.xlu0 %v1535, 126
    %v1539 = vpop.permute.xlu0 %1538
    %v1542 = vadd.f32 %v1501, %v1537
    %v1543 = vadd.f32 %v1502, %v1539
    %s1544 = sld [smem:[#allocation7 + $0x48]]
    %v1545 = vstv %s1544
    %v1546 = vmul.f32 %v251, %v1545
    %v1547 = vmul.f32 %v252, %v1545
    %v1548 = vmul.f32 %v253, %v1545
    %v1552 = vrot.slane %v1546, 2
    %v1553 = vrot.slane %v1547, 2
    %v1554 = vsel %vm131, %v1552, %v1553
    %v1555 = vrot.slane %v1548, 2
    %v1556 = vsel %vm131, %v1553, %v1555
    %1557 = vrot.lane.b32.xlu0 %v1554, 126
    %v1558 = vpop.permute.xlu0 %1557
    %1559 = vrot.lane.b32.xlu0 %v1556, 126
    %v1560 = vpop.permute.xlu0 %1559
    %1561 = vrot.lane.b32.xlu0 %v1555, 126
    %v1562 = vpop.permute.xlu0 %1561
    %v1566 = vadd.f32 %v1520, %v1558
    %v1567 = vadd.f32 %v1521, %v1560
    %v1568 = vadd.f32 %v1522, %v1562
    %s1569 = sld [smem:[#allocation7 + $0x4f]]
    %v1570 = vstv %s1569
    %v1571 = vmul.f32 %v251, %v1570
    %v1572 = vmul.f32 %v252, %v1570
    %v1573 = vmul.f32 %v253, %v1570
    %v1577 = vrot.slane %v1571, 4
    %v1578 = vrot.slane %v1572, 4
    %v1579 = vsel %vm47, %v1577, %v1578
    %v1580 = vrot.slane %v1573, 4
    %v1581 = vsel %vm47, %v1578, %v1580
    %1582 = vrot.lane.b32.xlu0 %v1579, 126
    %v1583 = vpop.permute.xlu0 %1582
    %1584 = vrot.lane.b32.xlu0 %v1581, 126
    %v1585 = vpop.permute.xlu0 %1584
    %v1588 = vadd.f32 %v1542, %v1583
    %v1589 = vadd.f32 %v1543, %v1585
    %s1590 = sld [smem:[#allocation7 + $0x56]]
    %v1591 = vstv %s1590
    %v1592 = vmul.f32 %v251, %v1591
    %v1593 = vmul.f32 %v252, %v1591
    %v1594 = vmul.f32 %v253, %v1591
    %v1598 = vrot.slane %v1592, 4
    %v1599 = vrot.slane %v1593, 4
    %v1600 = vsel %vm47, %v1598, %v1599
    %v1601 = vrot.slane %v1594, 4
    %v1602 = vsel %vm47, %v1599, %v1601
    %1603 = vrot.lane.b32.xlu0 %v1600, 126
    %v1604 = vpop.permute.xlu0 %1603
    %1605 = vrot.lane.b32.xlu0 %v1602, 126
    %v1606 = vpop.permute.xlu0 %1605
    %1607 = vrot.lane.b32.xlu0 %v1601, 126
    %v1608 = vpop.permute.xlu0 %1607
    %v1612 = vadd.f32 %v1566, %v1604
    %v1613 = vadd.f32 %v1567, %v1606
    %v1614 = vadd.f32 %v1568, %v1608
    %s1615 = sld [smem:[#allocation7 + $0x5d]]
    %v1616 = vstv %s1615
    %v1617 = vmul.f32 %v251, %v1616
    %v1618 = vmul.f32 %v252, %v1616
    %v1619 = vmul.f32 %v253, %v1616
    %v1623 = vrot.slane %v1617, 6
    %v1624 = vrot.slane %v1618, 6
    %v1625 = vsel %vm124, %v1623, %v1624
    %v1626 = vrot.slane %v1619, 6
    %v1627 = vsel %vm124, %v1624, %v1626
    %1628 = vrot.lane.b32.xlu0 %v1625, 126
    %v1629 = vpop.permute.xlu0 %1628
    %1630 = vrot.lane.b32.xlu0 %v1627, 126
    %v1631 = vpop.permute.xlu0 %1630
    %v1634 = vadd.f32 %v1588, %v1629
    %v1635 = vadd.f32 %v1589, %v1631
    %s1636 = sld [smem:[#allocation7 + $0x34]]
    %v1637 = vstv %s1636
    %v1638 = vmul.f32 %v251, %v1637
    %v1639 = vmul.f32 %v252, %v1637
    %1642 = vrot.lane.b32.xlu0 %v1638, 125
    %v1643 = vpop.permute.xlu0 %1642
    %1644 = vrot.lane.b32.xlu0 %v1639, 125
    %v1645 = vpop.permute.xlu0 %1644
    %v1648 = vadd.f32 %v1634, %v1643
    %v1649 = vadd.f32 %v1635, %v1645
    %s1650 = sld [smem:[#allocation7 + $0x3b]]
    %v1651 = vstv %s1650
    %v1652 = vmul.f32 %v251, %v1651
    %v1653 = vmul.f32 %v252, %v1651
    %v1654 = vmul.f32 %v253, %v1651
    %1658 = vrot.lane.b32.xlu0 %v1652, 125
    %v1659 = vpop.permute.xlu0 %1658
    %1660 = vrot.lane.b32.xlu0 %v1653, 125
    %v1661 = vpop.permute.xlu0 %1660
    %1662 = vrot.lane.b32.xlu0 %v1654, 125
    %v1663 = vpop.permute.xlu0 %1662
    %v1667 = vadd.f32 %v1612, %v1659
    %v1668 = vadd.f32 %v1613, %v1661
    %v1669 = vadd.f32 %v1614, %v1663
    %s1670 = sld [smem:[#allocation7 + $0x42]]
    %v1671 = vstv %s1670
    %v1672 = vmul.f32 %v251, %v1671
    %v1673 = vmul.f32 %v252, %v1671
    %v1674 = vmul.f32 %v253, %v1671
    %v1678 = vrot.slane %v1672, 2
    %v1679 = vrot.slane %v1673, 2
    %v1680 = vsel %vm131, %v1678, %v1679
    %v1681 = vrot.slane %v1674, 2
    %v1682 = vsel %vm131, %v1679, %v1681
    %1683 = vrot.lane.b32.xlu0 %v1680, 125
    %v1684 = vpop.permute.xlu0 %1683
    %1685 = vrot.lane.b32.xlu0 %v1682, 125
    %v1686 = vpop.permute.xlu0 %1685
    %v1689 = vadd.f32 %v1648, %v1684
    %v1690 = vadd.f32 %v1649, %v1686
    %s1691 = sld [smem:[#allocation7 + $0x49]]
    %v1692 = vstv %s1691
    %v1693 = vmul.f32 %v251, %v1692
    %v1694 = vmul.f32 %v252, %v1692
    %v1695 = vmul.f32 %v253, %v1692
    %v1699 = vrot.slane %v1693, 2
    %v1700 = vrot.slane %v1694, 2
    %v1701 = vsel %vm131, %v1699, %v1700
    %v1702 = vrot.slane %v1695, 2
    %v1703 = vsel %vm131, %v1700, %v1702
    %1704 = vrot.lane.b32.xlu0 %v1701, 125
    %v1705 = vpop.permute.xlu0 %1704
    %1706 = vrot.lane.b32.xlu0 %v1703, 125
    %v1707 = vpop.permute.xlu0 %1706
    %1708 = vrot.lane.b32.xlu0 %v1702, 125
    %v1709 = vpop.permute.xlu0 %1708
    %v1713 = vadd.f32 %v1667, %v1705
    %v1714 = vadd.f32 %v1668, %v1707
    %v1715 = vadd.f32 %v1669, %v1709
    %s1716 = sld [smem:[#allocation7 + $0x50]]
    %v1717 = vstv %s1716
    %v1718 = vmul.f32 %v251, %v1717
    %v1719 = vmul.f32 %v252, %v1717
    %v1720 = vmul.f32 %v253, %v1717
    %v1724 = vrot.slane %v1718, 4
    %v1725 = vrot.slane %v1719, 4
    %v1726 = vsel %vm47, %v1724, %v1725
    %v1727 = vrot.slane %v1720, 4
    %v1728 = vsel %vm47, %v1725, %v1727
    %1729 = vrot.lane.b32.xlu0 %v1726, 125
    %v1730 = vpop.permute.xlu0 %1729
    %1731 = vrot.lane.b32.xlu0 %v1728, 125
    %v1732 = vpop.permute.xlu0 %1731
    %v1735 = vadd.f32 %v1689, %v1730
    %v1736 = vadd.f32 %v1690, %v1732
    %s1737 = sld [smem:[#allocation7 + $0x57]]
    %v1738 = vstv %s1737
    %v1739 = vmul.f32 %v251, %v1738
    %v1740 = vmul.f32 %v252, %v1738
    %v1741 = vmul.f32 %v253, %v1738
    %v1745 = vrot.slane %v1739, 4
    %v1746 = vrot.slane %v1740, 4
    %v1747 = vsel %vm47, %v1745, %v1746
    %v1748 = vrot.slane %v1741, 4
    %v1749 = vsel %vm47, %v1746, %v1748
    %1750 = vrot.lane.b32.xlu0 %v1747, 125
    %v1751 = vpop.permute.xlu0 %1750
    %1752 = vrot.lane.b32.xlu0 %v1749, 125
    %v1753 = vpop.permute.xlu0 %1752
    %1754 = vrot.lane.b32.xlu0 %v1748, 125
    %v1755 = vpop.permute.xlu0 %1754
    %v1759 = vadd.f32 %v1713, %v1751
    %v1760 = vadd.f32 %v1714, %v1753
    %v1761 = vadd.f32 %v1715, %v1755
    %s1762 = sld [smem:[#allocation7 + $0x5e]]
    %v1763 = vstv %s1762
    %v1764 = vmul.f32 %v251, %v1763
    %v1765 = vmul.f32 %v252, %v1763
    %v1766 = vmul.f32 %v253, %v1763
    %v1770 = vrot.slane %v1764, 6
    %v1771 = vrot.slane %v1765, 6
    %v1772 = vsel %vm124, %v1770, %v1771
    %v1773 = vrot.slane %v1766, 6
    %v1774 = vsel %vm124, %v1771, %v1773
    %1775 = vrot.lane.b32.xlu0 %v1772, 125
    %v1776 = vpop.permute.xlu0 %1775
    %1777 = vrot.lane.b32.xlu0 %v1774, 125
    %v1778 = vpop.permute.xlu0 %1777
    %v1781 = vadd.f32 %v1735, %v1776
    %v1782 = vadd.f32 %v1736, %v1778
    %s1783 = sld [smem:[#allocation7 + $0x35]]
    %v1784 = vstv %s1783
    %v1785 = vmul.f32 %v251, %v1784
    %v1786 = vmul.f32 %v252, %v1784
    %1789 = vrot.lane.b32.xlu0 %v1785, 124
    %v1790 = vpop.permute.xlu0 %1789
    %1791 = vrot.lane.b32.xlu0 %v1786, 124
    %v1792 = vpop.permute.xlu0 %1791
    %v1795 = vadd.f32 %v1781, %v1790
    %v1796 = vadd.f32 %v1782, %v1792
    %s1797 = sld [smem:[#allocation7 + $0x3c]]
    %v1798 = vstv %s1797
    %v1799 = vmul.f32 %v251, %v1798
    %v1800 = vmul.f32 %v252, %v1798
    %v1801 = vmul.f32 %v253, %v1798
    %1805 = vrot.lane.b32.xlu0 %v1799, 124
    %v1806 = vpop.permute.xlu0 %1805
    %1807 = vrot.lane.b32.xlu0 %v1800, 124
    %v1808 = vpop.permute.xlu0 %1807
    %1809 = vrot.lane.b32.xlu0 %v1801, 124
    %v1810 = vpop.permute.xlu0 %1809
    %v1814 = vadd.f32 %v1759, %v1806
    %v1815 = vadd.f32 %v1760, %v1808
    %v1816 = vadd.f32 %v1761, %v1810
    %s1817 = sld [smem:[#allocation7 + $0x43]]
    %v1818 = vstv %s1817
    %v1819 = vmul.f32 %v251, %v1818
    %v1820 = vmul.f32 %v252, %v1818
    %v1821 = vmul.f32 %v253, %v1818
    %v1825 = vrot.slane %v1819, 2
    %v1826 = vrot.slane %v1820, 2
    %v1827 = vsel %vm131, %v1825, %v1826
    %v1828 = vrot.slane %v1821, 2
    %v1829 = vsel %vm131, %v1826, %v1828
    %1830 = vrot.lane.b32.xlu0 %v1827, 124
    %v1831 = vpop.permute.xlu0 %1830
    %1832 = vrot.lane.b32.xlu0 %v1829, 124
    %v1833 = vpop.permute.xlu0 %1832
    %v1836 = vadd.f32 %v1795, %v1831
    %v1837 = vadd.f32 %v1796, %v1833
    %s1838 = sld [smem:[#allocation7 + $0x4a]]
    %v1839 = vstv %s1838
    %v1840 = vmul.f32 %v251, %v1839
    %v1841 = vmul.f32 %v252, %v1839
    %v1842 = vmul.f32 %v253, %v1839
    %v1846 = vrot.slane %v1840, 2
    %v1847 = vrot.slane %v1841, 2
    %v1848 = vsel %vm131, %v1846, %v1847
    %v1849 = vrot.slane %v1842, 2
    %v1850 = vsel %vm131, %v1847, %v1849
    %1851 = vrot.lane.b32.xlu0 %v1848, 124
    %v1852 = vpop.permute.xlu0 %1851
    %1853 = vrot.lane.b32.xlu0 %v1850, 124
    %v1854 = vpop.permute.xlu0 %1853
    %1855 = vrot.lane.b32.xlu0 %v1849, 124
    %v1856 = vpop.permute.xlu0 %1855
    %v1860 = vadd.f32 %v1814, %v1852
    %v1861 = vadd.f32 %v1815, %v1854
    %v1862 = vadd.f32 %v1816, %v1856
    %s1863 = sld [smem:[#allocation7 + $0x51]]
    %v1864 = vstv %s1863
    %v1865 = vmul.f32 %v251, %v1864
    %v1866 = vmul.f32 %v252, %v1864
    %v1867 = vmul.f32 %v253, %v1864
    %v1871 = vrot.slane %v1865, 4
    %v1872 = vrot.slane %v1866, 4
    %v1873 = vsel %vm47, %v1871, %v1872
    %v1874 = vrot.slane %v1867, 4
    %v1875 = vsel %vm47, %v1872, %v1874
    %1876 = vrot.lane.b32.xlu0 %v1873, 124
    %v1877 = vpop.permute.xlu0 %1876
    %1878 = vrot.lane.b32.xlu0 %v1875, 124
    %v1879 = vpop.permute.xlu0 %1878
    %v1882 = vadd.f32 %v1836, %v1877
    %v1883 = vadd.f32 %v1837, %v1879
    %s1884 = sld [smem:[#allocation7 + $0x58]]
    %v1885 = vstv %s1884
    %v1886 = vmul.f32 %v251, %v1885
    %v1887 = vmul.f32 %v252, %v1885
    %v1888 = vmul.f32 %v253, %v1885
    %v1892 = vrot.slane %v1886, 4
    %v1893 = vrot.slane %v1887, 4
    %v1894 = vsel %vm47, %v1892, %v1893
    %v1895 = vrot.slane %v1888, 4
    %v1896 = vsel %vm47, %v1893, %v1895
    %1897 = vrot.lane.b32.xlu0 %v1894, 124
    %v1898 = vpop.permute.xlu0 %1897
    %1899 = vrot.lane.b32.xlu0 %v1896, 124
    %v1900 = vpop.permute.xlu0 %1899
    %1901 = vrot.lane.b32.xlu0 %v1895, 124
    %v1902 = vpop.permute.xlu0 %1901
    %v1906 = vadd.f32 %v1860, %v1898
    %v1907 = vadd.f32 %v1861, %v1900
    %v1908 = vadd.f32 %v1862, %v1902
    %s1909 = sld [smem:[#allocation7 + $0x5f]]
    %v1910 = vstv %s1909
    %v1911 = vmul.f32 %v251, %v1910
    %v1912 = vmul.f32 %v252, %v1910
    %v1913 = vmul.f32 %v253, %v1910
    %v1917 = vrot.slane %v1911, 6
    %v1918 = vrot.slane %v1912, 6
    %v1919 = vsel %vm124, %v1917, %v1918
    %v1920 = vrot.slane %v1913, 6
    %v1921 = vsel %vm124, %v1918, %v1920
    %1922 = vrot.lane.b32.xlu0 %v1919, 124
    %v1923 = vpop.permute.xlu0 %1922
    %1924 = vrot.lane.b32.xlu0 %v1921, 124
    %v1925 = vpop.permute.xlu0 %1924
    %v1928 = vadd.f32 %v1882, %v1923
    %v1929 = vadd.f32 %v1883, %v1925
    %s1930 = sld [smem:[#allocation7 + $0x36]]
    %v1931 = vstv %s1930
    %v1932 = vmul.f32 %v251, %v1931
    %v1933 = vmul.f32 %v252, %v1931
    %1936 = vrot.lane.b32.xlu0 %v1932, 123
    %v1937 = vpop.permute.xlu0 %1936
    %1938 = vrot.lane.b32.xlu0 %v1933, 123
    %v1939 = vpop.permute.xlu0 %1938
    %v1942 = vadd.f32 %v1928, %v1937
    %v1943 = vadd.f32 %v1929, %v1939
    %s1944 = sld [smem:[#allocation7 + $0x3d]]
    %v1945 = vstv %s1944
    %v1946 = vmul.f32 %v251, %v1945
    %v1947 = vmul.f32 %v252, %v1945
    %v1948 = vmul.f32 %v253, %v1945
    %1952 = vrot.lane.b32.xlu0 %v1946, 123
    %v1953 = vpop.permute.xlu0 %1952
    %1954 = vrot.lane.b32.xlu0 %v1947, 123
    %v1955 = vpop.permute.xlu0 %1954
    %1956 = vrot.lane.b32.xlu0 %v1948, 123
    %v1957 = vpop.permute.xlu0 %1956
    %v1961 = vadd.f32 %v1906, %v1953
    %v1962 = vadd.f32 %v1907, %v1955
    %v1963 = vadd.f32 %v1908, %v1957
    %s1964 = sld [smem:[#allocation7 + $0x44]]
    %v1965 = vstv %s1964
    %v1966 = vmul.f32 %v251, %v1965
    %v1967 = vmul.f32 %v252, %v1965
    %v1968 = vmul.f32 %v253, %v1965
    %v1972 = vrot.slane %v1966, 2
    %v1973 = vrot.slane %v1967, 2
    %v1974 = vsel %vm131, %v1972, %v1973
    %v1975 = vrot.slane %v1968, 2
    %v1976 = vsel %vm131, %v1973, %v1975
    %1977 = vrot.lane.b32.xlu0 %v1974, 123
    %v1978 = vpop.permute.xlu0 %1977
    %1979 = vrot.lane.b32.xlu0 %v1976, 123
    %v1980 = vpop.permute.xlu0 %1979
    %v1983 = vadd.f32 %v1942, %v1978
    %v1984 = vadd.f32 %v1943, %v1980
    %s1985 = sld [smem:[#allocation7 + $0x4b]]
    %v1986 = vstv %s1985
    %v1987 = vmul.f32 %v251, %v1986
    %v1988 = vmul.f32 %v252, %v1986
    %v1989 = vmul.f32 %v253, %v1986
    %v1993 = vrot.slane %v1987, 2
    %v1994 = vrot.slane %v1988, 2
    %v1995 = vsel %vm131, %v1993, %v1994
    %v1996 = vrot.slane %v1989, 2
    %v1997 = vsel %vm131, %v1994, %v1996
    %1998 = vrot.lane.b32.xlu0 %v1995, 123
    %v1999 = vpop.permute.xlu0 %1998
    %2000 = vrot.lane.b32.xlu0 %v1997, 123
    %v2001 = vpop.permute.xlu0 %2000
    %2002 = vrot.lane.b32.xlu0 %v1996, 123
    %v2003 = vpop.permute.xlu0 %2002
    %v2007 = vadd.f32 %v1961, %v1999
    %v2008 = vadd.f32 %v1962, %v2001
    %v2009 = vadd.f32 %v1963, %v2003
    %s2010 = sld [smem:[#allocation7 + $0x52]]
    %v2011 = vstv %s2010
    %v2012 = vmul.f32 %v251, %v2011
    %v2013 = vmul.f32 %v252, %v2011
    %v2014 = vmul.f32 %v253, %v2011
    %v2018 = vrot.slane %v2012, 4
    %v2019 = vrot.slane %v2013, 4
    %v2020 = vsel %vm47, %v2018, %v2019
    %v2021 = vrot.slane %v2014, 4
    %v2022 = vsel %vm47, %v2019, %v2021
    %2023 = vrot.lane.b32.xlu0 %v2020, 123
    %v2024 = vpop.permute.xlu0 %2023
    %2025 = vrot.lane.b32.xlu0 %v2022, 123
    %v2026 = vpop.permute.xlu0 %2025
    %v2029 = vadd.f32 %v1983, %v2024
    %v2030 = vadd.f32 %v1984, %v2026
    %s2031 = sld [smem:[#allocation7 + $0x59]]
    %v2032 = vstv %s2031
    %v2033 = vmul.f32 %v251, %v2032
    %v2034 = vmul.f32 %v252, %v2032
    %v2035 = vmul.f32 %v253, %v2032
    %v2039 = vrot.slane %v2033, 4
    %v2040 = vrot.slane %v2034, 4
    %v2041 = vsel %vm47, %v2039, %v2040
    %v2042 = vrot.slane %v2035, 4
    %v2043 = vsel %vm47, %v2040, %v2042
    %2044 = vrot.lane.b32.xlu0 %v2041, 123
    %v2045 = vpop.permute.xlu0 %2044
    %2046 = vrot.lane.b32.xlu0 %v2043, 123
    %v2047 = vpop.permute.xlu0 %2046
    %2048 = vrot.lane.b32.xlu0 %v2042, 123
    %v2049 = vpop.permute.xlu0 %2048
    %v2053 = vadd.f32 %v2007, %v2045
    %v2054 = vadd.f32 %v2008, %v2047
    %v2055 = vadd.f32 %v2009, %v2049
    %s2056 = sld [smem:[#allocation7 + $0x60]]
    %v2057 = vstv %s2056
    %v2058 = vmul.f32 %v251, %v2057
    %v2059 = vmul.f32 %v252, %v2057
    %v2060 = vmul.f32 %v253, %v2057
    %v2064 = vrot.slane %v2058, 6
    %v2065 = vrot.slane %v2059, 6
    %v2066 = vsel %vm124, %v2064, %v2065
    %v2067 = vrot.slane %v2060, 6
    %v2068 = vsel %vm124, %v2065, %v2067
    %2069 = vrot.lane.b32.xlu0 %v2066, 123
    %v2070 = vpop.permute.xlu0 %2069
    %2071 = vrot.lane.b32.xlu0 %v2068, 123
    %v2072 = vpop.permute.xlu0 %2071
    %v2075 = vadd.f32 %v2029, %v2070
    %v2076 = vadd.f32 %v2030, %v2072
    %s2077 = sld [smem:[#allocation7 + $0x37]]
    %v2078 = vstv %s2077
    %v2079 = vmul.f32 %v251, %v2078
    %v2080 = vmul.f32 %v252, %v2078
    %2083 = vrot.lane.b32.xlu0 %v2079, 122
    %v2084 = vpop.permute.xlu0 %2083
    %2085 = vrot.lane.b32.xlu0 %v2080, 122
    %v2086 = vpop.permute.xlu0 %2085
    %v2089 = vadd.f32 %v2075, %v2084
    %v2090 = vadd.f32 %v2076, %v2086
    %s2091 = sld [smem:[#allocation7 + $0x3e]]
    %v2092 = vstv %s2091
    %v2093 = vmul.f32 %v251, %v2092
    %v2094 = vmul.f32 %v252, %v2092
    %v2095 = vmul.f32 %v253, %v2092
    %2099 = vrot.lane.b32.xlu0 %v2093, 122
    %v2100 = vpop.permute.xlu0 %2099
    %2101 = vrot.lane.b32.xlu0 %v2094, 122
    %v2102 = vpop.permute.xlu0 %2101
    %2103 = vrot.lane.b32.xlu0 %v2095, 122
    %v2104 = vpop.permute.xlu0 %2103
    %v2108 = vadd.f32 %v2053, %v2100
    %v2109 = vadd.f32 %v2054, %v2102
    %v2110 = vadd.f32 %v2055, %v2104
    %s2111 = sld [smem:[#allocation7 + $0x45]]
    %v2112 = vstv %s2111
    %v2113 = vmul.f32 %v251, %v2112
    %v2114 = vmul.f32 %v252, %v2112
    %v2115 = vmul.f32 %v253, %v2112
    %v2119 = vrot.slane %v2113, 2
    %v2120 = vrot.slane %v2114, 2
    %v2121 = vsel %vm131, %v2119, %v2120
    %v2122 = vrot.slane %v2115, 2
    %v2123 = vsel %vm131, %v2120, %v2122
    %2124 = vrot.lane.b32.xlu0 %v2121, 122
    %v2125 = vpop.permute.xlu0 %2124
    %2126 = vrot.lane.b32.xlu0 %v2123, 122
    %v2127 = vpop.permute.xlu0 %2126
    %v2130 = vadd.f32 %v2089, %v2125
    %v2131 = vadd.f32 %v2090, %v2127
    %s2132 = sld [smem:[#allocation7 + $0x4c]]
    %v2133 = vstv %s2132
    %v2134 = vmul.f32 %v251, %v2133
    %v2135 = vmul.f32 %v252, %v2133
    %v2136 = vmul.f32 %v253, %v2133
    %v2140 = vrot.slane %v2134, 2
    %v2141 = vrot.slane %v2135, 2
    %v2142 = vsel %vm131, %v2140, %v2141
    %v2143 = vrot.slane %v2136, 2
    %v2144 = vsel %vm131, %v2141, %v2143
    %2145 = vrot.lane.b32.xlu0 %v2142, 122
    %v2146 = vpop.permute.xlu0 %2145
    %2147 = vrot.lane.b32.xlu0 %v2144, 122
    %v2148 = vpop.permute.xlu0 %2147
    %2149 = vrot.lane.b32.xlu0 %v2143, 122
    %v2150 = vpop.permute.xlu0 %2149
    %v2154 = vadd.f32 %v2108, %v2146
    %v2155 = vadd.f32 %v2109, %v2148
    %v2156 = vadd.f32 %v2110, %v2150
    %s2157 = sld [smem:[#allocation7 + $0x53]]
    %v2158 = vstv %s2157
    %v2159 = vmul.f32 %v251, %v2158
    %v2160 = vmul.f32 %v252, %v2158
    %v2161 = vmul.f32 %v253, %v2158
    %v2165 = vrot.slane %v2159, 4
    %v2166 = vrot.slane %v2160, 4
    %v2167 = vsel %vm47, %v2165, %v2166
    %v2168 = vrot.slane %v2161, 4
    %v2169 = vsel %vm47, %v2166, %v2168
    %2170 = vrot.lane.b32.xlu0 %v2167, 122
    %v2171 = vpop.permute.xlu0 %2170
    %2172 = vrot.lane.b32.xlu0 %v2169, 122
    %v2173 = vpop.permute.xlu0 %2172
    %v2176 = vadd.f32 %v2130, %v2171
    %v2177 = vadd.f32 %v2131, %v2173
    %s2178 = sld [smem:[#allocation7 + $0x5a]]
    %v2179 = vstv %s2178
    %v2180 = vmul.f32 %v251, %v2179
    %v2181 = vmul.f32 %v252, %v2179
    %v2182 = vmul.f32 %v253, %v2179
    %v2186 = vrot.slane %v2180, 4
    %v2187 = vrot.slane %v2181, 4
    %v2188 = vsel %vm47, %v2186, %v2187
    %v2189 = vrot.slane %v2182, 4
    %v2190 = vsel %vm47, %v2187, %v2189
    %2191 = vrot.lane.b32.xlu0 %v2188, 122
    %v2192 = vpop.permute.xlu0 %2191
    %2193 = vrot.lane.b32.xlu0 %v2190, 122
    %v2194 = vpop.permute.xlu0 %2193
    %2195 = vrot.lane.b32.xlu0 %v2189, 122
    %v2196 = vpop.permute.xlu0 %2195
    %v2200 = vadd.f32 %v2154, %v2192
    %v2201 = vadd.f32 %v2155, %v2194
    %v2202 = vadd.f32 %v2156, %v2196
    %s2203 = sld [smem:[#allocation7 + $0x61]]
    %v2204 = vstv %s2203
    %v2205 = vmul.f32 %v251, %v2204
    %v2206 = vmul.f32 %v252, %v2204
    %v2207 = vmul.f32 %v253, %v2204
    %v2211 = vrot.slane %v2205, 6
    %v2212 = vrot.slane %v2206, 6
    %v2213 = vsel %vm124, %v2211, %v2212
    %v2214 = vrot.slane %v2207, 6
    %v2215 = vsel %vm124, %v2212, %v2214
    %2216 = vrot.lane.b32.xlu0 %v2213, 122
    %v2217 = vpop.permute.xlu0 %2216
    %2218 = vrot.lane.b32.xlu0 %v2215, 122
    %v2219 = vpop.permute.xlu0 %2218
    %v2222 = vadd.f32 %v2176, %v2217
    %v2223 = vadd.f32 %v2177, %v2219
    %v2227 = vrot.slane %v1215, 1
    %v2228 = vrot.slane %v1216, 1
    %v2229 = vsel %vm133, %v2227, %v2228
    %v2230 = vrot.slane %v1217, 1
    %v2231 = vsel %vm133, %v2228, %v2230
    %v2234 = vadd.f32 %v1237, %v2229
    %v2235 = vadd.f32 %v1238, %v2231
    %v2239 = vrot.slane %v2200, 1
    %v2240 = vrot.slane %v2201, 1
    %v2241 = vsel %vm133, %v2239, %v2240
    %v2242 = vrot.slane %v2202, 1
    %v2243 = vsel %vm133, %v2240, %v2242
    %v2246 = vadd.f32 %v2222, %v2241
    %v2247 = vadd.f32 %v2223, %v2243
    %v2248 = vadd.f32 %v2234, %v2246
    %v2249 = vadd.f32 %v2235, %v2247
    %s2250 = sld [smem:[#allocation2]]
    %v2251 = vstv %s2250
    %v2252 = vadd.f32 %v2248, %v2251
    %v2253 = vadd.f32 %v2249, %v2251
    %v2254 = vxor.u32 %v2252, 2147483648
    %v2255 = vxor.u32 %v2253, 2147483648
    %v2256 = vmul.f32 %v2254, 1.442695
    %v2257 = vpow.pop %v2256
    %v2258 = vmul.f32 %v2255, 1.442695
    %v2259 = vpow.pop %v2258
    %v2260 = vadd.f32 %v2257, 1.0
    %v2261 = vadd.f32 %v2259, 1.0
    %v2262 = vrcp.pop %v2260
    %v2263 = vmul.f32 1.0, %v2262
    %v2264 = vrcp.pop %v2261
    %v2265 = vmul.f32 1.0, %v2264
    %v2267 = vrot.slane %v2263, 1
    %2268 = vrot.lane.b32.xlu0 %v2267, 16
    %v2269 = vpop.permute.xlu0 %2268
    %v2271 = vrot.slane %v2263, 2
    %2272 = vrot.lane.b32.xlu0 %v2271, 32
    %v2273 = vpop.permute.xlu0 %2272
    %v2275 = vrot.slane %v2263, 3
    %2276 = vrot.lane.b32.xlu0 %v2275, 48
    %v2277 = vpop.permute.xlu0 %2276
    %v2279 = vrot.slane %v2263, 4
    %2280 = vrot.lane.b32.xlu0 %v2279, 64
    %v2281 = vpop.permute.xlu0 %2280
    %v2283 = vrot.slane %v2263, 5
    %2284 = vrot.lane.b32.xlu0 %v2283, 80
    %v2285 = vpop.permute.xlu0 %2284
    %v2287 = vrot.slane %v2263, 6
    %2288 = vrot.lane.b32.xlu0 %v2287, 96
    %v2289 = vpop.permute.xlu0 %2288
    %v2291 = vrot.slane %v2263, 7
    %2292 = vrot.lane.b32.xlu0 %v2291, 112
    %v2293 = vpop.permute.xlu0 %2292
    %v2296 = vrot.slane %v2265, 1
    %2297 = vrot.lane.b32.xlu0 %v2296, 16
    %v2298 = vpop.permute.xlu0 %2297
    %v2300 = vrot.slane %v2265, 2
    %2301 = vrot.lane.b32.xlu0 %v2300, 32
    %v2302 = vpop.permute.xlu0 %2301
    %v2304 = vrot.slane %v2265, 3
    %2305 = vrot.lane.b32.xlu0 %v2304, 48
    %v2306 = vpop.permute.xlu0 %2305
    %v2308 = vrot.slane %v2265, 4
    %2309 = vrot.lane.b32.xlu0 %v2308, 64
    %v2310 = vpop.permute.xlu0 %2309
    %v2312 = vrot.slane %v2265, 5
    %2313 = vrot.lane.b32.xlu0 %v2312, 80
    %v2314 = vpop.permute.xlu0 %2313
    %v2316 = vrot.slane %v2265, 6
    %2317 = vrot.lane.b32.xlu0 %v2316, 96
    %v2318 = vpop.permute.xlu0 %2317
    %v2320 = vrot.slane %v2265, 7
    %2321 = vrot.lane.b32.xlu0 %v2320, 112
    %v2322 = vpop.permute.xlu0 %2321
    %vm2324 = vcmask 130048
    %v2325 = vsel %vm2324, %v2263, %v2269
    %vm2326 = vcmask 261120
    %v2327 = vsel %vm2326, %v2325, %v2273
    %vm2328 = vcmask 392192
    %v2329 = vsel %vm2328, %v2327, %v2277
    %vm2330 = vcmask 523264
    %v2331 = vsel %vm2330, %v2329, %v2281
    %vm2332 = vcmask 654336
    %v2333 = vsel %vm2332, %v2331, %v2285
    %vm2334 = vcmask 785408
    %v2335 = vsel %vm2334, %v2333, %v2289
    %vm2336 = vcmask 916480
    %v2337 = vsel %vm2336, %v2335, %v2293
    %v2338 = vsel %vm2324, %v2265, %v2298
    %v2339 = vsel %vm2326, %v2338, %v2302
    %v2340 = vsel %vm2328, %v2339, %v2306
    %v2341 = vsel %vm2330, %v2340, %v2310
    %v2342 = vsel %vm2332, %v2341, %v2314
    %v2343 = vsel %vm2334, %v2342, %v2318
    %v2344 = vsel %vm2336, %v2343, %v2322
    %v2345 = vlaneseq
    %v2346 = vshrl.u32 %v2345, 7
    %v2347 = vsub.s32 0, %v2346
    %v2348 = vrot.slane %v2337, %v2347
    %v2349 = vlaneseq
    %v2350 = vshrl.u32 %v2349, 7
    %v2351 = vsub.s32 0, %v2350
    %v2352 = vrot.slane %v2344, %v2351
    %v2355 = vcombine.low %v2348, %v2352
    %v2357 = vmul.f32 %v43, %v2355
    %2358 = vst [vmem:[#allocation8] sm:$0xff] %v2357
    %s2359 = scalar_lea.vmem [#allocation3], 8
    %v2360 = vld [vmem:[%s2359] sm:$0xff]
    %v2362 = vcombine.high %v2360, %v2360
    %v2364 = vsel %vm47, %v2360, -inf
    %v2365 = vrot.slane %v2364, 4
    %v2366 = vmax.f32 %v2364, %v2365
    %v2367 = vrot.slane %v2366, 2
    %v2368 = vmax.f32 %v2366, %v2367
    %v2369 = vrot.slane %v2368, 1
    %v2370 = vmax.f32 %v2368, %v2369
    %v2371 = vsel %vm47, %v2362, -inf
    %v2372 = vrot.slane %v2371, 4
    %v2373 = vmax.f32 %v2371, %v2372
    %v2374 = vrot.slane %v2373, 2
    %v2375 = vmax.f32 %v2373, %v2374
    %v2376 = vrot.slane %v2375, 1
    %v2377 = vmax.f32 %v2375, %v2376
    %v2378 = vsel %vm47, %v2360, 0.0
    %v2379 = vrot.slane %v2378, 4
    %v2380 = vadd.f32 %v2378, %v2379
    %v2381 = vrot.slane %v2380, 2
    %v2382 = vadd.f32 %v2380, %v2381
    %v2383 = vrot.slane %v2382, 1
    %v2384 = vadd.f32 %v2382, %v2383
    %v2385 = vsel %vm47, %v2362, 0.0
    %v2386 = vrot.slane %v2385, 4
    %v2387 = vadd.f32 %v2385, %v2386
    %v2388 = vrot.slane %v2387, 2
    %v2389 = vadd.f32 %v2387, %v2388
    %v2390 = vrot.slane %v2389, 1
    %v2391 = vadd.f32 %v2389, %v2390
    %v2392 = vmul.f32 %v2384, 0.25
    %v2393 = vmul.f32 %v2391, 0.25
    %2395 = vrot.lane.b32.xlu0 %v2370, 112
    %v2396 = vpop.permute.xlu0 %2395
    %2398 = vrot.lane.b32.xlu0 %v2370, 96
    %v2399 = vpop.permute.xlu0 %2398
    %2401 = vrot.lane.b32.xlu0 %v2370, 80
    %v2402 = vpop.permute.xlu0 %2401
    %2404 = vrot.lane.b32.xlu0 %v2370, 64
    %v2405 = vpop.permute.xlu0 %2404
    %2407 = vrot.lane.b32.xlu0 %v2370, 48
    %v2408 = vpop.permute.xlu0 %2407
    %2410 = vrot.lane.b32.xlu0 %v2370, 32
    %v2411 = vpop.permute.xlu0 %2410
    %2413 = vrot.lane.b32.xlu0 %v2370, 16
    %v2414 = vpop.permute.xlu0 %2413
    %2417 = vrot.lane.b32.xlu0 %v2377, 112
    %v2418 = vpop.permute.xlu0 %2417
    %2420 = vrot.lane.b32.xlu0 %v2377, 96
    %v2421 = vpop.permute.xlu0 %2420
    %2423 = vrot.lane.b32.xlu0 %v2377, 80
    %v2424 = vpop.permute.xlu0 %2423
    %2426 = vrot.lane.b32.xlu0 %v2377, 64
    %v2427 = vpop.permute.xlu0 %2426
    %2429 = vrot.lane.b32.xlu0 %v2377, 48
    %v2430 = vpop.permute.xlu0 %2429
    %2432 = vrot.lane.b32.xlu0 %v2377, 32
    %v2433 = vpop.permute.xlu0 %2432
    %2435 = vrot.lane.b32.xlu0 %v2377, 16
    %v2436 = vpop.permute.xlu0 %2435
    %v2438 = vsel %vm122, %v2370, %v2396
    %v2439 = vsel %vm124, %v2438, %v2399
    %v2440 = vsel %vm126, %v2439, %v2402
    %v2441 = vsel %vm47, %v2440, %v2405
    %v2442 = vsel %vm129, %v2441, %v2408
    %v2443 = vsel %vm131, %v2442, %v2411
    %v2444 = vsel %vm133, %v2443, %v2414
    %v2445 = vsel %vm122, %v2377, %v2418
    %v2446 = vsel %vm124, %v2445, %v2421
    %v2447 = vsel %vm126, %v2446, %v2424
    %v2448 = vsel %vm47, %v2447, %v2427
    %v2449 = vsel %vm129, %v2448, %v2430
    %v2450 = vsel %vm131, %v2449, %v2433
    %v2451 = vsel %vm133, %v2450, %v2436
    %v2454 = vrot.slane %v2444, 5
    %v2455 = vrot.slane %v2451, 5
    %v2456 = vsel %vm126, %v2454, %v2455
    %v2459 = vsel %vm126, 0.0, %v2454
    %v2460 = vsel %vm126, %v2455, 0.0
    %2463 = vrot.lane.b32.xlu0 %v2459, 3
    %v2464 = vpop.permute.xlu0 %2463
    %2465 = vrot.lane.b32.xlu0 %v2456, 3
    %v2466 = vpop.permute.xlu0 %2465
    %2467 = vrot.lane.b32.xlu0 %v2460, 3
    %v2468 = vpop.permute.xlu0 %2467
    %v2472 = vsel %vm162, 0.0, %v2464
    %v2473 = vsel %vm162, 0.0, %v2466
    %v2474 = vsel %vm162, 0.0, %v2468
    %v2475 = vsel %vm166, %v2472, 0.0
    %v2476 = vsel %vm166, %v2473, 0.0
    %v2477 = vsel %vm166, %v2474, 0.0
    %2479 = vrot.lane.b32.xlu0 %v2392, 112
    %v2480 = vpop.permute.xlu0 %2479
    %2482 = vrot.lane.b32.xlu0 %v2392, 96
    %v2483 = vpop.permute.xlu0 %2482
    %2485 = vrot.lane.b32.xlu0 %v2392, 80
    %v2486 = vpop.permute.xlu0 %2485
    %2488 = vrot.lane.b32.xlu0 %v2392, 64
    %v2489 = vpop.permute.xlu0 %2488
    %2491 = vrot.lane.b32.xlu0 %v2392, 48
    %v2492 = vpop.permute.xlu0 %2491
    %2494 = vrot.lane.b32.xlu0 %v2392, 32
    %v2495 = vpop.permute.xlu0 %2494
    %2497 = vrot.lane.b32.xlu0 %v2392, 16
    %v2498 = vpop.permute.xlu0 %2497
    %2501 = vrot.lane.b32.xlu0 %v2393, 112
    %v2502 = vpop.permute.xlu0 %2501
    %2504 = vrot.lane.b32.xlu0 %v2393, 96
    %v2505 = vpop.permute.xlu0 %2504
    %2507 = vrot.lane.b32.xlu0 %v2393, 80
    %v2508 = vpop.permute.xlu0 %2507
    %2510 = vrot.lane.b32.xlu0 %v2393, 64
    %v2511 = vpop.permute.xlu0 %2510
    %2513 = vrot.lane.b32.xlu0 %v2393, 48
    %v2514 = vpop.permute.xlu0 %2513
    %2516 = vrot.lane.b32.xlu0 %v2393, 32
    %v2517 = vpop.permute.xlu0 %2516
    %2519 = vrot.lane.b32.xlu0 %v2393, 16
    %v2520 = vpop.permute.xlu0 %2519
    %v2522 = vsel %vm122, %v2392, %v2480
    %v2523 = vsel %vm124, %v2522, %v2483
    %v2524 = vsel %vm126, %v2523, %v2486
    %v2525 = vsel %vm47, %v2524, %v2489
    %v2526 = vsel %vm129, %v2525, %v2492
    %v2527 = vsel %vm131, %v2526, %v2495
    %v2528 = vsel %vm133, %v2527, %v2498
    %v2529 = vsel %vm122, %v2393, %v2502
    %v2530 = vsel %vm124, %v2529, %v2505
    %v2531 = vsel %vm126, %v2530, %v2508
    %v2532 = vsel %vm47, %v2531, %v2511
    %v2533 = vsel %vm129, %v2532, %v2514
    %v2534 = vsel %vm131, %v2533, %v2517
    %v2535 = vsel %vm133, %v2534, %v2520
    %v2538 = vrot.slane %v2528, 5
    %v2539 = vrot.slane %v2535, 5
    %v2540 = vsel %vm126, %v2538, %v2539
    %v2543 = vsel %vm126, 0.0, %v2538
    %v2544 = vsel %vm126, %v2539, 0.0
    %2547 = vrot.lane.b32.xlu0 %v2543, 3
    %v2548 = vpop.permute.xlu0 %2547
    %2549 = vrot.lane.b32.xlu0 %v2540, 3
    %v2550 = vpop.permute.xlu0 %2549
    %2551 = vrot.lane.b32.xlu0 %v2544, 3
    %v2552 = vpop.permute.xlu0 %2551
    %v2556 = vsel %vm162, 0.0, %v2548
    %v2557 = vsel %vm162, 0.0, %v2550
    %v2558 = vsel %vm162, 0.0, %v2552
    %v2559 = vsel %vm166, %v2556, 0.0
    %v2560 = vsel %vm166, %v2557, 0.0
    %v2561 = vsel %vm166, %v2558, 0.0
    %s2562 = sld [smem:[#allocation7]]
    %v2563 = vstv %s2562
    %v2564 = vmul.f32 %v2475, %v2563
    %v2565 = vmul.f32 %v2476, %v2563
    %v2566 = vadd.f32 %v2564, 0.0
    %v2567 = vadd.f32 %v2565, 0.0
    %s2568 = sld [smem:[#allocation7 + $0x7]]
    %v2569 = vstv %s2568
    %v2570 = vmul.f32 %v2475, %v2569
    %v2571 = vmul.f32 %v2476, %v2569
    %v2572 = vmul.f32 %v2477, %v2569
    %v2573 = vadd.f32 %v2570, 0.0
    %v2574 = vadd.f32 %v2571, 0.0
    %v2575 = vadd.f32 %v2572, 0.0
    %s2576 = sld [smem:[#allocation7 + $0xe]]
    %v2577 = vstv %s2576
    %v2578 = vmul.f32 %v2475, %v2577
    %v2579 = vmul.f32 %v2476, %v2577
    %v2580 = vmul.f32 %v2477, %v2577
    %v2584 = vrot.slane %v2578, 2
    %v2585 = vrot.slane %v2579, 2
    %v2586 = vsel %vm131, %v2584, %v2585
    %v2587 = vrot.slane %v2580, 2
    %v2588 = vsel %vm131, %v2585, %v2587
    %v2591 = vadd.f32 %v2566, %v2586
    %v2592 = vadd.f32 %v2567, %v2588
    %s2593 = sld [smem:[#allocation7 + $0x15]]
    %v2594 = vstv %s2593
    %v2595 = vmul.f32 %v2475, %v2594
    %v2596 = vmul.f32 %v2476, %v2594
    %v2597 = vmul.f32 %v2477, %v2594
    %v2601 = vrot.slane %v2595, 2
    %v2602 = vrot.slane %v2596, 2
    %v2603 = vsel %vm131, %v2601, %v2602
    %v2604 = vrot.slane %v2597, 2
    %v2605 = vsel %vm131, %v2602, %v2604
    %v2609 = vadd.f32 %v2573, %v2603
    %v2610 = vadd.f32 %v2574, %v2605
    %v2611 = vadd.f32 %v2575, %v2604
    %s2612 = sld [smem:[#allocation7 + $0x1c]]
    %v2613 = vstv %s2612
    %v2614 = vmul.f32 %v2475, %v2613
    %v2615 = vmul.f32 %v2476, %v2613
    %v2616 = vmul.f32 %v2477, %v2613
    %v2620 = vrot.slane %v2614, 4
    %v2621 = vrot.slane %v2615, 4
    %v2622 = vsel %vm47, %v2620, %v2621
    %v2623 = vrot.slane %v2616, 4
    %v2624 = vsel %vm47, %v2621, %v2623
    %v2627 = vadd.f32 %v2591, %v2622
    %v2628 = vadd.f32 %v2592, %v2624
    %s2629 = sld [smem:[#allocation7 + $0x23]]
    %v2630 = vstv %s2629
    %v2631 = vmul.f32 %v2475, %v2630
    %v2632 = vmul.f32 %v2476, %v2630
    %v2633 = vmul.f32 %v2477, %v2630
    %v2637 = vrot.slane %v2631, 4
    %v2638 = vrot.slane %v2632, 4
    %v2639 = vsel %vm47, %v2637, %v2638
    %v2640 = vrot.slane %v2633, 4
    %v2641 = vsel %vm47, %v2638, %v2640
    %v2645 = vadd.f32 %v2609, %v2639
    %v2646 = vadd.f32 %v2610, %v2641
    %v2647 = vadd.f32 %v2611, %v2640
    %s2648 = sld [smem:[#allocation7 + $0x2a]]
    %v2649 = vstv %s2648
    %v2650 = vmul.f32 %v2475, %v2649
    %v2651 = vmul.f32 %v2476, %v2649
    %v2652 = vmul.f32 %v2477, %v2649
    %v2656 = vrot.slane %v2650, 6
    %v2657 = vrot.slane %v2651, 6
    %v2658 = vsel %vm124, %v2656, %v2657
    %v2659 = vrot.slane %v2652, 6
    %v2660 = vsel %vm124, %v2657, %v2659
    %v2663 = vadd.f32 %v2627, %v2658
    %v2664 = vadd.f32 %v2628, %v2660
    %s2665 = sld [smem:[#allocation7 + $0x1]]
    %v2666 = vstv %s2665
    %v2667 = vmul.f32 %v2475, %v2666
    %v2668 = vmul.f32 %v2476, %v2666
    %2671 = vrot.lane.b32.xlu0 %v2667, 127
    %v2672 = vpop.permute.xlu0 %2671
    %2673 = vrot.lane.b32.xlu0 %v2668, 127
    %v2674 = vpop.permute.xlu0 %2673
    %v2677 = vadd.f32 %v2663, %v2672
    %v2678 = vadd.f32 %v2664, %v2674
    %s2679 = sld [smem:[#allocation7 + $0x8]]
    %v2680 = vstv %s2679
    %v2681 = vmul.f32 %v2475, %v2680
    %v2682 = vmul.f32 %v2476, %v2680
    %v2683 = vmul.f32 %v2477, %v2680
    %2687 = vrot.lane.b32.xlu0 %v2681, 127
    %v2688 = vpop.permute.xlu0 %2687
    %2689 = vrot.lane.b32.xlu0 %v2682, 127
    %v2690 = vpop.permute.xlu0 %2689
    %2691 = vrot.lane.b32.xlu0 %v2683, 127
    %v2692 = vpop.permute.xlu0 %2691
    %v2696 = vadd.f32 %v2645, %v2688
    %v2697 = vadd.f32 %v2646, %v2690
    %v2698 = vadd.f32 %v2647, %v2692
    %s2699 = sld [smem:[#allocation7 + $0xf]]
    %v2700 = vstv %s2699
    %v2701 = vmul.f32 %v2475, %v2700
    %v2702 = vmul.f32 %v2476, %v2700
    %v2703 = vmul.f32 %v2477, %v2700
    %v2707 = vrot.slane %v2701, 2
    %v2708 = vrot.slane %v2702, 2
    %v2709 = vsel %vm131, %v2707, %v2708
    %v2710 = vrot.slane %v2703, 2
    %v2711 = vsel %vm131, %v2708, %v2710
    %2712 = vrot.lane.b32.xlu0 %v2709, 127
    %v2713 = vpop.permute.xlu0 %2712
    %2714 = vrot.lane.b32.xlu0 %v2711, 127
    %v2715 = vpop.permute.xlu0 %2714
    %v2718 = vadd.f32 %v2677, %v2713
    %v2719 = vadd.f32 %v2678, %v2715
    %s2720 = sld [smem:[#allocation7 + $0x16]]
    %v2721 = vstv %s2720
    %v2722 = vmul.f32 %v2475, %v2721
    %v2723 = vmul.f32 %v2476, %v2721
    %v2724 = vmul.f32 %v2477, %v2721
    %v2728 = vrot.slane %v2722, 2
    %v2729 = vrot.slane %v2723, 2
    %v2730 = vsel %vm131, %v2728, %v2729
    %v2731 = vrot.slane %v2724, 2
    %v2732 = vsel %vm131, %v2729, %v2731
    %2733 = vrot.lane.b32.xlu0 %v2730, 127
    %v2734 = vpop.permute.xlu0 %2733
    %2735 = vrot.lane.b32.xlu0 %v2732, 127
    %v2736 = vpop.permute.xlu0 %2735
    %2737 = vrot.lane.b32.xlu0 %v2731, 127
    %v2738 = vpop.permute.xlu0 %2737
    %v2742 = vadd.f32 %v2696, %v2734
    %v2743 = vadd.f32 %v2697, %v2736
    %v2744 = vadd.f32 %v2698, %v2738
    %s2745 = sld [smem:[#allocation7 + $0x1d]]
    %v2746 = vstv %s2745
    %v2747 = vmul.f32 %v2475, %v2746
    %v2748 = vmul.f32 %v2476, %v2746
    %v2749 = vmul.f32 %v2477, %v2746
    %v2753 = vrot.slane %v2747, 4
    %v2754 = vrot.slane %v2748, 4
    %v2755 = vsel %vm47, %v2753, %v2754
    %v2756 = vrot.slane %v2749, 4
    %v2757 = vsel %vm47, %v2754, %v2756
    %2758 = vrot.lane.b32.xlu0 %v2755, 127
    %v2759 = vpop.permute.xlu0 %2758
    %2760 = vrot.lane.b32.xlu0 %v2757, 127
    %v2761 = vpop.permute.xlu0 %2760
    %v2764 = vadd.f32 %v2718, %v2759
    %v2765 = vadd.f32 %v2719, %v2761
    %s2766 = sld [smem:[#allocation7 + $0x24]]
    %v2767 = vstv %s2766
    %v2768 = vmul.f32 %v2475, %v2767
    %v2769 = vmul.f32 %v2476, %v2767
    %v2770 = vmul.f32 %v2477, %v2767
    %v2774 = vrot.slane %v2768, 4
    %v2775 = vrot.slane %v2769, 4
    %v2776 = vsel %vm47, %v2774, %v2775
    %v2777 = vrot.slane %v2770, 4
    %v2778 = vsel %vm47, %v2775, %v2777
    %2779 = vrot.lane.b32.xlu0 %v2776, 127
    %v2780 = vpop.permute.xlu0 %2779
    %2781 = vrot.lane.b32.xlu0 %v2778, 127
    %v2782 = vpop.permute.xlu0 %2781
    %2783 = vrot.lane.b32.xlu0 %v2777, 127
    %v2784 = vpop.permute.xlu0 %2783
    %v2788 = vadd.f32 %v2742, %v2780
    %v2789 = vadd.f32 %v2743, %v2782
    %v2790 = vadd.f32 %v2744, %v2784
    %s2791 = sld [smem:[#allocation7 + $0x2b]]
    %v2792 = vstv %s2791
    %v2793 = vmul.f32 %v2475, %v2792
    %v2794 = vmul.f32 %v2476, %v2792
    %v2795 = vmul.f32 %v2477, %v2792
    %v2799 = vrot.slane %v2793, 6
    %v2800 = vrot.slane %v2794, 6
    %v2801 = vsel %vm124, %v2799, %v2800
    %v2802 = vrot.slane %v2795, 6
    %v2803 = vsel %vm124, %v2800, %v2802
    %2804 = vrot.lane.b32.xlu0 %v2801, 127
    %v2805 = vpop.permute.xlu0 %2804
    %2806 = vrot.lane.b32.xlu0 %v2803, 127
    %v2807 = vpop.permute.xlu0 %2806
    %v2810 = vadd.f32 %v2764, %v2805
    %v2811 = vadd.f32 %v2765, %v2807
    %s2812 = sld [smem:[#allocation7 + $0x2]]
    %v2813 = vstv %s2812
    %v2814 = vmul.f32 %v2475, %v2813
    %v2815 = vmul.f32 %v2476, %v2813
    %2818 = vrot.lane.b32.xlu0 %v2814, 126
    %v2819 = vpop.permute.xlu0 %2818
    %2820 = vrot.lane.b32.xlu0 %v2815, 126
    %v2821 = vpop.permute.xlu0 %2820
    %v2824 = vadd.f32 %v2810, %v2819
    %v2825 = vadd.f32 %v2811, %v2821
    %s2826 = sld [smem:[#allocation7 + $0x9]]
    %v2827 = vstv %s2826
    %v2828 = vmul.f32 %v2475, %v2827
    %v2829 = vmul.f32 %v2476, %v2827
    %v2830 = vmul.f32 %v2477, %v2827
    %2834 = vrot.lane.b32.xlu0 %v2828, 126
    %v2835 = vpop.permute.xlu0 %2834
    %2836 = vrot.lane.b32.xlu0 %v2829, 126
    %v2837 = vpop.permute.xlu0 %2836
    %2838 = vrot.lane.b32.xlu0 %v2830, 126
    %v2839 = vpop.permute.xlu0 %2838
    %v2843 = vadd.f32 %v2788, %v2835
    %v2844 = vadd.f32 %v2789, %v2837
    %v2845 = vadd.f32 %v2790, %v2839
    %s2846 = sld [smem:[#allocation7 + $0x10]]
    %v2847 = vstv %s2846
    %v2848 = vmul.f32 %v2475, %v2847
    %v2849 = vmul.f32 %v2476, %v2847
    %v2850 = vmul.f32 %v2477, %v2847
    %v2854 = vrot.slane %v2848, 2
    %v2855 = vrot.slane %v2849, 2
    %v2856 = vsel %vm131, %v2854, %v2855
    %v2857 = vrot.slane %v2850, 2
    %v2858 = vsel %vm131, %v2855, %v2857
    %2859 = vrot.lane.b32.xlu0 %v2856, 126
    %v2860 = vpop.permute.xlu0 %2859
    %2861 = vrot.lane.b32.xlu0 %v2858, 126
    %v2862 = vpop.permute.xlu0 %2861
    %v2865 = vadd.f32 %v2824, %v2860
    %v2866 = vadd.f32 %v2825, %v2862
    %s2867 = sld [smem:[#allocation7 + $0x17]]
    %v2868 = vstv %s2867
    %v2869 = vmul.f32 %v2475, %v2868
    %v2870 = vmul.f32 %v2476, %v2868
    %v2871 = vmul.f32 %v2477, %v2868
    %v2875 = vrot.slane %v2869, 2
    %v2876 = vrot.slane %v2870, 2
    %v2877 = vsel %vm131, %v2875, %v2876
    %v2878 = vrot.slane %v2871, 2
    %v2879 = vsel %vm131, %v2876, %v2878
    %2880 = vrot.lane.b32.xlu0 %v2877, 126
    %v2881 = vpop.permute.xlu0 %2880
    %2882 = vrot.lane.b32.xlu0 %v2879, 126
    %v2883 = vpop.permute.xlu0 %2882
    %2884 = vrot.lane.b32.xlu0 %v2878, 126
    %v2885 = vpop.permute.xlu0 %2884
    %v2889 = vadd.f32 %v2843, %v2881
    %v2890 = vadd.f32 %v2844, %v2883
    %v2891 = vadd.f32 %v2845, %v2885
    %s2892 = sld [smem:[#allocation7 + $0x1e]]
    %v2893 = vstv %s2892
    %v2894 = vmul.f32 %v2475, %v2893
    %v2895 = vmul.f32 %v2476, %v2893
    %v2896 = vmul.f32 %v2477, %v2893
    %v2900 = vrot.slane %v2894, 4
    %v2901 = vrot.slane %v2895, 4
    %v2902 = vsel %vm47, %v2900, %v2901
    %v2903 = vrot.slane %v2896, 4
    %v2904 = vsel %vm47, %v2901, %v2903
    %2905 = vrot.lane.b32.xlu0 %v2902, 126
    %v2906 = vpop.permute.xlu0 %2905
    %2907 = vrot.lane.b32.xlu0 %v2904, 126
    %v2908 = vpop.permute.xlu0 %2907
    %v2911 = vadd.f32 %v2865, %v2906
    %v2912 = vadd.f32 %v2866, %v2908
    %s2913 = sld [smem:[#allocation7 + $0x25]]
    %v2914 = vstv %s2913
    %v2915 = vmul.f32 %v2475, %v2914
    %v2916 = vmul.f32 %v2476, %v2914
    %v2917 = vmul.f32 %v2477, %v2914
    %v2921 = vrot.slane %v2915, 4
    %v2922 = vrot.slane %v2916, 4
    %v2923 = vsel %vm47, %v2921, %v2922
    %v2924 = vrot.slane %v2917, 4
    %v2925 = vsel %vm47, %v2922, %v2924
    %2926 = vrot.lane.b32.xlu0 %v2923, 126
    %v2927 = vpop.permute.xlu0 %2926
    %2928 = vrot.lane.b32.xlu0 %v2925, 126
    %v2929 = vpop.permute.xlu0 %2928
    %2930 = vrot.lane.b32.xlu0 %v2924, 126
    %v2931 = vpop.permute.xlu0 %2930
    %v2935 = vadd.f32 %v2889, %v2927
    %v2936 = vadd.f32 %v2890, %v2929
    %v2937 = vadd.f32 %v2891, %v2931
    %s2938 = sld [smem:[#allocation7 + $0x2c]]
    %v2939 = vstv %s2938
    %v2940 = vmul.f32 %v2475, %v2939
    %v2941 = vmul.f32 %v2476, %v2939
    %v2942 = vmul.f32 %v2477, %v2939
    %v2946 = vrot.slane %v2940, 6
    %v2947 = vrot.slane %v2941, 6
    %v2948 = vsel %vm124, %v2946, %v2947
    %v2949 = vrot.slane %v2942, 6
    %v2950 = vsel %vm124, %v2947, %v2949
    %2951 = vrot.lane.b32.xlu0 %v2948, 126
    %v2952 = vpop.permute.xlu0 %2951
    %2953 = vrot.lane.b32.xlu0 %v2950, 126
    %v2954 = vpop.permute.xlu0 %2953
    %v2957 = vadd.f32 %v2911, %v2952
    %v2958 = vadd.f32 %v2912, %v2954
    %s2959 = sld [smem:[#allocation7 + $0x3]]
    %v2960 = vstv %s2959
    %v2961 = vmul.f32 %v2475, %v2960
    %v2962 = vmul.f32 %v2476, %v2960
    %2965 = vrot.lane.b32.xlu0 %v2961, 125
    %v2966 = vpop.permute.xlu0 %2965
    %2967 = vrot.lane.b32.xlu0 %v2962, 125
    %v2968 = vpop.permute.xlu0 %2967
    %v2971 = vadd.f32 %v2957, %v2966
    %v2972 = vadd.f32 %v2958, %v2968
    %s2973 = sld [smem:[#allocation7 + $0xa]]
    %v2974 = vstv %s2973
    %v2975 = vmul.f32 %v2475, %v2974
    %v2976 = vmul.f32 %v2476, %v2974
    %v2977 = vmul.f32 %v2477, %v2974
    %2981 = vrot.lane.b32.xlu0 %v2975, 125
    %v2982 = vpop.permute.xlu0 %2981
    %2983 = vrot.lane.b32.xlu0 %v2976, 125
    %v2984 = vpop.permute.xlu0 %2983
    %2985 = vrot.lane.b32.xlu0 %v2977, 125
    %v2986 = vpop.permute.xlu0 %2985
    %v2990 = vadd.f32 %v2935, %v2982
    %v2991 = vadd.f32 %v2936, %v2984
    %v2992 = vadd.f32 %v2937, %v2986
    %s2993 = sld [smem:[#allocation7 + $0x11]]
    %v2994 = vstv %s2993
    %v2995 = vmul.f32 %v2475, %v2994
    %v2996 = vmul.f32 %v2476, %v2994
    %v2997 = vmul.f32 %v2477, %v2994
    %v3001 = vrot.slane %v2995, 2
    %v3002 = vrot.slane %v2996, 2
    %v3003 = vsel %vm131, %v3001, %v3002
    %v3004 = vrot.slane %v2997, 2
    %v3005 = vsel %vm131, %v3002, %v3004
    %3006 = vrot.lane.b32.xlu0 %v3003, 125
    %v3007 = vpop.permute.xlu0 %3006
    %3008 = vrot.lane.b32.xlu0 %v3005, 125
    %v3009 = vpop.permute.xlu0 %3008
    %v3012 = vadd.f32 %v2971, %v3007
    %v3013 = vadd.f32 %v2972, %v3009
    %s3014 = sld [smem:[#allocation7 + $0x18]]
    %v3015 = vstv %s3014
    %v3016 = vmul.f32 %v2475, %v3015
    %v3017 = vmul.f32 %v2476, %v3015
    %v3018 = vmul.f32 %v2477, %v3015
    %v3022 = vrot.slane %v3016, 2
    %v3023 = vrot.slane %v3017, 2
    %v3024 = vsel %vm131, %v3022, %v3023
    %v3025 = vrot.slane %v3018, 2
    %v3026 = vsel %vm131, %v3023, %v3025
    %3027 = vrot.lane.b32.xlu0 %v3024, 125
    %v3028 = vpop.permute.xlu0 %3027
    %3029 = vrot.lane.b32.xlu0 %v3026, 125
    %v3030 = vpop.permute.xlu0 %3029
    %3031 = vrot.lane.b32.xlu0 %v3025, 125
    %v3032 = vpop.permute.xlu0 %3031
    %v3036 = vadd.f32 %v2990, %v3028
    %v3037 = vadd.f32 %v2991, %v3030
    %v3038 = vadd.f32 %v2992, %v3032
    %s3039 = sld [smem:[#allocation7 + $0x1f]]
    %v3040 = vstv %s3039
    %v3041 = vmul.f32 %v2475, %v3040
    %v3042 = vmul.f32 %v2476, %v3040
    %v3043 = vmul.f32 %v2477, %v3040
    %v3047 = vrot.slane %v3041, 4
    %v3048 = vrot.slane %v3042, 4
    %v3049 = vsel %vm47, %v3047, %v3048
    %v3050 = vrot.slane %v3043, 4
    %v3051 = vsel %vm47, %v3048, %v3050
    %3052 = vrot.lane.b32.xlu0 %v3049, 125
    %v3053 = vpop.permute.xlu0 %3052
    %3054 = vrot.lane.b32.xlu0 %v3051, 125
    %v3055 = vpop.permute.xlu0 %3054
    %v3058 = vadd.f32 %v3012, %v3053
    %v3059 = vadd.f32 %v3013, %v3055
    %s3060 = sld [smem:[#allocation7 + $0x26]]
    %v3061 = vstv %s3060
    %v3062 = vmul.f32 %v2475, %v3061
    %v3063 = vmul.f32 %v2476, %v3061
    %v3064 = vmul.f32 %v2477, %v3061
    %v3068 = vrot.slane %v3062, 4
    %v3069 = vrot.slane %v3063, 4
    %v3070 = vsel %vm47, %v3068, %v3069
    %v3071 = vrot.slane %v3064, 4
    %v3072 = vsel %vm47, %v3069, %v3071
    %3073 = vrot.lane.b32.xlu0 %v3070, 125
    %v3074 = vpop.permute.xlu0 %3073
    %3075 = vrot.lane.b32.xlu0 %v3072, 125
    %v3076 = vpop.permute.xlu0 %3075
    %3077 = vrot.lane.b32.xlu0 %v3071, 125
    %v3078 = vpop.permute.xlu0 %3077
    %v3082 = vadd.f32 %v3036, %v3074
    %v3083 = vadd.f32 %v3037, %v3076
    %v3084 = vadd.f32 %v3038, %v3078
    %s3085 = sld [smem:[#allocation7 + $0x2d]]
    %v3086 = vstv %s3085
    %v3087 = vmul.f32 %v2475, %v3086
    %v3088 = vmul.f32 %v2476, %v3086
    %v3089 = vmul.f32 %v2477, %v3086
    %v3093 = vrot.slane %v3087, 6
    %v3094 = vrot.slane %v3088, 6
    %v3095 = vsel %vm124, %v3093, %v3094
    %v3096 = vrot.slane %v3089, 6
    %v3097 = vsel %vm124, %v3094, %v3096
    %3098 = vrot.lane.b32.xlu0 %v3095, 125
    %v3099 = vpop.permute.xlu0 %3098
    %3100 = vrot.lane.b32.xlu0 %v3097, 125
    %v3101 = vpop.permute.xlu0 %3100
    %v3104 = vadd.f32 %v3058, %v3099
    %v3105 = vadd.f32 %v3059, %v3101
    %s3106 = sld [smem:[#allocation7 + $0x4]]
    %v3107 = vstv %s3106
    %v3108 = vmul.f32 %v2475, %v3107
    %v3109 = vmul.f32 %v2476, %v3107
    %3112 = vrot.lane.b32.xlu0 %v3108, 124
    %v3113 = vpop.permute.xlu0 %3112
    %3114 = vrot.lane.b32.xlu0 %v3109, 124
    %v3115 = vpop.permute.xlu0 %3114
    %v3118 = vadd.f32 %v3104, %v3113
    %v3119 = vadd.f32 %v3105, %v3115
    %s3120 = sld [smem:[#allocation7 + $0xb]]
    %v3121 = vstv %s3120
    %v3122 = vmul.f32 %v2475, %v3121
    %v3123 = vmul.f32 %v2476, %v3121
    %v3124 = vmul.f32 %v2477, %v3121
    %3128 = vrot.lane.b32.xlu0 %v3122, 124
    %v3129 = vpop.permute.xlu0 %3128
    %3130 = vrot.lane.b32.xlu0 %v3123, 124
    %v3131 = vpop.permute.xlu0 %3130
    %3132 = vrot.lane.b32.xlu0 %v3124, 124
    %v3133 = vpop.permute.xlu0 %3132
    %v3137 = vadd.f32 %v3082, %v3129
    %v3138 = vadd.f32 %v3083, %v3131
    %v3139 = vadd.f32 %v3084, %v3133
    %s3140 = sld [smem:[#allocation7 + $0x12]]
    %v3141 = vstv %s3140
    %v3142 = vmul.f32 %v2475, %v3141
    %v3143 = vmul.f32 %v2476, %v3141
    %v3144 = vmul.f32 %v2477, %v3141
    %v3148 = vrot.slane %v3142, 2
    %v3149 = vrot.slane %v3143, 2
    %v3150 = vsel %vm131, %v3148, %v3149
    %v3151 = vrot.slane %v3144, 2
    %v3152 = vsel %vm131, %v3149, %v3151
    %3153 = vrot.lane.b32.xlu0 %v3150, 124
    %v3154 = vpop.permute.xlu0 %3153
    %3155 = vrot.lane.b32.xlu0 %v3152, 124
    %v3156 = vpop.permute.xlu0 %3155
    %v3159 = vadd.f32 %v3118, %v3154
    %v3160 = vadd.f32 %v3119, %v3156
    %s3161 = sld [smem:[#allocation7 + $0x19]]
    %v3162 = vstv %s3161
    %v3163 = vmul.f32 %v2475, %v3162
    %v3164 = vmul.f32 %v2476, %v3162
    %v3165 = vmul.f32 %v2477, %v3162
    %v3169 = vrot.slane %v3163, 2
    %v3170 = vrot.slane %v3164, 2
    %v3171 = vsel %vm131, %v3169, %v3170
    %v3172 = vrot.slane %v3165, 2
    %v3173 = vsel %vm131, %v3170, %v3172
    %3174 = vrot.lane.b32.xlu0 %v3171, 124
    %v3175 = vpop.permute.xlu0 %3174
    %3176 = vrot.lane.b32.xlu0 %v3173, 124
    %v3177 = vpop.permute.xlu0 %3176
    %3178 = vrot.lane.b32.xlu0 %v3172, 124
    %v3179 = vpop.permute.xlu0 %3178
    %v3183 = vadd.f32 %v3137, %v3175
    %v3184 = vadd.f32 %v3138, %v3177
    %v3185 = vadd.f32 %v3139, %v3179
    %s3186 = sld [smem:[#allocation7 + $0x20]]
    %v3187 = vstv %s3186
    %v3188 = vmul.f32 %v2475, %v3187
    %v3189 = vmul.f32 %v2476, %v3187
    %v3190 = vmul.f32 %v2477, %v3187
    %v3194 = vrot.slane %v3188, 4
    %v3195 = vrot.slane %v3189, 4
    %v3196 = vsel %vm47, %v3194, %v3195
    %v3197 = vrot.slane %v3190, 4
    %v3198 = vsel %vm47, %v3195, %v3197
    %3199 = vrot.lane.b32.xlu0 %v3196, 124
    %v3200 = vpop.permute.xlu0 %3199
    %3201 = vrot.lane.b32.xlu0 %v3198, 124
    %v3202 = vpop.permute.xlu0 %3201
    %v3205 = vadd.f32 %v3159, %v3200
    %v3206 = vadd.f32 %v3160, %v3202
    %s3207 = sld [smem:[#allocation7 + $0x27]]
    %v3208 = vstv %s3207
    %v3209 = vmul.f32 %v2475, %v3208
    %v3210 = vmul.f32 %v2476, %v3208
    %v3211 = vmul.f32 %v2477, %v3208
    %v3215 = vrot.slane %v3209, 4
    %v3216 = vrot.slane %v3210, 4
    %v3217 = vsel %vm47, %v3215, %v3216
    %v3218 = vrot.slane %v3211, 4
    %v3219 = vsel %vm47, %v3216, %v3218
    %3220 = vrot.lane.b32.xlu0 %v3217, 124
    %v3221 = vpop.permute.xlu0 %3220
    %3222 = vrot.lane.b32.xlu0 %v3219, 124
    %v3223 = vpop.permute.xlu0 %3222
    %3224 = vrot.lane.b32.xlu0 %v3218, 124
    %v3225 = vpop.permute.xlu0 %3224
    %v3229 = vadd.f32 %v3183, %v3221
    %v3230 = vadd.f32 %v3184, %v3223
    %v3231 = vadd.f32 %v3185, %v3225
    %s3232 = sld [smem:[#allocation7 + $0x2e]]
    %v3233 = vstv %s3232
    %v3234 = vmul.f32 %v2475, %v3233
    %v3235 = vmul.f32 %v2476, %v3233
    %v3236 = vmul.f32 %v2477, %v3233
    %v3240 = vrot.slane %v3234, 6
    %v3241 = vrot.slane %v3235, 6
    %v3242 = vsel %vm124, %v3240, %v3241
    %v3243 = vrot.slane %v3236, 6
    %v3244 = vsel %vm124, %v3241, %v3243
    %3245 = vrot.lane.b32.xlu0 %v3242, 124
    %v3246 = vpop.permute.xlu0 %3245
    %3247 = vrot.lane.b32.xlu0 %v3244, 124
    %v3248 = vpop.permute.xlu0 %3247
    %v3251 = vadd.f32 %v3205, %v3246
    %v3252 = vadd.f32 %v3206, %v3248
    %s3253 = sld [smem:[#allocation7 + $0x5]]
    %v3254 = vstv %s3253
    %v3255 = vmul.f32 %v2475, %v3254
    %v3256 = vmul.f32 %v2476, %v3254
    %3259 = vrot.lane.b32.xlu0 %v3255, 123
    %v3260 = vpop.permute.xlu0 %3259
    %3261 = vrot.lane.b32.xlu0 %v3256, 123
    %v3262 = vpop.permute.xlu0 %3261
    %v3265 = vadd.f32 %v3251, %v3260
    %v3266 = vadd.f32 %v3252, %v3262
    %s3267 = sld [smem:[#allocation7 + $0xc]]
    %v3268 = vstv %s3267
    %v3269 = vmul.f32 %v2475, %v3268
    %v3270 = vmul.f32 %v2476, %v3268
    %v3271 = vmul.f32 %v2477, %v3268
    %3275 = vrot.lane.b32.xlu0 %v3269, 123
    %v3276 = vpop.permute.xlu0 %3275
    %3277 = vrot.lane.b32.xlu0 %v3270, 123
    %v3278 = vpop.permute.xlu0 %3277
    %3279 = vrot.lane.b32.xlu0 %v3271, 123
    %v3280 = vpop.permute.xlu0 %3279
    %v3284 = vadd.f32 %v3229, %v3276
    %v3285 = vadd.f32 %v3230, %v3278
    %v3286 = vadd.f32 %v3231, %v3280
    %s3287 = sld [smem:[#allocation7 + $0x13]]
    %v3288 = vstv %s3287
    %v3289 = vmul.f32 %v2475, %v3288
    %v3290 = vmul.f32 %v2476, %v3288
    %v3291 = vmul.f32 %v2477, %v3288
    %v3295 = vrot.slane %v3289, 2
    %v3296 = vrot.slane %v3290, 2
    %v3297 = vsel %vm131, %v3295, %v3296
    %v3298 = vrot.slane %v3291, 2
    %v3299 = vsel %vm131, %v3296, %v3298
    %3300 = vrot.lane.b32.xlu0 %v3297, 123
    %v3301 = vpop.permute.xlu0 %3300
    %3302 = vrot.lane.b32.xlu0 %v3299, 123
    %v3303 = vpop.permute.xlu0 %3302
    %v3306 = vadd.f32 %v3265, %v3301
    %v3307 = vadd.f32 %v3266, %v3303
    %s3308 = sld [smem:[#allocation7 + $0x1a]]
    %v3309 = vstv %s3308
    %v3310 = vmul.f32 %v2475, %v3309
    %v3311 = vmul.f32 %v2476, %v3309
    %v3312 = vmul.f32 %v2477, %v3309
    %v3316 = vrot.slane %v3310, 2
    %v3317 = vrot.slane %v3311, 2
    %v3318 = vsel %vm131, %v3316, %v3317
    %v3319 = vrot.slane %v3312, 2
    %v3320 = vsel %vm131, %v3317, %v3319
    %3321 = vrot.lane.b32.xlu0 %v3318, 123
    %v3322 = vpop.permute.xlu0 %3321
    %3323 = vrot.lane.b32.xlu0 %v3320, 123
    %v3324 = vpop.permute.xlu0 %3323
    %3325 = vrot.lane.b32.xlu0 %v3319, 123
    %v3326 = vpop.permute.xlu0 %3325
    %v3330 = vadd.f32 %v3284, %v3322
    %v3331 = vadd.f32 %v3285, %v3324
    %v3332 = vadd.f32 %v3286, %v3326
    %s3333 = sld [smem:[#allocation7 + $0x21]]
    %v3334 = vstv %s3333
    %v3335 = vmul.f32 %v2475, %v3334
    %v3336 = vmul.f32 %v2476, %v3334
    %v3337 = vmul.f32 %v2477, %v3334
    %v3341 = vrot.slane %v3335, 4
    %v3342 = vrot.slane %v3336, 4
    %v3343 = vsel %vm47, %v3341, %v3342
    %v3344 = vrot.slane %v3337, 4
    %v3345 = vsel %vm47, %v3342, %v3344
    %3346 = vrot.lane.b32.xlu0 %v3343, 123
    %v3347 = vpop.permute.xlu0 %3346
    %3348 = vrot.lane.b32.xlu0 %v3345, 123
    %v3349 = vpop.permute.xlu0 %3348
    %v3352 = vadd.f32 %v3306, %v3347
    %v3353 = vadd.f32 %v3307, %v3349
    %s3354 = sld [smem:[#allocation7 + $0x28]]
    %v3355 = vstv %s3354
    %v3356 = vmul.f32 %v2475, %v3355
    %v3357 = vmul.f32 %v2476, %v3355
    %v3358 = vmul.f32 %v2477, %v3355
    %v3362 = vrot.slane %v3356, 4
    %v3363 = vrot.slane %v3357, 4
    %v3364 = vsel %vm47, %v3362, %v3363
    %v3365 = vrot.slane %v3358, 4
    %v3366 = vsel %vm47, %v3363, %v3365
    %3367 = vrot.lane.b32.xlu0 %v3364, 123
    %v3368 = vpop.permute.xlu0 %3367
    %3369 = vrot.lane.b32.xlu0 %v3366, 123
    %v3370 = vpop.permute.xlu0 %3369
    %3371 = vrot.lane.b32.xlu0 %v3365, 123
    %v3372 = vpop.permute.xlu0 %3371
    %v3376 = vadd.f32 %v3330, %v3368
    %v3377 = vadd.f32 %v3331, %v3370
    %v3378 = vadd.f32 %v3332, %v3372
    %s3379 = sld [smem:[#allocation7 + $0x2f]]
    %v3380 = vstv %s3379
    %v3381 = vmul.f32 %v2475, %v3380
    %v3382 = vmul.f32 %v2476, %v3380
    %v3383 = vmul.f32 %v2477, %v3380
    %v3387 = vrot.slane %v3381, 6
    %v3388 = vrot.slane %v3382, 6
    %v3389 = vsel %vm124, %v3387, %v3388
    %v3390 = vrot.slane %v3383, 6
    %v3391 = vsel %vm124, %v3388, %v3390
    %3392 = vrot.lane.b32.xlu0 %v3389, 123
    %v3393 = vpop.permute.xlu0 %3392
    %3394 = vrot.lane.b32.xlu0 %v3391, 123
    %v3395 = vpop.permute.xlu0 %3394
    %v3398 = vadd.f32 %v3352, %v3393
    %v3399 = vadd.f32 %v3353, %v3395
    %s3400 = sld [smem:[#allocation7 + $0x6]]
    %v3401 = vstv %s3400
    %v3402 = vmul.f32 %v2475, %v3401
    %v3403 = vmul.f32 %v2476, %v3401
    %3406 = vrot.lane.b32.xlu0 %v3402, 122
    %v3407 = vpop.permute.xlu0 %3406
    %3408 = vrot.lane.b32.xlu0 %v3403, 122
    %v3409 = vpop.permute.xlu0 %3408
    %v3412 = vadd.f32 %v3398, %v3407
    %v3413 = vadd.f32 %v3399, %v3409
    %s3414 = sld [smem:[#allocation7 + $0xd]]
    %v3415 = vstv %s3414
    %v3416 = vmul.f32 %v2475, %v3415
    %v3417 = vmul.f32 %v2476, %v3415
    %v3418 = vmul.f32 %v2477, %v3415
    %3422 = vrot.lane.b32.xlu0 %v3416, 122
    %v3423 = vpop.permute.xlu0 %3422
    %3424 = vrot.lane.b32.xlu0 %v3417, 122
    %v3425 = vpop.permute.xlu0 %3424
    %3426 = vrot.lane.b32.xlu0 %v3418, 122
    %v3427 = vpop.permute.xlu0 %3426
    %v3431 = vadd.f32 %v3376, %v3423
    %v3432 = vadd.f32 %v3377, %v3425
    %v3433 = vadd.f32 %v3378, %v3427
    %s3434 = sld [smem:[#allocation7 + $0x14]]
    %v3435 = vstv %s3434
    %v3436 = vmul.f32 %v2475, %v3435
    %v3437 = vmul.f32 %v2476, %v3435
    %v3438 = vmul.f32 %v2477, %v3435
    %v3442 = vrot.slane %v3436, 2
    %v3443 = vrot.slane %v3437, 2
    %v3444 = vsel %vm131, %v3442, %v3443
    %v3445 = vrot.slane %v3438, 2
    %v3446 = vsel %vm131, %v3443, %v3445
    %3447 = vrot.lane.b32.xlu0 %v3444, 122
    %v3448 = vpop.permute.xlu0 %3447
    %3449 = vrot.lane.b32.xlu0 %v3446, 122
    %v3450 = vpop.permute.xlu0 %3449
    %v3453 = vadd.f32 %v3412, %v3448
    %v3454 = vadd.f32 %v3413, %v3450
    %s3455 = sld [smem:[#allocation7 + $0x1b]]
    %v3456 = vstv %s3455
    %v3457 = vmul.f32 %v2475, %v3456
    %v3458 = vmul.f32 %v2476, %v3456
    %v3459 = vmul.f32 %v2477, %v3456
    %v3463 = vrot.slane %v3457, 2
    %v3464 = vrot.slane %v3458, 2
    %v3465 = vsel %vm131, %v3463, %v3464
    %v3466 = vrot.slane %v3459, 2
    %v3467 = vsel %vm131, %v3464, %v3466
    %3468 = vrot.lane.b32.xlu0 %v3465, 122
    %v3469 = vpop.permute.xlu0 %3468
    %3470 = vrot.lane.b32.xlu0 %v3467, 122
    %v3471 = vpop.permute.xlu0 %3470
    %3472 = vrot.lane.b32.xlu0 %v3466, 122
    %v3473 = vpop.permute.xlu0 %3472
    %v3477 = vadd.f32 %v3431, %v3469
    %v3478 = vadd.f32 %v3432, %v3471
    %v3479 = vadd.f32 %v3433, %v3473
    %s3480 = sld [smem:[#allocation7 + $0x22]]
    %v3481 = vstv %s3480
    %v3482 = vmul.f32 %v2475, %v3481
    %v3483 = vmul.f32 %v2476, %v3481
    %v3484 = vmul.f32 %v2477, %v3481
    %v3488 = vrot.slane %v3482, 4
    %v3489 = vrot.slane %v3483, 4
    %v3490 = vsel %vm47, %v3488, %v3489
    %v3491 = vrot.slane %v3484, 4
    %v3492 = vsel %vm47, %v3489, %v3491
    %3493 = vrot.lane.b32.xlu0 %v3490, 122
    %v3494 = vpop.permute.xlu0 %3493
    %3495 = vrot.lane.b32.xlu0 %v3492, 122
    %v3496 = vpop.permute.xlu0 %3495
    %v3499 = vadd.f32 %v3453, %v3494
    %v3500 = vadd.f32 %v3454, %v3496
    %s3501 = sld [smem:[#allocation7 + $0x29]]
    %v3502 = vstv %s3501
    %v3503 = vmul.f32 %v2475, %v3502
    %v3504 = vmul.f32 %v2476, %v3502
    %v3505 = vmul.f32 %v2477, %v3502
    %v3509 = vrot.slane %v3503, 4
    %v3510 = vrot.slane %v3504, 4
    %v3511 = vsel %vm47, %v3509, %v3510
    %v3512 = vrot.slane %v3505, 4
    %v3513 = vsel %vm47, %v3510, %v3512
    %3514 = vrot.lane.b32.xlu0 %v3511, 122
    %v3515 = vpop.permute.xlu0 %3514
    %3516 = vrot.lane.b32.xlu0 %v3513, 122
    %v3517 = vpop.permute.xlu0 %3516
    %3518 = vrot.lane.b32.xlu0 %v3512, 122
    %v3519 = vpop.permute.xlu0 %3518
    %v3523 = vadd.f32 %v3477, %v3515
    %v3524 = vadd.f32 %v3478, %v3517
    %v3525 = vadd.f32 %v3479, %v3519
    %s3526 = sld [smem:[#allocation7 + $0x30]]
    %v3527 = vstv %s3526
    %v3528 = vmul.f32 %v2475, %v3527
    %v3529 = vmul.f32 %v2476, %v3527
    %v3530 = vmul.f32 %v2477, %v3527
    %v3534 = vrot.slane %v3528, 6
    %v3535 = vrot.slane %v3529, 6
    %v3536 = vsel %vm124, %v3534, %v3535
    %v3537 = vrot.slane %v3530, 6
    %v3538 = vsel %vm124, %v3535, %v3537
    %3539 = vrot.lane.b32.xlu0 %v3536, 122
    %v3540 = vpop.permute.xlu0 %3539
    %3541 = vrot.lane.b32.xlu0 %v3538, 122
    %v3542 = vpop.permute.xlu0 %3541
    %v3545 = vadd.f32 %v3499, %v3540
    %v3546 = vadd.f32 %v3500, %v3542
    %s3547 = sld [smem:[#allocation7 + $0x31]]
    %v3548 = vstv %s3547
    %v3549 = vmul.f32 %v2559, %v3548
    %v3550 = vmul.f32 %v2560, %v3548
    %v3551 = vadd.f32 %v3549, 0.0
    %v3552 = vadd.f32 %v3550, 0.0
    %s3553 = sld [smem:[#allocation7 + $0x38]]
    %v3554 = vstv %s3553
    %v3555 = vmul.f32 %v2559, %v3554
    %v3556 = vmul.f32 %v2560, %v3554
    %v3557 = vmul.f32 %v2561, %v3554
    %v3558 = vadd.f32 %v3555, 0.0
    %v3559 = vadd.f32 %v3556, 0.0
    %v3560 = vadd.f32 %v3557, 0.0
    %s3561 = sld [smem:[#allocation7 + $0x3f]]
    %v3562 = vstv %s3561
    %v3563 = vmul.f32 %v2559, %v3562
    %v3564 = vmul.f32 %v2560, %v3562
    %v3565 = vmul.f32 %v2561, %v3562
    %v3569 = vrot.slane %v3563, 2
    %v3570 = vrot.slane %v3564, 2
    %v3571 = vsel %vm131, %v3569, %v3570
    %v3572 = vrot.slane %v3565, 2
    %v3573 = vsel %vm131, %v3570, %v3572
    %v3576 = vadd.f32 %v3551, %v3571
    %v3577 = vadd.f32 %v3552, %v3573
    %s3578 = sld [smem:[#allocation7 + $0x46]]
    %v3579 = vstv %s3578
    %v3580 = vmul.f32 %v2559, %v3579
    %v3581 = vmul.f32 %v2560, %v3579
    %v3582 = vmul.f32 %v2561, %v3579
    %v3586 = vrot.slane %v3580, 2
    %v3587 = vrot.slane %v3581, 2
    %v3588 = vsel %vm131, %v3586, %v3587
    %v3589 = vrot.slane %v3582, 2
    %v3590 = vsel %vm131, %v3587, %v3589
    %v3594 = vadd.f32 %v3558, %v3588
    %v3595 = vadd.f32 %v3559, %v3590
    %v3596 = vadd.f32 %v3560, %v3589
    %s3597 = sld [smem:[#allocation7 + $0x4d]]
    %v3598 = vstv %s3597
    %v3599 = vmul.f32 %v2559, %v3598
    %v3600 = vmul.f32 %v2560, %v3598
    %v3601 = vmul.f32 %v2561, %v3598
    %v3605 = vrot.slane %v3599, 4
    %v3606 = vrot.slane %v3600, 4
    %v3607 = vsel %vm47, %v3605, %v3606
    %v3608 = vrot.slane %v3601, 4
    %v3609 = vsel %vm47, %v3606, %v3608
    %v3612 = vadd.f32 %v3576, %v3607
    %v3613 = vadd.f32 %v3577, %v3609
    %s3614 = sld [smem:[#allocation7 + $0x54]]
    %v3615 = vstv %s3614
    %v3616 = vmul.f32 %v2559, %v3615
    %v3617 = vmul.f32 %v2560, %v3615
    %v3618 = vmul.f32 %v2561, %v3615
    %v3622 = vrot.slane %v3616, 4
    %v3623 = vrot.slane %v3617, 4
    %v3624 = vsel %vm47, %v3622, %v3623
    %v3625 = vrot.slane %v3618, 4
    %v3626 = vsel %vm47, %v3623, %v3625
    %v3630 = vadd.f32 %v3594, %v3624
    %v3631 = vadd.f32 %v3595, %v3626
    %v3632 = vadd.f32 %v3596, %v3625
    %s3633 = sld [smem:[#allocation7 + $0x5b]]
    %v3634 = vstv %s3633
    %v3635 = vmul.f32 %v2559, %v3634
    %v3636 = vmul.f32 %v2560, %v3634
    %v3637 = vmul.f32 %v2561, %v3634
    %v3641 = vrot.slane %v3635, 6
    %v3642 = vrot.slane %v3636, 6
    %v3643 = vsel %vm124, %v3641, %v3642
    %v3644 = vrot.slane %v3637, 6
    %v3645 = vsel %vm124, %v3642, %v3644
    %v3648 = vadd.f32 %v3612, %v3643
    %v3649 = vadd.f32 %v3613, %v3645
    %s3650 = sld [smem:[#allocation7 + $0x32]]
    %v3651 = vstv %s3650
    %v3652 = vmul.f32 %v2559, %v3651
    %v3653 = vmul.f32 %v2560, %v3651
    %3656 = vrot.lane.b32.xlu0 %v3652, 127
    %v3657 = vpop.permute.xlu0 %3656
    %3658 = vrot.lane.b32.xlu0 %v3653, 127
    %v3659 = vpop.permute.xlu0 %3658
    %v3662 = vadd.f32 %v3648, %v3657
    %v3663 = vadd.f32 %v3649, %v3659
    %s3664 = sld [smem:[#allocation7 + $0x39]]
    %v3665 = vstv %s3664
    %v3666 = vmul.f32 %v2559, %v3665
    %v3667 = vmul.f32 %v2560, %v3665
    %v3668 = vmul.f32 %v2561, %v3665
    %3672 = vrot.lane.b32.xlu0 %v3666, 127
    %v3673 = vpop.permute.xlu0 %3672
    %3674 = vrot.lane.b32.xlu0 %v3667, 127
    %v3675 = vpop.permute.xlu0 %3674
    %3676 = vrot.lane.b32.xlu0 %v3668, 127
    %v3677 = vpop.permute.xlu0 %3676
    %v3681 = vadd.f32 %v3630, %v3673
    %v3682 = vadd.f32 %v3631, %v3675
    %v3683 = vadd.f32 %v3632, %v3677
    %s3684 = sld [smem:[#allocation7 + $0x40]]
    %v3685 = vstv %s3684
    %v3686 = vmul.f32 %v2559, %v3685
    %v3687 = vmul.f32 %v2560, %v3685
    %v3688 = vmul.f32 %v2561, %v3685
    %v3692 = vrot.slane %v3686, 2
    %v3693 = vrot.slane %v3687, 2
    %v3694 = vsel %vm131, %v3692, %v3693
    %v3695 = vrot.slane %v3688, 2
    %v3696 = vsel %vm131, %v3693, %v3695
    %3697 = vrot.lane.b32.xlu0 %v3694, 127
    %v3698 = vpop.permute.xlu0 %3697
    %3699 = vrot.lane.b32.xlu0 %v3696, 127
    %v3700 = vpop.permute.xlu0 %3699
    %v3703 = vadd.f32 %v3662, %v3698
    %v3704 = vadd.f32 %v3663, %v3700
    %s3705 = sld [smem:[#allocation7 + $0x47]]
    %v3706 = vstv %s3705
    %v3707 = vmul.f32 %v2559, %v3706
    %v3708 = vmul.f32 %v2560, %v3706
    %v3709 = vmul.f32 %v2561, %v3706
    %v3713 = vrot.slane %v3707, 2
    %v3714 = vrot.slane %v3708, 2
    %v3715 = vsel %vm131, %v3713, %v3714
    %v3716 = vrot.slane %v3709, 2
    %v3717 = vsel %vm131, %v3714, %v3716
    %3718 = vrot.lane.b32.xlu0 %v3715, 127
    %v3719 = vpop.permute.xlu0 %3718
    %3720 = vrot.lane.b32.xlu0 %v3717, 127
    %v3721 = vpop.permute.xlu0 %3720
    %3722 = vrot.lane.b32.xlu0 %v3716, 127
    %v3723 = vpop.permute.xlu0 %3722
    %v3727 = vadd.f32 %v3681, %v3719
    %v3728 = vadd.f32 %v3682, %v3721
    %v3729 = vadd.f32 %v3683, %v3723
    %s3730 = sld [smem:[#allocation7 + $0x4e]]
    %v3731 = vstv %s3730
    %v3732 = vmul.f32 %v2559, %v3731
    %v3733 = vmul.f32 %v2560, %v3731
    %v3734 = vmul.f32 %v2561, %v3731
    %v3738 = vrot.slane %v3732, 4
    %v3739 = vrot.slane %v3733, 4
    %v3740 = vsel %vm47, %v3738, %v3739
    %v3741 = vrot.slane %v3734, 4
    %v3742 = vsel %vm47, %v3739, %v3741
    %3743 = vrot.lane.b32.xlu0 %v3740, 127
    %v3744 = vpop.permute.xlu0 %3743
    %3745 = vrot.lane.b32.xlu0 %v3742, 127
    %v3746 = vpop.permute.xlu0 %3745
    %v3749 = vadd.f32 %v3703, %v3744
    %v3750 = vadd.f32 %v3704, %v3746
    %s3751 = sld [smem:[#allocation7 + $0x55]]
    %v3752 = vstv %s3751
    %v3753 = vmul.f32 %v2559, %v3752
    %v3754 = vmul.f32 %v2560, %v3752
    %v3755 = vmul.f32 %v2561, %v3752
    %v3759 = vrot.slane %v3753, 4
    %v3760 = vrot.slane %v3754, 4
    %v3761 = vsel %vm47, %v3759, %v3760
    %v3762 = vrot.slane %v3755, 4
    %v3763 = vsel %vm47, %v3760, %v3762
    %3764 = vrot.lane.b32.xlu0 %v3761, 127
    %v3765 = vpop.permute.xlu0 %3764
    %3766 = vrot.lane.b32.xlu0 %v3763, 127
    %v3767 = vpop.permute.xlu0 %3766
    %3768 = vrot.lane.b32.xlu0 %v3762, 127
    %v3769 = vpop.permute.xlu0 %3768
    %v3773 = vadd.f32 %v3727, %v3765
    %v3774 = vadd.f32 %v3728, %v3767
    %v3775 = vadd.f32 %v3729, %v3769
    %s3776 = sld [smem:[#allocation7 + $0x5c]]
    %v3777 = vstv %s3776
    %v3778 = vmul.f32 %v2559, %v3777
    %v3779 = vmul.f32 %v2560, %v3777
    %v3780 = vmul.f32 %v2561, %v3777
    %v3784 = vrot.slane %v3778, 6
    %v3785 = vrot.slane %v3779, 6
    %v3786 = vsel %vm124, %v3784, %v3785
    %v3787 = vrot.slane %v3780, 6
    %v3788 = vsel %vm124, %v3785, %v3787
    %3789 = vrot.lane.b32.xlu0 %v3786, 127
    %v3790 = vpop.permute.xlu0 %3789
    %3791 = vrot.lane.b32.xlu0 %v3788, 127
    %v3792 = vpop.permute.xlu0 %3791
    %v3795 = vadd.f32 %v3749, %v3790
    %v3796 = vadd.f32 %v3750, %v3792
    %s3797 = sld [smem:[#allocation7 + $0x33]]
    %v3798 = vstv %s3797
    %v3799 = vmul.f32 %v2559, %v3798
    %v3800 = vmul.f32 %v2560, %v3798
    %3803 = vrot.lane.b32.xlu0 %v3799, 126
    %v3804 = vpop.permute.xlu0 %3803
    %3805 = vrot.lane.b32.xlu0 %v3800, 126
    %v3806 = vpop.permute.xlu0 %3805
    %v3809 = vadd.f32 %v3795, %v3804
    %v3810 = vadd.f32 %v3796, %v3806
    %s3811 = sld [smem:[#allocation7 + $0x3a]]
    %v3812 = vstv %s3811
    %v3813 = vmul.f32 %v2559, %v3812
    %v3814 = vmul.f32 %v2560, %v3812
    %v3815 = vmul.f32 %v2561, %v3812
    %3819 = vrot.lane.b32.xlu0 %v3813, 126
    %v3820 = vpop.permute.xlu0 %3819
    %3821 = vrot.lane.b32.xlu0 %v3814, 126
    %v3822 = vpop.permute.xlu0 %3821
    %3823 = vrot.lane.b32.xlu0 %v3815, 126
    %v3824 = vpop.permute.xlu0 %3823
    %v3828 = vadd.f32 %v3773, %v3820
    %v3829 = vadd.f32 %v3774, %v3822
    %v3830 = vadd.f32 %v3775, %v3824
    %s3831 = sld [smem:[#allocation7 + $0x41]]
    %v3832 = vstv %s3831
    %v3833 = vmul.f32 %v2559, %v3832
    %v3834 = vmul.f32 %v2560, %v3832
    %v3835 = vmul.f32 %v2561, %v3832
    %v3839 = vrot.slane %v3833, 2
    %v3840 = vrot.slane %v3834, 2
    %v3841 = vsel %vm131, %v3839, %v3840
    %v3842 = vrot.slane %v3835, 2
    %v3843 = vsel %vm131, %v3840, %v3842
    %3844 = vrot.lane.b32.xlu0 %v3841, 126
    %v3845 = vpop.permute.xlu0 %3844
    %3846 = vrot.lane.b32.xlu0 %v3843, 126
    %v3847 = vpop.permute.xlu0 %3846
    %v3850 = vadd.f32 %v3809, %v3845
    %v3851 = vadd.f32 %v3810, %v3847
    %s3852 = sld [smem:[#allocation7 + $0x48]]
    %v3853 = vstv %s3852
    %v3854 = vmul.f32 %v2559, %v3853
    %v3855 = vmul.f32 %v2560, %v3853
    %v3856 = vmul.f32 %v2561, %v3853
    %v3860 = vrot.slane %v3854, 2
    %v3861 = vrot.slane %v3855, 2
    %v3862 = vsel %vm131, %v3860, %v3861
    %v3863 = vrot.slane %v3856, 2
    %v3864 = vsel %vm131, %v3861, %v3863
    %3865 = vrot.lane.b32.xlu0 %v3862, 126
    %v3866 = vpop.permute.xlu0 %3865
    %3867 = vrot.lane.b32.xlu0 %v3864, 126
    %v3868 = vpop.permute.xlu0 %3867
    %3869 = vrot.lane.b32.xlu0 %v3863, 126
    %v3870 = vpop.permute.xlu0 %3869
    %v3874 = vadd.f32 %v3828, %v3866
    %v3875 = vadd.f32 %v3829, %v3868
    %v3876 = vadd.f32 %v3830, %v3870
    %s3877 = sld [smem:[#allocation7 + $0x4f]]
    %v3878 = vstv %s3877
    %v3879 = vmul.f32 %v2559, %v3878
    %v3880 = vmul.f32 %v2560, %v3878
    %v3881 = vmul.f32 %v2561, %v3878
    %v3885 = vrot.slane %v3879, 4
    %v3886 = vrot.slane %v3880, 4
    %v3887 = vsel %vm47, %v3885, %v3886
    %v3888 = vrot.slane %v3881, 4
    %v3889 = vsel %vm47, %v3886, %v3888
    %3890 = vrot.lane.b32.xlu0 %v3887, 126
    %v3891 = vpop.permute.xlu0 %3890
    %3892 = vrot.lane.b32.xlu0 %v3889, 126
    %v3893 = vpop.permute.xlu0 %3892
    %v3896 = vadd.f32 %v3850, %v3891
    %v3897 = vadd.f32 %v3851, %v3893
    %s3898 = sld [smem:[#allocation7 + $0x56]]
    %v3899 = vstv %s3898
    %v3900 = vmul.f32 %v2559, %v3899
    %v3901 = vmul.f32 %v2560, %v3899
    %v3902 = vmul.f32 %v2561, %v3899
    %v3906 = vrot.slane %v3900, 4
    %v3907 = vrot.slane %v3901, 4
    %v3908 = vsel %vm47, %v3906, %v3907
    %v3909 = vrot.slane %v3902, 4
    %v3910 = vsel %vm47, %v3907, %v3909
    %3911 = vrot.lane.b32.xlu0 %v3908, 126
    %v3912 = vpop.permute.xlu0 %3911
    %3913 = vrot.lane.b32.xlu0 %v3910, 126
    %v3914 = vpop.permute.xlu0 %3913
    %3915 = vrot.lane.b32.xlu0 %v3909, 126
    %v3916 = vpop.permute.xlu0 %3915
    %v3920 = vadd.f32 %v3874, %v3912
    %v3921 = vadd.f32 %v3875, %v3914
    %v3922 = vadd.f32 %v3876, %v3916
    %s3923 = sld [smem:[#allocation7 + $0x5d]]
    %v3924 = vstv %s3923
    %v3925 = vmul.f32 %v2559, %v3924
    %v3926 = vmul.f32 %v2560, %v3924
    %v3927 = vmul.f32 %v2561, %v3924
    %v3931 = vrot.slane %v3925, 6
    %v3932 = vrot.slane %v3926, 6
    %v3933 = vsel %vm124, %v3931, %v3932
    %v3934 = vrot.slane %v3927, 6
    %v3935 = vsel %vm124, %v3932, %v3934
    %3936 = vrot.lane.b32.xlu0 %v3933, 126
    %v3937 = vpop.permute.xlu0 %3936
    %3938 = vrot.lane.b32.xlu0 %v3935, 126
    %v3939 = vpop.permute.xlu0 %3938
    %v3942 = vadd.f32 %v3896, %v3937
    %v3943 = vadd.f32 %v3897, %v3939
    %s3944 = sld [smem:[#allocation7 + $0x34]]
    %v3945 = vstv %s3944
    %v3946 = vmul.f32 %v2559, %v3945
    %v3947 = vmul.f32 %v2560, %v3945
    %3950 = vrot.lane.b32.xlu0 %v3946, 125
    %v3951 = vpop.permute.xlu0 %3950
    %3952 = vrot.lane.b32.xlu0 %v3947, 125
    %v3953 = vpop.permute.xlu0 %3952
    %v3956 = vadd.f32 %v3942, %v3951
    %v3957 = vadd.f32 %v3943, %v3953
    %s3958 = sld [smem:[#allocation7 + $0x3b]]
    %v3959 = vstv %s3958
    %v3960 = vmul.f32 %v2559, %v3959
    %v3961 = vmul.f32 %v2560, %v3959
    %v3962 = vmul.f32 %v2561, %v3959
    %3966 = vrot.lane.b32.xlu0 %v3960, 125
    %v3967 = vpop.permute.xlu0 %3966
    %3968 = vrot.lane.b32.xlu0 %v3961, 125
    %v3969 = vpop.permute.xlu0 %3968
    %3970 = vrot.lane.b32.xlu0 %v3962, 125
    %v3971 = vpop.permute.xlu0 %3970
    %v3975 = vadd.f32 %v3920, %v3967
    %v3976 = vadd.f32 %v3921, %v3969
    %v3977 = vadd.f32 %v3922, %v3971
    %s3978 = sld [smem:[#allocation7 + $0x42]]
    %v3979 = vstv %s3978
    %v3980 = vmul.f32 %v2559, %v3979
    %v3981 = vmul.f32 %v2560, %v3979
    %v3982 = vmul.f32 %v2561, %v3979
    %v3986 = vrot.slane %v3980, 2
    %v3987 = vrot.slane %v3981, 2
    %v3988 = vsel %vm131, %v3986, %v3987
    %v3989 = vrot.slane %v3982, 2
    %v3990 = vsel %vm131, %v3987, %v3989
    %3991 = vrot.lane.b32.xlu0 %v3988, 125
    %v3992 = vpop.permute.xlu0 %3991
    %3993 = vrot.lane.b32.xlu0 %v3990, 125
    %v3994 = vpop.permute.xlu0 %3993
    %v3997 = vadd.f32 %v3956, %v3992
    %v3998 = vadd.f32 %v3957, %v3994
    %s3999 = sld [smem:[#allocation7 + $0x49]]
    %v4000 = vstv %s3999
    %v4001 = vmul.f32 %v2559, %v4000
    %v4002 = vmul.f32 %v2560, %v4000
    %v4003 = vmul.f32 %v2561, %v4000
    %v4007 = vrot.slane %v4001, 2
    %v4008 = vrot.slane %v4002, 2
    %v4009 = vsel %vm131, %v4007, %v4008
    %v4010 = vrot.slane %v4003, 2
    %v4011 = vsel %vm131, %v4008, %v4010
    %4012 = vrot.lane.b32.xlu0 %v4009, 125
    %v4013 = vpop.permute.xlu0 %4012
    %4014 = vrot.lane.b32.xlu0 %v4011, 125
    %v4015 = vpop.permute.xlu0 %4014
    %4016 = vrot.lane.b32.xlu0 %v4010, 125
    %v4017 = vpop.permute.xlu0 %4016
    %v4021 = vadd.f32 %v3975, %v4013
    %v4022 = vadd.f32 %v3976, %v4015
    %v4023 = vadd.f32 %v3977, %v4017
    %s4024 = sld [smem:[#allocation7 + $0x50]]
    %v4025 = vstv %s4024
    %v4026 = vmul.f32 %v2559, %v4025
    %v4027 = vmul.f32 %v2560, %v4025
    %v4028 = vmul.f32 %v2561, %v4025
    %v4032 = vrot.slane %v4026, 4
    %v4033 = vrot.slane %v4027, 4
    %v4034 = vsel %vm47, %v4032, %v4033
    %v4035 = vrot.slane %v4028, 4
    %v4036 = vsel %vm47, %v4033, %v4035
    %4037 = vrot.lane.b32.xlu0 %v4034, 125
    %v4038 = vpop.permute.xlu0 %4037
    %4039 = vrot.lane.b32.xlu0 %v4036, 125
    %v4040 = vpop.permute.xlu0 %4039
    %v4043 = vadd.f32 %v3997, %v4038
    %v4044 = vadd.f32 %v3998, %v4040
    %s4045 = sld [smem:[#allocation7 + $0x57]]
    %v4046 = vstv %s4045
    %v4047 = vmul.f32 %v2559, %v4046
    %v4048 = vmul.f32 %v2560, %v4046
    %v4049 = vmul.f32 %v2561, %v4046
    %v4053 = vrot.slane %v4047, 4
    %v4054 = vrot.slane %v4048, 4
    %v4055 = vsel %vm47, %v4053, %v4054
    %v4056 = vrot.slane %v4049, 4
    %v4057 = vsel %vm47, %v4054, %v4056
    %4058 = vrot.lane.b32.xlu0 %v4055, 125
    %v4059 = vpop.permute.xlu0 %4058
    %4060 = vrot.lane.b32.xlu0 %v4057, 125
    %v4061 = vpop.permute.xlu0 %4060
    %4062 = vrot.lane.b32.xlu0 %v4056, 125
    %v4063 = vpop.permute.xlu0 %4062
    %v4067 = vadd.f32 %v4021, %v4059
    %v4068 = vadd.f32 %v4022, %v4061
    %v4069 = vadd.f32 %v4023, %v4063
    %s4070 = sld [smem:[#allocation7 + $0x5e]]
    %v4071 = vstv %s4070
    %v4072 = vmul.f32 %v2559, %v4071
    %v4073 = vmul.f32 %v2560, %v4071
    %v4074 = vmul.f32 %v2561, %v4071
    %v4078 = vrot.slane %v4072, 6
    %v4079 = vrot.slane %v4073, 6
    %v4080 = vsel %vm124, %v4078, %v4079
    %v4081 = vrot.slane %v4074, 6
    %v4082 = vsel %vm124, %v4079, %v4081
    %4083 = vrot.lane.b32.xlu0 %v4080, 125
    %v4084 = vpop.permute.xlu0 %4083
    %4085 = vrot.lane.b32.xlu0 %v4082, 125
    %v4086 = vpop.permute.xlu0 %4085
    %v4089 = vadd.f32 %v4043, %v4084
    %v4090 = vadd.f32 %v4044, %v4086
    %s4091 = sld [smem:[#allocation7 + $0x35]]
    %v4092 = vstv %s4091
    %v4093 = vmul.f32 %v2559, %v4092
    %v4094 = vmul.f32 %v2560, %v4092
    %4097 = vrot.lane.b32.xlu0 %v4093, 124
    %v4098 = vpop.permute.xlu0 %4097
    %4099 = vrot.lane.b32.xlu0 %v4094, 124
    %v4100 = vpop.permute.xlu0 %4099
    %v4103 = vadd.f32 %v4089, %v4098
    %v4104 = vadd.f32 %v4090, %v4100
    %s4105 = sld [smem:[#allocation7 + $0x3c]]
    %v4106 = vstv %s4105
    %v4107 = vmul.f32 %v2559, %v4106
    %v4108 = vmul.f32 %v2560, %v4106
    %v4109 = vmul.f32 %v2561, %v4106
    %4113 = vrot.lane.b32.xlu0 %v4107, 124
    %v4114 = vpop.permute.xlu0 %4113
    %4115 = vrot.lane.b32.xlu0 %v4108, 124
    %v4116 = vpop.permute.xlu0 %4115
    %4117 = vrot.lane.b32.xlu0 %v4109, 124
    %v4118 = vpop.permute.xlu0 %4117
    %v4122 = vadd.f32 %v4067, %v4114
    %v4123 = vadd.f32 %v4068, %v4116
    %v4124 = vadd.f32 %v4069, %v4118
    %s4125 = sld [smem:[#allocation7 + $0x43]]
    %v4126 = vstv %s4125
    %v4127 = vmul.f32 %v2559, %v4126
    %v4128 = vmul.f32 %v2560, %v4126
    %v4129 = vmul.f32 %v2561, %v4126
    %v4133 = vrot.slane %v4127, 2
    %v4134 = vrot.slane %v4128, 2
    %v4135 = vsel %vm131, %v4133, %v4134
    %v4136 = vrot.slane %v4129, 2
    %v4137 = vsel %vm131, %v4134, %v4136
    %4138 = vrot.lane.b32.xlu0 %v4135, 124
    %v4139 = vpop.permute.xlu0 %4138
    %4140 = vrot.lane.b32.xlu0 %v4137, 124
    %v4141 = vpop.permute.xlu0 %4140
    %v4144 = vadd.f32 %v4103, %v4139
    %v4145 = vadd.f32 %v4104, %v4141
    %s4146 = sld [smem:[#allocation7 + $0x4a]]
    %v4147 = vstv %s4146
    %v4148 = vmul.f32 %v2559, %v4147
    %v4149 = vmul.f32 %v2560, %v4147
    %v4150 = vmul.f32 %v2561, %v4147
    %v4154 = vrot.slane %v4148, 2
    %v4155 = vrot.slane %v4149, 2
    %v4156 = vsel %vm131, %v4154, %v4155
    %v4157 = vrot.slane %v4150, 2
    %v4158 = vsel %vm131, %v4155, %v4157
    %4159 = vrot.lane.b32.xlu0 %v4156, 124
    %v4160 = vpop.permute.xlu0 %4159
    %4161 = vrot.lane.b32.xlu0 %v4158, 124
    %v4162 = vpop.permute.xlu0 %4161
    %4163 = vrot.lane.b32.xlu0 %v4157, 124
    %v4164 = vpop.permute.xlu0 %4163
    %v4168 = vadd.f32 %v4122, %v4160
    %v4169 = vadd.f32 %v4123, %v4162
    %v4170 = vadd.f32 %v4124, %v4164
    %s4171 = sld [smem:[#allocation7 + $0x51]]
    %v4172 = vstv %s4171
    %v4173 = vmul.f32 %v2559, %v4172
    %v4174 = vmul.f32 %v2560, %v4172
    %v4175 = vmul.f32 %v2561, %v4172
    %v4179 = vrot.slane %v4173, 4
    %v4180 = vrot.slane %v4174, 4
    %v4181 = vsel %vm47, %v4179, %v4180
    %v4182 = vrot.slane %v4175, 4
    %v4183 = vsel %vm47, %v4180, %v4182
    %4184 = vrot.lane.b32.xlu0 %v4181, 124
    %v4185 = vpop.permute.xlu0 %4184
    %4186 = vrot.lane.b32.xlu0 %v4183, 124
    %v4187 = vpop.permute.xlu0 %4186
    %v4190 = vadd.f32 %v4144, %v4185
    %v4191 = vadd.f32 %v4145, %v4187
    %s4192 = sld [smem:[#allocation7 + $0x58]]
    %v4193 = vstv %s4192
    %v4194 = vmul.f32 %v2559, %v4193
    %v4195 = vmul.f32 %v2560, %v4193
    %v4196 = vmul.f32 %v2561, %v4193
    %v4200 = vrot.slane %v4194, 4
    %v4201 = vrot.slane %v4195, 4
    %v4202 = vsel %vm47, %v4200, %v4201
    %v4203 = vrot.slane %v4196, 4
    %v4204 = vsel %vm47, %v4201, %v4203
    %4205 = vrot.lane.b32.xlu0 %v4202, 124
    %v4206 = vpop.permute.xlu0 %4205
    %4207 = vrot.lane.b32.xlu0 %v4204, 124
    %v4208 = vpop.permute.xlu0 %4207
    %4209 = vrot.lane.b32.xlu0 %v4203, 124
    %v4210 = vpop.permute.xlu0 %4209
    %v4214 = vadd.f32 %v4168, %v4206
    %v4215 = vadd.f32 %v4169, %v4208
    %v4216 = vadd.f32 %v4170, %v4210
    %s4217 = sld [smem:[#allocation7 + $0x5f]]
    %v4218 = vstv %s4217
    %v4219 = vmul.f32 %v2559, %v4218
    %v4220 = vmul.f32 %v2560, %v4218
    %v4221 = vmul.f32 %v2561, %v4218
    %v4225 = vrot.slane %v4219, 6
    %v4226 = vrot.slane %v4220, 6
    %v4227 = vsel %vm124, %v4225, %v4226
    %v4228 = vrot.slane %v4221, 6
    %v4229 = vsel %vm124, %v4226, %v4228
    %4230 = vrot.lane.b32.xlu0 %v4227, 124
    %v4231 = vpop.permute.xlu0 %4230
    %4232 = vrot.lane.b32.xlu0 %v4229, 124
    %v4233 = vpop.permute.xlu0 %4232
    %v4236 = vadd.f32 %v4190, %v4231
    %v4237 = vadd.f32 %v4191, %v4233
    %s4238 = sld [smem:[#allocation7 + $0x36]]
    %v4239 = vstv %s4238
    %v4240 = vmul.f32 %v2559, %v4239
    %v4241 = vmul.f32 %v2560, %v4239
    %4244 = vrot.lane.b32.xlu0 %v4240, 123
    %v4245 = vpop.permute.xlu0 %4244
    %4246 = vrot.lane.b32.xlu0 %v4241, 123
    %v4247 = vpop.permute.xlu0 %4246
    %v4250 = vadd.f32 %v4236, %v4245
    %v4251 = vadd.f32 %v4237, %v4247
    %s4252 = sld [smem:[#allocation7 + $0x3d]]
    %v4253 = vstv %s4252
    %v4254 = vmul.f32 %v2559, %v4253
    %v4255 = vmul.f32 %v2560, %v4253
    %v4256 = vmul.f32 %v2561, %v4253
    %4260 = vrot.lane.b32.xlu0 %v4254, 123
    %v4261 = vpop.permute.xlu0 %4260
    %4262 = vrot.lane.b32.xlu0 %v4255, 123
    %v4263 = vpop.permute.xlu0 %4262
    %4264 = vrot.lane.b32.xlu0 %v4256, 123
    %v4265 = vpop.permute.xlu0 %4264
    %v4269 = vadd.f32 %v4214, %v4261
    %v4270 = vadd.f32 %v4215, %v4263
    %v4271 = vadd.f32 %v4216, %v4265
    %s4272 = sld [smem:[#allocation7 + $0x44]]
    %v4273 = vstv %s4272
    %v4274 = vmul.f32 %v2559, %v4273
    %v4275 = vmul.f32 %v2560, %v4273
    %v4276 = vmul.f32 %v2561, %v4273
    %v4280 = vrot.slane %v4274, 2
    %v4281 = vrot.slane %v4275, 2
    %v4282 = vsel %vm131, %v4280, %v4281
    %v4283 = vrot.slane %v4276, 2
    %v4284 = vsel %vm131, %v4281, %v4283
    %4285 = vrot.lane.b32.xlu0 %v4282, 123
    %v4286 = vpop.permute.xlu0 %4285
    %4287 = vrot.lane.b32.xlu0 %v4284, 123
    %v4288 = vpop.permute.xlu0 %4287
    %v4291 = vadd.f32 %v4250, %v4286
    %v4292 = vadd.f32 %v4251, %v4288
    %s4293 = sld [smem:[#allocation7 + $0x4b]]
    %v4294 = vstv %s4293
    %v4295 = vmul.f32 %v2559, %v4294
    %v4296 = vmul.f32 %v2560, %v4294
    %v4297 = vmul.f32 %v2561, %v4294
    %v4301 = vrot.slane %v4295, 2
    %v4302 = vrot.slane %v4296, 2
    %v4303 = vsel %vm131, %v4301, %v4302
    %v4304 = vrot.slane %v4297, 2
    %v4305 = vsel %vm131, %v4302, %v4304
    %4306 = vrot.lane.b32.xlu0 %v4303, 123
    %v4307 = vpop.permute.xlu0 %4306
    %4308 = vrot.lane.b32.xlu0 %v4305, 123
    %v4309 = vpop.permute.xlu0 %4308
    %4310 = vrot.lane.b32.xlu0 %v4304, 123
    %v4311 = vpop.permute.xlu0 %4310
    %v4315 = vadd.f32 %v4269, %v4307
    %v4316 = vadd.f32 %v4270, %v4309
    %v4317 = vadd.f32 %v4271, %v4311
    %s4318 = sld [smem:[#allocation7 + $0x52]]
    %v4319 = vstv %s4318
    %v4320 = vmul.f32 %v2559, %v4319
    %v4321 = vmul.f32 %v2560, %v4319
    %v4322 = vmul.f32 %v2561, %v4319
    %v4326 = vrot.slane %v4320, 4
    %v4327 = vrot.slane %v4321, 4
    %v4328 = vsel %vm47, %v4326, %v4327
    %v4329 = vrot.slane %v4322, 4
    %v4330 = vsel %vm47, %v4327, %v4329
    %4331 = vrot.lane.b32.xlu0 %v4328, 123
    %v4332 = vpop.permute.xlu0 %4331
    %4333 = vrot.lane.b32.xlu0 %v4330, 123
    %v4334 = vpop.permute.xlu0 %4333
    %v4337 = vadd.f32 %v4291, %v4332
    %v4338 = vadd.f32 %v4292, %v4334
    %s4339 = sld [smem:[#allocation7 + $0x59]]
    %v4340 = vstv %s4339
    %v4341 = vmul.f32 %v2559, %v4340
    %v4342 = vmul.f32 %v2560, %v4340
    %v4343 = vmul.f32 %v2561, %v4340
    %v4347 = vrot.slane %v4341, 4
    %v4348 = vrot.slane %v4342, 4
    %v4349 = vsel %vm47, %v4347, %v4348
    %v4350 = vrot.slane %v4343, 4
    %v4351 = vsel %vm47, %v4348, %v4350
    %4352 = vrot.lane.b32.xlu0 %v4349, 123
    %v4353 = vpop.permute.xlu0 %4352
    %4354 = vrot.lane.b32.xlu0 %v4351, 123
    %v4355 = vpop.permute.xlu0 %4354
    %4356 = vrot.lane.b32.xlu0 %v4350, 123
    %v4357 = vpop.permute.xlu0 %4356
    %v4361 = vadd.f32 %v4315, %v4353
    %v4362 = vadd.f32 %v4316, %v4355
    %v4363 = vadd.f32 %v4317, %v4357
    %s4364 = sld [smem:[#allocation7 + $0x60]]
    %v4365 = vstv %s4364
    %v4366 = vmul.f32 %v2559, %v4365
    %v4367 = vmul.f32 %v2560, %v4365
    %v4368 = vmul.f32 %v2561, %v4365
    %v4372 = vrot.slane %v4366, 6
    %v4373 = vrot.slane %v4367, 6
    %v4374 = vsel %vm124, %v4372, %v4373
    %v4375 = vrot.slane %v4368, 6
    %v4376 = vsel %vm124, %v4373, %v4375
    %4377 = vrot.lane.b32.xlu0 %v4374, 123
    %v4378 = vpop.permute.xlu0 %4377
    %4379 = vrot.lane.b32.xlu0 %v4376, 123
    %v4380 = vpop.permute.xlu0 %4379
    %v4383 = vadd.f32 %v4337, %v4378
    %v4384 = vadd.f32 %v4338, %v4380
    %s4385 = sld [smem:[#allocation7 + $0x37]]
    %v4386 = vstv %s4385
    %v4387 = vmul.f32 %v2559, %v4386
    %v4388 = vmul.f32 %v2560, %v4386
    %4391 = vrot.lane.b32.xlu0 %v4387, 122
    %v4392 = vpop.permute.xlu0 %4391
    %4393 = vrot.lane.b32.xlu0 %v4388, 122
    %v4394 = vpop.permute.xlu0 %4393
    %v4397 = vadd.f32 %v4383, %v4392
    %v4398 = vadd.f32 %v4384, %v4394
    %s4399 = sld [smem:[#allocation7 + $0x3e]]
    %v4400 = vstv %s4399
    %v4401 = vmul.f32 %v2559, %v4400
    %v4402 = vmul.f32 %v2560, %v4400
    %v4403 = vmul.f32 %v2561, %v4400
    %4407 = vrot.lane.b32.xlu0 %v4401, 122
    %v4408 = vpop.permute.xlu0 %4407
    %4409 = vrot.lane.b32.xlu0 %v4402, 122
    %v4410 = vpop.permute.xlu0 %4409
    %4411 = vrot.lane.b32.xlu0 %v4403, 122
    %v4412 = vpop.permute.xlu0 %4411
    %v4416 = vadd.f32 %v4361, %v4408
    %v4417 = vadd.f32 %v4362, %v4410
    %v4418 = vadd.f32 %v4363, %v4412
    %s4419 = sld [smem:[#allocation7 + $0x45]]
    %v4420 = vstv %s4419
    %v4421 = vmul.f32 %v2559, %v4420
    %v4422 = vmul.f32 %v2560, %v4420
    %v4423 = vmul.f32 %v2561, %v4420
    %v4427 = vrot.slane %v4421, 2
    %v4428 = vrot.slane %v4422, 2
    %v4429 = vsel %vm131, %v4427, %v4428
    %v4430 = vrot.slane %v4423, 2
    %v4431 = vsel %vm131, %v4428, %v4430
    %4432 = vrot.lane.b32.xlu0 %v4429, 122
    %v4433 = vpop.permute.xlu0 %4432
    %4434 = vrot.lane.b32.xlu0 %v4431, 122
    %v4435 = vpop.permute.xlu0 %4434
    %v4438 = vadd.f32 %v4397, %v4433
    %v4439 = vadd.f32 %v4398, %v4435
    %s4440 = sld [smem:[#allocation7 + $0x4c]]
    %v4441 = vstv %s4440
    %v4442 = vmul.f32 %v2559, %v4441
    %v4443 = vmul.f32 %v2560, %v4441
    %v4444 = vmul.f32 %v2561, %v4441
    %v4448 = vrot.slane %v4442, 2
    %v4449 = vrot.slane %v4443, 2
    %v4450 = vsel %vm131, %v4448, %v4449
    %v4451 = vrot.slane %v4444, 2
    %v4452 = vsel %vm131, %v4449, %v4451
    %4453 = vrot.lane.b32.xlu0 %v4450, 122
    %v4454 = vpop.permute.xlu0 %4453
    %4455 = vrot.lane.b32.xlu0 %v4452, 122
    %v4456 = vpop.permute.xlu0 %4455
    %4457 = vrot.lane.b32.xlu0 %v4451, 122
    %v4458 = vpop.permute.xlu0 %4457
    %v4462 = vadd.f32 %v4416, %v4454
    %v4463 = vadd.f32 %v4417, %v4456
    %v4464 = vadd.f32 %v4418, %v4458
    %s4465 = sld [smem:[#allocation7 + $0x53]]
    %v4466 = vstv %s4465
    %v4467 = vmul.f32 %v2559, %v4466
    %v4468 = vmul.f32 %v2560, %v4466
    %v4469 = vmul.f32 %v2561, %v4466
    %v4473 = vrot.slane %v4467, 4
    %v4474 = vrot.slane %v4468, 4
    %v4475 = vsel %vm47, %v4473, %v4474
    %v4476 = vrot.slane %v4469, 4
    %v4477 = vsel %vm47, %v4474, %v4476
    %4478 = vrot.lane.b32.xlu0 %v4475, 122
    %v4479 = vpop.permute.xlu0 %4478
    %4480 = vrot.lane.b32.xlu0 %v4477, 122
    %v4481 = vpop.permute.xlu0 %4480
    %v4484 = vadd.f32 %v4438, %v4479
    %v4485 = vadd.f32 %v4439, %v4481
    %s4486 = sld [smem:[#allocation7 + $0x5a]]
    %v4487 = vstv %s4486
    %v4488 = vmul.f32 %v2559, %v4487
    %v4489 = vmul.f32 %v2560, %v4487
    %v4490 = vmul.f32 %v2561, %v4487
    %v4494 = vrot.slane %v4488, 4
    %v4495 = vrot.slane %v4489, 4
    %v4496 = vsel %vm47, %v4494, %v4495
    %v4497 = vrot.slane %v4490, 4
    %v4498 = vsel %vm47, %v4495, %v4497
    %4499 = vrot.lane.b32.xlu0 %v4496, 122
    %v4500 = vpop.permute.xlu0 %4499
    %4501 = vrot.lane.b32.xlu0 %v4498, 122
    %v4502 = vpop.permute.xlu0 %4501
    %4503 = vrot.lane.b32.xlu0 %v4497, 122
    %v4504 = vpop.permute.xlu0 %4503
    %v4508 = vadd.f32 %v4462, %v4500
    %v4509 = vadd.f32 %v4463, %v4502
    %v4510 = vadd.f32 %v4464, %v4504
    %s4511 = sld [smem:[#allocation7 + $0x61]]
    %v4512 = vstv %s4511
    %v4513 = vmul.f32 %v2559, %v4512
    %v4514 = vmul.f32 %v2560, %v4512
    %v4515 = vmul.f32 %v2561, %v4512
    %v4519 = vrot.slane %v4513, 6
    %v4520 = vrot.slane %v4514, 6
    %v4521 = vsel %vm124, %v4519, %v4520
    %v4522 = vrot.slane %v4515, 6
    %v4523 = vsel %vm124, %v4520, %v4522
    %4524 = vrot.lane.b32.xlu0 %v4521, 122
    %v4525 = vpop.permute.xlu0 %4524
    %4526 = vrot.lane.b32.xlu0 %v4523, 122
    %v4527 = vpop.permute.xlu0 %4526
    %v4530 = vadd.f32 %v4484, %v4525
    %v4531 = vadd.f32 %v4485, %v4527
    %v4535 = vrot.slane %v3523, 1
    %v4536 = vrot.slane %v3524, 1
    %v4537 = vsel %vm133, %v4535, %v4536
    %v4538 = vrot.slane %v3525, 1
    %v4539 = vsel %vm133, %v4536, %v4538
    %v4542 = vadd.f32 %v3545, %v4537
    %v4543 = vadd.f32 %v3546, %v4539
    %v4547 = vrot.slane %v4508, 1
    %v4548 = vrot.slane %v4509, 1
    %v4549 = vsel %vm133, %v4547, %v4548
    %v4550 = vrot.slane %v4510, 1
    %v4551 = vsel %vm133, %v4548, %v4550
    %v4554 = vadd.f32 %v4530, %v4549
    %v4555 = vadd.f32 %v4531, %v4551
    %v4556 = vadd.f32 %v4542, %v4554
    %v4557 = vadd.f32 %v4543, %v4555
    %s4558 = sld [smem:[#allocation2]]
    %v4559 = vstv %s4558
    %v4560 = vadd.f32 %v4556, %v4559
    %v4561 = vadd.f32 %v4557, %v4559
    %v4562 = vxor.u32 %v4560, 2147483648
    %v4563 = vxor.u32 %v4561, 2147483648
    %v4564 = vmul.f32 %v4562, 1.442695
    %v4565 = vpow.pop %v4564
    %v4566 = vmul.f32 %v4563, 1.442695
    %v4567 = vpow.pop %v4566
    %v4568 = vadd.f32 %v4565, 1.0
    %v4569 = vadd.f32 %v4567, 1.0
    %v4570 = vrcp.pop %v4568
    %v4571 = vmul.f32 1.0, %v4570
    %v4572 = vrcp.pop %v4569
    %v4573 = vmul.f32 1.0, %v4572
    %v4575 = vrot.slane %v4571, 1
    %4576 = vrot.lane.b32.xlu0 %v4575, 16
    %v4577 = vpop.permute.xlu0 %4576
    %v4579 = vrot.slane %v4571, 2
    %4580 = vrot.lane.b32.xlu0 %v4579, 32
    %v4581 = vpop.permute.xlu0 %4580
    %v4583 = vrot.slane %v4571, 3
    %4584 = vrot.lane.b32.xlu0 %v4583, 48
    %v4585 = vpop.permute.xlu0 %4584
    %v4587 = vrot.slane %v4571, 4
    %4588 = vrot.lane.b32.xlu0 %v4587, 64
    %v4589 = vpop.permute.xlu0 %4588
    %v4591 = vrot.slane %v4571, 5
    %4592 = vrot.lane.b32.xlu0 %v4591, 80
    %v4593 = vpop.permute.xlu0 %4592
    %v4595 = vrot.slane %v4571, 6
    %4596 = vrot.lane.b32.xlu0 %v4595, 96
    %v4597 = vpop.permute.xlu0 %4596
    %v4599 = vrot.slane %v4571, 7
    %4600 = vrot.lane.b32.xlu0 %v4599, 112
    %v4601 = vpop.permute.xlu0 %4600
    %v4604 = vrot.slane %v4573, 1
    %4605 = vrot.lane.b32.xlu0 %v4604, 16
    %v4606 = vpop.permute.xlu0 %4605
    %v4608 = vrot.slane %v4573, 2
    %4609 = vrot.lane.b32.xlu0 %v4608, 32
    %v4610 = vpop.permute.xlu0 %4609
    %v4612 = vrot.slane %v4573, 3
    %4613 = vrot.lane.b32.xlu0 %v4612, 48
    %v4614 = vpop.permute.xlu0 %4613
    %v4616 = vrot.slane %v4573, 4
    %4617 = vrot.lane.b32.xlu0 %v4616, 64
    %v4618 = vpop.permute.xlu0 %4617
    %v4620 = vrot.slane %v4573, 5
    %4621 = vrot.lane.b32.xlu0 %v4620, 80
    %v4622 = vpop.permute.xlu0 %4621
    %v4624 = vrot.slane %v4573, 6
    %4625 = vrot.lane.b32.xlu0 %v4624, 96
    %v4626 = vpop.permute.xlu0 %4625
    %v4628 = vrot.slane %v4573, 7
    %4629 = vrot.lane.b32.xlu0 %v4628, 112
    %v4630 = vpop.permute.xlu0 %4629
    %v4632 = vsel %vm2324, %v4571, %v4577
    %v4633 = vsel %vm2326, %v4632, %v4581
    %v4634 = vsel %vm2328, %v4633, %v4585
    %v4635 = vsel %vm2330, %v4634, %v4589
    %v4636 = vsel %vm2332, %v4635, %v4593
    %v4637 = vsel %vm2334, %v4636, %v4597
    %v4638 = vsel %vm2336, %v4637, %v4601
    %v4639 = vsel %vm2324, %v4573, %v4606
    %v4640 = vsel %vm2326, %v4639, %v4610
    %v4641 = vsel %vm2328, %v4640, %v4614
    %v4642 = vsel %vm2330, %v4641, %v4618
    %v4643 = vsel %vm2332, %v4642, %v4622
    %v4644 = vsel %vm2334, %v4643, %v4626
    %v4645 = vsel %vm2336, %v4644, %v4630
    %v4646 = vlaneseq
    %v4647 = vshrl.u32 %v4646, 7
    %v4648 = vsub.s32 0, %v4647
    %v4649 = vrot.slane %v4638, %v4648
    %v4650 = vlaneseq
    %v4651 = vshrl.u32 %v4650, 7
    %v4652 = vsub.s32 0, %v4651
    %v4653 = vrot.slane %v4645, %v4652
    %v4656 = vcombine.low %v4649, %v4653
    %v4658 = vmul.f32 %v2360, %v4656
    %s4659 = scalar_lea.vmem [#allocation8], 8
    %4660 = vst [vmem:[%s4659] sm:$0xff] %v4658
    // Predicated region
    $region22: #{tpu_custom_call.1} parent=1 // pred_check
      _
    $region23: #{tpu_custom_call.1} parent=1 // pred_check_branch
      %4662 = sbr.rel (0) target = $region25
    $region24: #{tpu_custom_call.1} parent=1 // pred_region
      %s4664 = ssub.s32 256, 256
      %4665 = vsyncadd [#allocation5], %s4664
      %s4666 = sshll.u32 [#allocation8], 4
      %s4667 = int_to_ptr.vmem [resolvable:$true] %s4666
      %4672 = dma.vmem_to_hbm [thread:$0]  %s4667, 256, %s3, [#allocation5], 128, 128, 8
    $region25: #{tpu_custom_call.1} parent=1 // pred_fallthru
      _
    // Predicated region
    $region26: #{tpu_custom_call.1} parent=1 // pred_check
      _
    $region27: #{tpu_custom_call.1} parent=1 // pred_check_branch
      %4674 = sbr.rel (0) target = $region29
    $region28: #{tpu_custom_call.1} parent=1 // pred_region
      %4675 = dma.done [#allocation5], 256
    $region29: #{tpu_custom_call.1} parent=1 // pred_fallthru
      _
    %4676 = vsyncpa [#allocation4], 1
    %4677 = vsyncpa [#allocation5], 1
    %4678 = vsyncpa [#allocation6], 1

</llo_original>
